<compile_context>
chip_gen: v5e
topology: v5e:2x2
jax: 0.10.0
libtpu: 0.0.40
codegen_flags: <defaults>
</compile_context>

<pallas_src>
import functools

import jax
import jax.numpy as jnp
from jax import lax
from jax.experimental import pallas as pl
from jax.experimental.pallas import tpu as pltpu

EPS = 1e-8          # torch cosine_similarity default eps
NOISE_LEVEL = 0.1   # ADAG.add_noise default


def _round_up(x, m):
    return ((x + m - 1) // m) * m


def _choose_tm(n):
    """Row tile for the embed matmul: >=2 tiles when possible (v7x megacore),
    multiple of 16 (bf16 packing), capped at 1024 (safe in v5e's 16 MiB scoped
    VMEM for a 1536-wide bf16 input tile, near HBM roofline on v6e)."""
    n16 = _round_up(max(n, 1), 16)
    if n16 <= 16:
        return 16
    return min(1024, _round_up((n16 + 1) // 2, 16))


# ------------------ embed kernel: feature_embedding_mlp + virtual node ------------------

def _embed_kernel(x_ref, w1_ref, b1_ref, w2_ref, b2_ref, emb_ref, psum_ref, *, tm, n_real):
    # Linear(1433,H) -> ReLU -> Linear(H,H); bf16 MXU, f32 accumulate.
    h = jnp.dot(x_ref[...], w1_ref[...], preferred_element_type=jnp.float32) + b1_ref[...]
    h = jnp.maximum(h, 0.0)
    e = jnp.dot(h.astype(jnp.bfloat16), w2_ref[...],
                preferred_element_type=jnp.float32) + b2_ref[...]

    # Masked per-tile partial sum for the virtual node, in f32 BEFORE the bf16
    # cast (padded rows excluded). Per-tile partial outputs (not a cross-tile
    # accumulator) keep the row axis "parallel" so v7x's two TCs can split it.
    row0 = pl.program_id(0) * tm
    rows = row0 + lax.broadcasted_iota(jnp.int32, (tm, 1), 0)
    masked = jnp.where(rows < n_real, e, 0.0)
    psum_ref[...] = jnp.sum(masked, axis=0, keepdims=True)[None]        # (1,1,H)

    # bf16 storage halves HBM writeback and downstream gather/tail traffic.
    emb_ref[...] = e.astype(jnp.bfloat16)


def embed_and_vn_partials(x_pad, w1_pad, b1, w2, b2, *, tm, n_real):
    n_pad, fp = x_pad.shape
    hd = w2.shape[1]
    num_tiles = n_pad // tm
    kernel = functools.partial(_embed_kernel, tm=tm, n_real=n_real)
    # VMEM at tm<=1024: X tile (tm,1536) bf16 double-buffered ~6 MiB + bf16
    # output ~0.5 MiB + weights <1 MiB -> well under every generation's scoped
    # default; no vmem_limit_bytes override needed.
    emb, psums = pl.pallas_call(
        kernel,
        out_shape=(jax.ShapeDtypeStruct((n_pad, hd), jnp.bfloat16),
                   jax.ShapeDtypeStruct((num_tiles, 1, hd), jnp.float32)),
        grid=(num_tiles,),
        in_specs=[
            pl.BlockSpec((tm, fp), lambda i: (i, 0)),      # X row tile (bf16), pipelined
            pl.BlockSpec((fp, hd), lambda i: (0, 0)),      # W1 (resident across grid)
            pl.BlockSpec((1, hd), lambda i: (0, 0)),       # b1
            pl.BlockSpec((hd, hd), lambda i: (0, 0)),      # W2
            pl.BlockSpec((1, hd), lambda i: (0, 0)),       # b2
        ],
        out_specs=(pl.BlockSpec((tm, hd), lambda i: (i, 0)),
                   pl.BlockSpec((1, 1, hd), lambda i: (i, 0, 0))),
        compiler_params=pltpu.CompilerParams(dimension_semantics=("parallel",)),
    )(x_pad, w1_pad, b1, w2, b2)
    return emb, psums


# ------------- fused tail: aggregate + noise + stacked score_mlp + hinge partials -------------

def _tail_kernel(emb_a_ref, emb_c_ref, nb_b_ref, nb_c_ref, noise_a_ref, noise_b_ref,
                 w1emb_ref, slab_ref, partial_ref, *, tb, n_batch):
    # bf16 embeddings upcast to f32 for the cosine / softmax / hinge math.
    emb_a = emb_a_ref[...].astype(jnp.float32)                          # (TB,H)
    emb_c = emb_c_ref[...].astype(jnp.float32)                          # (TB,H)
    nb_b = nb_b_ref[...].astype(jnp.float32)                            # (TB,K,H)
    nb_c = nb_c_ref[...].astype(jnp.float32)                            # (TB,K,H)

    a_sq = jnp.sum(emb_a * emb_a, axis=-1, keepdims=True)               # (TB,1)
    inv_a = lax.rsqrt(jnp.maximum(a_sq, EPS * EPS))                     # 1/max(||a||,eps)

    def aggregate(nb):                                                  # nb: (TB,K,H)
        dots = jnp.sum(emb_a[:, None, :] * nb, axis=-1)                 # (TB,K)
        n_sq = jnp.sum(nb * nb, axis=-1)                                # (TB,K)
        inv_n = lax.rsqrt(jnp.maximum(n_sq, EPS * EPS))
        scores = dots * inv_a * inv_n                                   # cosine sim
        m = jnp.max(scores, axis=-1, keepdims=True)
        w = jnp.exp(scores - m)
        w = w * pl.reciprocal(jnp.sum(w, axis=-1, keepdims=True), approx=True)
        return jnp.sum(w[:, :, None] * nb, axis=1)                      # (TB,H)

    b1 = aggregate(nb_b)
    c1 = aggregate(nb_c)

    noisy_a = emb_a + NOISE_LEVEL * noise_a_ref[...]
    noisy_b = b1 + NOISE_LEVEL * noise_b_ref[...]

    # Stack ALL six score_mlp inputs: one MXU matmul, one ReLU, one lane
    # reduce, one sigmoid for the whole tail (was 6x each).
    stacked = jnp.concatenate([b1, c1, emb_a, emb_c, noisy_a, noisy_b], axis=0)  # (6TB,H)

    vn_contrib = slab_ref[0:1, :]        # precomputed vn @ W1[:H] + b1  (1,H)
    w2row = slab_ref[1:2, :]             # final Linear(H,1) weight row  (1,H)
    sb2 = slab_ref[2:3, 0:1]             # final bias                    (1,1)

    hh = jnp.dot(stacked.astype(jnp.bfloat16), w1emb_ref[...],
                 preferred_element_type=jnp.float32) + vn_contrib
    hh = jnp.maximum(hh, 0.0)
    # final Linear(H,1) as VPU multiply + lane reduce (keeps MXU free)
    s = jax.nn.sigmoid(jnp.sum(hh * w2row, axis=-1, keepdims=True) + sb2)   # (6TB,1)

    s_ab = s[0 * tb:1 * tb]
    s_ac = s[1 * tb:2 * tb]
    s_a_b = s[2 * tb:3 * tb]
    s_a_c = s[3 * tb:4 * tb]
    s_a_noisy = s[4 * tb:5 * tb]
    s_b_noisy = s[5 * tb:6 * tb]

    # Per-row hinge terms; total loss = (sum over valid rows) / B, so a single
    # per-tile partial sum suffices (finished outside with a tiny JAX sum).
    per_row = (jnp.maximum(1.0 - s_ab + s_ac, 0.0)
               + jnp.maximum(1.0 - s_a_b + s_a_c, 0.0)
               + jnp.maximum(1.0 + s_a_noisy - s_b_noisy, 0.0))         # (TB,1)

    row0 = pl.program_id(0) * tb
    rows = row0 + lax.broadcasted_iota(jnp.int32, (tb, 1), 0)
    valid = (rows < n_batch).astype(jnp.float32)
    partial_ref[...] = jnp.sum(valid * per_row, keepdims=True)[None]    # (1,1,1)


def fused_tail(emb_a, emb_c, nb_b, nb_c, noise_a, noise_b, w1emb, slab, *, tb, n_batch):
    b_pad, hd = emb_a.shape
    k = nb_b.shape[1]
    num_tiles = b_pad // tb
    kernel = functools.partial(_tail_kernel, tb=tb, n_batch=n_batch)
    return pl.pallas_call(
        kernel,
        out_shape=jax.ShapeDtypeStruct((num_tiles, 1, 1), jnp.float32),
        grid=(num_tiles,),
        in_specs=[
            pl.BlockSpec((tb, hd), lambda i: (i, 0)),       # emb_a tile (bf16)
            pl.BlockSpec((tb, hd), lambda i: (i, 0)),       # emb_c tile (bf16)
            pl.BlockSpec((tb, k, hd), lambda i: (i, 0, 0)), # neighbors b (bf16)
            pl.BlockSpec((tb, k, hd), lambda i: (i, 0, 0)), # neighbors c (bf16)
            pl.BlockSpec((tb, hd), lambda i: (i, 0)),       # noise a (f32)
            pl.BlockSpec((tb, hd), lambda i: (i, 0)),       # noise b (f32)
            pl.BlockSpec((hd, hd), lambda i: (0, 0)),       # W1 emb-half (resident, bf16)
            pl.BlockSpec((3, hd), lambda i: (0, 0)),        # packed [vn_contrib; w2row; b2]
        ],
        out_specs=pl.BlockSpec((1, 1, 1), lambda i: (i, 0, 0)),
        compiler_params=pltpu.CompilerParams(dimension_semantics=("parallel",)),
    )(emb_a, emb_c, nb_b, nb_c, noise_a, noise_b, w1emb, slab)


# ----------------------------- parameter / input setup (glue) -----------------------------

def init_params(key, hidden_dim, feat_dim=1433):
    feat_pad = _round_up(feat_dim, 128)
    ks = jax.random.split(key, 4)

    def lin(k, fan_in, fan_out):
        return (jax.random.normal(k, (fan_in, fan_out), jnp.float32)
                / jnp.sqrt(jnp.float32(fan_in)))

    emb_w1 = jnp.pad(lin(ks[0], feat_dim, hidden_dim), ((0, feat_pad - feat_dim), (0, 0)))
    score_w1 = lin(ks[2], 2 * hidden_dim, hidden_dim)
    score_w2 = lin(ks[3], hidden_dim, 1)

    return {
        # feature_embedding_mlp (matmul weights stored bf16, padded once here)
        "emb_w1": emb_w1.astype(jnp.bfloat16),
        "emb_b1": jnp.zeros((1, hidden_dim), jnp.float32),
        "emb_w2": lin(ks[1], hidden_dim, hidden_dim).astype(jnp.bfloat16),
        "emb_b2": jnp.zeros((1, hidden_dim), jnp.float32),
        # score_mlp first Linear split into virtual-node half / embedding half
        "score_w1_vn": score_w1[:hidden_dim].astype(jnp.bfloat16),
        "score_w1_emb": score_w1[hidden_dim:].astype(jnp.bfloat16),
        "score_b1": jnp.zeros((1, hidden_dim), jnp.float32),
        # final Linear(H,1) kept as an f32 (1,H) row for the VPU path
        "score_w2_row": score_w2.T.astype(jnp.float32),
        "score_b2": jnp.zeros((1, 1), jnp.float32),
    }


def prepare_features(features, tm):
    """Pad rows to a multiple of tm (tm is a multiple of 16 -> bf16-friendly),
    features to a multiple of 128, cast bf16 — once, outside forward."""
    n, f = features.shape
    fp = _round_up(f, 128)
    n_pad = _round_up(n, tm)
    return jnp.pad(features, ((0, n_pad - n), (0, fp - f))).astype(jnp.bfloat16)


# ---------------------------------- ADAG.forward ----------------------------------

@functools.partial(jax.jit, static_argnames=("n_real", "tm", "tb"))
def adag_forward(params, x_pad, feat_a, feat_c, nbr_b, nbr_c, noise_a, noise_b,
                 *, n_real, tm, tb):
    emb, psums = embed_and_vn_partials(
        x_pad, params["emb_w1"], params["emb_b1"], params["emb_w2"], params["emb_b2"],
        tm=tm, n_real=n_real)
    virtual_node = jnp.sum(psums, axis=0) * (1.0 / n_real)               # (1,H) f32
    hd = virtual_node.shape[1]

    # The virtual-node half of score_mlp's first Linear is constant across all
    # rows: compute it once (tiny XLA matmul) and pack the tail's small
    # constants into one (3,H) slab -> one DMA instead of five tiny ones.
    vn_contrib = (virtual_node @ params["score_w1_vn"].astype(jnp.float32)
                  + params["score_b1"])                                  # (1,H)
    sb2_row = jnp.pad(params["score_b2"], ((0, 0), (0, hd - 1)))         # (1,H)
    slab = jnp.concatenate([vn_contrib, params["score_w2_row"], sb2_row], axis=0)

    # Index gathers stay in XLA at this tiny batch size; callers must guarantee
    # all indices < n_real (padded emb rows hold bias-driven garbage).
    # TODO(synk): at realistic B*K, move the gathers into the tail kernel via
    # PrefetchScalarGridSpec / manual make_async_copy to skip the HBM bounce.
    b = feat_a.shape[0]
    b_pad = _round_up(b, tb)

    def gpad(a):
        pad = [(0, b_pad - b)] + [(0, 0)] * (a.ndim - 1)
        return jnp.pad(a, pad)

    emb_a = gpad(emb[feat_a])            # (B_pad,H)   bf16
    emb_c = gpad(emb[feat_c])            # (B_pad,H)   bf16
    nb_b = gpad(emb[nbr_b])              # (B_pad,K,H) bf16
    nb_c = gpad(emb[nbr_c])              # (B_pad,K,H) bf16
    na = gpad(noise_a)
    nb_noise = gpad(noise_b)

    partials = fused_tail(emb_a, emb_c, nb_b, nb_c, na, nb_noise,
                          params["score_w1_emb"], slab, tb=tb, n_batch=b)
    return jnp.sum(partials) / b


# --------------------------------- pure-JAX reference ---------------------------------

def adag_forward_ref(params, x_pad, n_real, feat_a, feat_c, nbr_b, nbr_c, noise_a, noise_b):
    x = x_pad.astype(jnp.float32)
    h = jnp.maximum(x @ params["emb_w1"].astype(jnp.float32) + params["emb_b1"], 0.0)
    emb = h @ params["emb_w2"].astype(jnp.float32) + params["emb_b2"]
    vn = jnp.mean(emb[:n_real], axis=0, keepdims=True)

    emb_a, emb_c = emb[feat_a], emb[feat_c]
    nb_b, nb_c = emb[nbr_b], emb[nbr_c]

    def agg(a, nb):
        dots = jnp.sum(a[:, None, :] * nb, axis=-1)
        an = jnp.maximum(jnp.sqrt(jnp.sum(a * a, axis=-1, keepdims=True)), EPS)
        nn_ = jnp.maximum(jnp.sqrt(jnp.sum(nb * nb, axis=-1)), EPS)
        w = jax.nn.softmax(dots / (an * nn_), axis=-1)
        return jnp.sum(w[:, :, None] * nb, axis=1)

    b1, c1 = agg(emb_a, nb_b), agg(emb_a, nb_c)
    noisy_a = emb_a + NOISE_LEVEL * noise_a
    noisy_b = b1 + NOISE_LEVEL * noise_b

    w1_full = jnp.concatenate([params["score_w1_vn"].astype(jnp.float32),
                               params["score_w1_emb"].astype(jnp.float32)], axis=0)

    def score(r):
        xx = jnp.concatenate([jnp.broadcast_to(vn, r.shape), r], axis=-1)
        hh = jnp.maximum(xx @ w1_full + params["score_b1"], 0.0)
        return jax.nn.sigmoid(hh @ params["score_w2_row"].T + params["score_b2"])

    s_ab, s_ac = score(b1), score(c1)
    s_a_b, s_a_c = score(emb_a), score(emb_c)
    s_a_noisy, s_b_noisy = score(noisy_a), score(noisy_b)

    pos = (jnp.maximum(1.0 - s_ab + s_ac, 0.0).mean()
           + jnp.maximum(1.0 - s_a_b + s_a_c, 0.0).mean())
    neg = jnp.maximum(1.0 + s_a_noisy - s_b_noisy, 0.0).mean()
    return pos + neg


# --------------------------------------- demo ---------------------------------------

if __name__ == "__main__":
    key = jax.random.PRNGKey(0)
    k_param, k_feat, k_idx, k_noise = jax.random.split(key, 4)

    N, FEAT, HIDDEN, B, K = 32, 1433, 128, 4, 8   # hidden=128 forced by Linear(256, hidden)
    TM = _choose_tm(N)                            # >=2 embed tiles (v7x megacore)
    TB = min(128, _round_up(B, 16))               # batch tile for the fused tail

    params = init_params(k_param, HIDDEN, FEAT)
    features = jax.random.normal(k_feat, (N, FEAT), jnp.float32)   # self.features
    x_pad = prepare_features(features, TM)        # padded + bf16 once, outside forward

    ki = jax.random.split(k_idx, 4)
    batch_features_a = jax.random.randint(ki[0], (B,), 0, N)
    batch_features_c = jax.random.randint(ki[1], (B,), 0, N)
    batch_neighbors_b = jax.random.randint(ki[2], (B, K), 0, N)
    batch_neighbors_c = jax.random.randint(ki[3], (B, K), 0, N)

    # deterministic replacement for torch.randn_like
    kna, knb = jax.random.split(k_noise)
    noise_a = jax.random.normal(kna, (B, HIDDEN), jnp.float32)
    noise_b = jax.random.normal(knb, (B, HIDDEN), jnp.float32)

    loss = adag_forward(params, x_pad, batch_features_a, batch_features_c,
                        batch_neighbors_b, batch_neighbors_c, noise_a, noise_b,
                        n_real=N, tm=TM, tb=TB)
    loss = jax.block_until_ready(loss)
    assert loss.shape == () and bool(jnp.isfinite(loss))

    # NOTE: bf16 MXU / bf16 emb storage / approx reciprocal & rsqrt mean the
    # loss is close to, but not bit-identical with, an f32 (torch) reference.
    ref = adag_forward_ref(params, x_pad, N, batch_features_a, batch_features_c,
                           batch_neighbors_b, batch_neighbors_c, noise_a, noise_b)
    assert jnp.allclose(loss, ref, rtol=5e-2, atol=5e-2), (float(loss), float(ref))
    print("KERNEL_OK")
</pallas_src>

<mosaic_0001>
module attributes {stable_mosaic.version = 11 : i64} {
  func.func @_embed_kernel(%arg0: i32, %arg1: memref<16x1536xbf16, #tpu.memory_space<vmem>>, %arg2: memref<1536x128xbf16, #tpu.memory_space<vmem>>, %arg3: memref<1x128xf32, #tpu.memory_space<vmem>>, %arg4: memref<128x128xbf16, #tpu.memory_space<vmem>>, %arg5: memref<1x128xf32, #tpu.memory_space<vmem>>, %arg6: memref<16x128xbf16, #tpu.memory_space<vmem>>, %arg7: memref<1x1x128xf32, #tpu.memory_space<vmem>>) attributes {dimension_semantics = [#tpu.dimension_semantics<parallel>], iteration_bounds = array<i64: 2>, scalar_prefetch = 0 : i64, scratch_operands = 0 : i64, tpu.core_type = #tpu.core_type<tc>, window_params = [{transform_indices = @transform_0, window_bounds = array<i64: 16, 1536>}, {pipeline_mode = #tpu.pipeline_mode<synchronous>, transform_indices = @transform_1, window_bounds = array<i64: 1536, 128>}, {pipeline_mode = #tpu.pipeline_mode<synchronous>, transform_indices = @transform_2, window_bounds = array<i64: 1, 128>}, {pipeline_mode = #tpu.pipeline_mode<synchronous>, transform_indices = @transform_3, window_bounds = array<i64: 128, 128>}, {pipeline_mode = #tpu.pipeline_mode<synchronous>, transform_indices = @transform_4, window_bounds = array<i64: 1, 128>}, {transform_indices = @transform_5, window_bounds = array<i64: 16, 128>}, {transform_indices = @transform_6, window_bounds = array<i64: 1, 1, 128>}]} {
    %c0 = arith.constant 0 : index
    %c0_0 = arith.constant 0 : index
    %0 = vector.load %arg1[%c0, %c0_0] : memref<16x1536xbf16, #tpu.memory_space<vmem>>, vector<16x1536xbf16>
    %c0_1 = arith.constant 0 : index
    %c0_2 = arith.constant 0 : index
    %1 = vector.load %arg2[%c0_1, %c0_2] : memref<1536x128xbf16, #tpu.memory_space<vmem>>, vector<1536x128xbf16>
    %cst = arith.constant dense<0.000000e+00> : vector<16x128xf32>
    %2 = tpu.matmul %0, %1, %cst {dimension_numbers = #tpu.dot_dimension_numbers<[1], [0], [0], [1], [0, 0, 1, 1], [], []>} : vector<16x1536xbf16>, vector<1536x128xbf16>, vector<16x128xf32> -> vector<16x128xf32>
    %c0_3 = arith.constant 0 : index
    %c0_4 = arith.constant 0 : index
    %3 = vector.load %arg3[%c0_3, %c0_4] : memref<1x128xf32, #tpu.memory_space<vmem>>, vector<1x128xf32>
    %4 = vector.broadcast %3 : vector<1x128xf32> to vector<16x128xf32>
    %5 = arith.addf %2, %4 : vector<16x128xf32>
    %cst_5 = arith.constant 0.000000e+00 : f32
    %6 = vector.broadcast %cst_5 : f32 to vector<16x128xf32>
    %7 = arith.maximumf %5, %6 : vector<16x128xf32>
    %8 = arith.truncf %7 : vector<16x128xf32> to vector<16x128xbf16>
    %c0_6 = arith.constant 0 : index
    %c0_7 = arith.constant 0 : index
    %9 = vector.load %arg4[%c0_6, %c0_7] : memref<128x128xbf16, #tpu.memory_space<vmem>>, vector<128x128xbf16>
    %cst_8 = arith.constant dense<0.000000e+00> : vector<16x128xf32>
    %10 = tpu.matmul %8, %9, %cst_8 {dimension_numbers = #tpu.dot_dimension_numbers<[1], [0], [0], [1], [0, 0, 1, 1], [], []>} : vector<16x128xbf16>, vector<128x128xbf16>, vector<16x128xf32> -> vector<16x128xf32>
    %c0_9 = arith.constant 0 : index
    %c0_10 = arith.constant 0 : index
    %11 = vector.load %arg5[%c0_9, %c0_10] : memref<1x128xf32, #tpu.memory_space<vmem>>, vector<1x128xf32>
    %12 = vector.broadcast %11 : vector<1x128xf32> to vector<16x128xf32>
    %13 = arith.addf %10, %12 : vector<16x128xf32>
    %c16_i32 = arith.constant 16 : i32
    %14 = arith.muli %arg0, %c16_i32 : i32
    %15 = tpu.iota {dimensions = array<i32: 0>} : vector<16x1xi32>
    %16 = vector.broadcast %14 : i32 to vector<16x1xi32>
    %17 = arith.addi %16, %15 : vector<16x1xi32>
    %c32_i32 = arith.constant 32 : i32
    %18 = vector.broadcast %c32_i32 : i32 to vector<16x1xi32>
    %19 = arith.cmpi slt, %17, %18 : vector<16x1xi32>
    %cst_11 = arith.constant 0.000000e+00 : f32
    %20 = vector.shape_cast %19 : vector<16x1xi1> to vector<16x1xi1>
    %21 = vector.broadcast %20 : vector<16x1xi1> to vector<16x128xi1>
    %22 = vector.broadcast %cst_11 : f32 to vector<16x128xf32>
    %23 = arith.select %21, %13, %22 : vector<16x128xi1>, vector<16x128xf32>
    %cst_12 = arith.constant dense<0.000000e+00> : vector<128xf32>
    %24 = vector.multi_reduction <add>, %23, %cst_12 [0] : vector<16x128xf32> to vector<128xf32>
    %25 = vector.shape_cast %24 : vector<128xf32> to vector<1x128xf32>
    %26 = vector.shape_cast %25 : vector<1x128xf32> to vector<1x1x128xf32>
    %c0_13 = arith.constant 0 : index
    %c0_14 = arith.constant 0 : index
    %c0_15 = arith.constant 0 : index
    %27 = vector.load %arg7[%c0_13, %c0_14, %c0_15] : memref<1x1x128xf32, #tpu.memory_space<vmem>>, vector<1x1x128xf32>
    tpu.vector_store %arg7[%c0_13, %c0_14, %c0_15], %26 {strides = array<i32>} : memref<1x1x128xf32, #tpu.memory_space<vmem>>, vector<1x1x128xf32>,
    %28 = arith.truncf %13 : vector<16x128xf32> to vector<16x128xbf16>
    %c0_16 = arith.constant 0 : index
    %c0_17 = arith.constant 0 : index
    %29 = vector.load %arg6[%c0_16, %c0_17] : memref<16x128xbf16, #tpu.memory_space<vmem>>, vector<16x128xbf16>
    tpu.vector_store %arg6[%c0_16, %c0_17], %28 {strides = array<i32>} : memref<16x128xbf16, #tpu.memory_space<vmem>>, vector<16x128xbf16>,
    return
  }
  func.func @transform_0(%arg0: i32) -> (i32, i32) {
    %c0_i32 = arith.constant 0 : i32
    %c0_i32_0 = arith.constant 0 : i32
    return %arg0, %c0_i32 : i32, i32
  }
  func.func @transform_1(%arg0: i32) -> (i32, i32) {
    %c0_i32 = arith.constant 0 : i32
    %c0_i32_0 = arith.constant 0 : i32
    %c0_i32_1 = arith.constant 0 : i32
    return %c0_i32, %c0_i32_0 : i32, i32
  }
  func.func @transform_2(%arg0: i32) -> (i32, i32) {
    %c0_i32 = arith.constant 0 : i32
    %c0_i32_0 = arith.constant 0 : i32
    %c0_i32_1 = arith.constant 0 : i32
    return %c0_i32, %c0_i32_0 : i32, i32
  }
  func.func @transform_3(%arg0: i32) -> (i32, i32) {
    %c0_i32 = arith.constant 0 : i32
    %c0_i32_0 = arith.constant 0 : i32
    %c0_i32_1 = arith.constant 0 : i32
    return %c0_i32, %c0_i32_0 : i32, i32
  }
  func.func @transform_4(%arg0: i32) -> (i32, i32) {
    %c0_i32 = arith.constant 0 : i32
    %c0_i32_0 = arith.constant 0 : i32
    %c0_i32_1 = arith.constant 0 : i32
    return %c0_i32, %c0_i32_0 : i32, i32
  }
  func.func @transform_5(%arg0: i32) -> (i32, i32) {
    %c0_i32 = arith.constant 0 : i32
    %c0_i32_0 = arith.constant 0 : i32
    return %arg0, %c0_i32 : i32, i32
  }
  func.func @transform_6(%arg0: i32) -> (i32, i32, i32) {
    %c0_i32 = arith.constant 0 : i32
    %c0_i32_0 = arith.constant 0 : i32
    %c0_i32_1 = arith.constant 0 : i32
    return %arg0, %c0_i32, %c0_i32_0 : i32, i32, i32
  }
}

module attributes {stable_mosaic.version = 11 : i64} {
  func.func @_tail_kernel(%arg0: i32, %arg1: memref<16x128xbf16, #tpu.memory_space<vmem>>, %arg2: memref<16x128xbf16, #tpu.memory_space<vmem>>, %arg3: memref<16x8x128xbf16, #tpu.memory_space<vmem>>, %arg4: memref<16x8x128xbf16, #tpu.memory_space<vmem>>, %arg5: memref<16x128xf32, #tpu.memory_space<vmem>>, %arg6: memref<16x128xf32, #tpu.memory_space<vmem>>, %arg7: memref<128x128xbf16, #tpu.memory_space<vmem>>, %arg8: memref<3x128xf32, #tpu.memory_space<vmem>>, %arg9: memref<1x1x1xf32, #tpu.memory_space<vmem>>) attributes {dimension_semantics = [#tpu.dimension_semantics<parallel>], iteration_bounds = array<i64: 1>, scalar_prefetch = 0 : i64, scratch_operands = 0 : i64, tpu.core_type = #tpu.core_type<tc>, window_params = [{transform_indices = @transform_0, window_bounds = array<i64: 16, 128>}, {transform_indices = @transform_1, window_bounds = array<i64: 16, 128>}, {transform_indices = @transform_2, window_bounds = array<i64: 16, 8, 128>}, {transform_indices = @transform_3, window_bounds = array<i64: 16, 8, 128>}, {transform_indices = @transform_4, window_bounds = array<i64: 16, 128>}, {transform_indices = @transform_5, window_bounds = array<i64: 16, 128>}, {pipeline_mode = #tpu.pipeline_mode<synchronous>, transform_indices = @transform_6, window_bounds = array<i64: 128, 128>}, {pipeline_mode = #tpu.pipeline_mode<synchronous>, transform_indices = @transform_7, window_bounds = array<i64: 3, 128>}, {transform_indices = @transform_8, window_bounds = array<i64: 1, 1, 1>}]} {
    %c0 = arith.constant 0 : index
    %c0_0 = arith.constant 0 : index
    %0 = vector.load %arg1[%c0, %c0_0] : memref<16x128xbf16, #tpu.memory_space<vmem>>, vector<16x128xbf16>
    %1 = arith.extf %0 : vector<16x128xbf16> to vector<16x128xf32>
    %c0_1 = arith.constant 0 : index
    %c0_2 = arith.constant 0 : index
    %2 = vector.load %arg2[%c0_1, %c0_2] : memref<16x128xbf16, #tpu.memory_space<vmem>>, vector<16x128xbf16>
    %3 = arith.extf %2 : vector<16x128xbf16> to vector<16x128xf32>
    %c0_3 = arith.constant 0 : index
    %c0_4 = arith.constant 0 : index
    %c0_5 = arith.constant 0 : index
    %4 = vector.load %arg3[%c0_3, %c0_4, %c0_5] : memref<16x8x128xbf16, #tpu.memory_space<vmem>>, vector<16x8x128xbf16>
    %5 = arith.extf %4 : vector<16x8x128xbf16> to vector<16x8x128xf32>
    %c0_6 = arith.constant 0 : index
    %c0_7 = arith.constant 0 : index
    %c0_8 = arith.constant 0 : index
    %6 = vector.load %arg4[%c0_6, %c0_7, %c0_8] : memref<16x8x128xbf16, #tpu.memory_space<vmem>>, vector<16x8x128xbf16>
    %7 = arith.extf %6 : vector<16x8x128xbf16> to vector<16x8x128xf32>
    %8 = arith.mulf %1, %1 : vector<16x128xf32>
    %cst = arith.constant dense<0.000000e+00> : vector<16xf32>
    %9 = vector.multi_reduction <add>, %8, %cst [1] : vector<16x128xf32> to vector<16xf32>
    %10 = vector.shape_cast %9 : vector<16xf32> to vector<16x1xf32>
    %cst_9 = arith.constant 1.000000e-16 : f32
    %11 = vector.broadcast %cst_9 : f32 to vector<16x1xf32>
    %12 = arith.maximumf %10, %11 : vector<16x1xf32>
    %13 = math.rsqrt %12 : vector<16x1xf32>
    %14 = vector.shape_cast %1 : vector<16x128xf32> to vector<16x1x128xf32>
    %15 = vector.broadcast %14 : vector<16x1x128xf32> to vector<16x8x128xf32>
    %16 = arith.mulf %15, %5 : vector<16x8x128xf32>
    %cst_10 = arith.constant dense<0.000000e+00> : vector<16x8xf32>
    %17 = vector.multi_reduction <add>, %16, %cst_10 [2] : vector<16x8x128xf32> to vector<16x8xf32>
    %18 = arith.mulf %5, %5 : vector<16x8x128xf32>
    %cst_11 = arith.constant dense<0.000000e+00> : vector<16x8xf32>
    %19 = vector.multi_reduction <add>, %18, %cst_11 [2] : vector<16x8x128xf32> to vector<16x8xf32>
    %cst_12 = arith.constant 1.000000e-16 : f32
    %20 = vector.broadcast %cst_12 : f32 to vector<16x8xf32>
    %21 = arith.maximumf %19, %20 : vector<16x8xf32>
    %22 = math.rsqrt %21 : vector<16x8xf32>
    %23 = vector.broadcast %13 : vector<16x1xf32> to vector<16x8xf32>
    %24 = arith.mulf %17, %23 : vector<16x8xf32>
    %25 = arith.mulf %24, %22 : vector<16x8xf32>
    %cst_13 = arith.constant dense<0xFF800000> : vector<16xf32>
    %26 = vector.multi_reduction <maximumf>, %25, %cst_13 [1] : vector<16x8xf32> to vector<16xf32>
    %27 = vector.shape_cast %26 : vector<16xf32> to vector<16x1xf32>
    %28 = vector.broadcast %27 : vector<16x1xf32> to vector<16x8xf32>
    %29 = arith.subf %25, %28 : vector<16x8xf32>
    %30 = math.exp %29 : vector<16x8xf32>
    %cst_14 = arith.constant dense<0.000000e+00> : vector<16xf32>
    %31 = vector.multi_reduction <add>, %30, %cst_14 [1] : vector<16x8xf32> to vector<16xf32>
    %32 = vector.shape_cast %31 : vector<16xf32> to vector<16x1xf32>
    %33 = tpu.reciprocal %32 {approx = true} : vector<16x1xf32> -> vector<16x1xf32>
    %34 = vector.broadcast %33 : vector<16x1xf32> to vector<16x8xf32>
    %35 = arith.mulf %30, %34 : vector<16x8xf32>
    %36 = vector.shape_cast %35 : vector<16x8xf32> to vector<16x8x1xf32>
    %37 = vector.broadcast %36 : vector<16x8x1xf32> to vector<16x8x128xf32>
    %38 = arith.mulf %37, %5 : vector<16x8x128xf32>
    %cst_15 = arith.constant dense<0.000000e+00> : vector<16x128xf32>
    %39 = vector.multi_reduction <add>, %38, %cst_15 [1] : vector<16x8x128xf32> to vector<16x128xf32>
    %40 = vector.shape_cast %1 : vector<16x128xf32> to vector<16x1x128xf32>
    %41 = vector.broadcast %40 : vector<16x1x128xf32> to vector<16x8x128xf32>
    %42 = arith.mulf %41, %7 : vector<16x8x128xf32>
    %cst_16 = arith.constant dense<0.000000e+00> : vector<16x8xf32>
    %43 = vector.multi_reduction <add>, %42, %cst_16 [2] : vector<16x8x128xf32> to vector<16x8xf32>
    %44 = arith.mulf %7, %7 : vector<16x8x128xf32>
    %cst_17 = arith.constant dense<0.000000e+00> : vector<16x8xf32>
    %45 = vector.multi_reduction <add>, %44, %cst_17 [2] : vector<16x8x128xf32> to vector<16x8xf32>
    %cst_18 = arith.constant 1.000000e-16 : f32
    %46 = vector.broadcast %cst_18 : f32 to vector<16x8xf32>
    %47 = arith.maximumf %45, %46 : vector<16x8xf32>
    %48 = math.rsqrt %47 : vector<16x8xf32>
    %49 = vector.broadcast %13 : vector<16x1xf32> to vector<16x8xf32>
    %50 = arith.mulf %43, %49 : vector<16x8xf32>
    %51 = arith.mulf %50, %48 : vector<16x8xf32>
    %cst_19 = arith.constant dense<0xFF800000> : vector<16xf32>
    %52 = vector.multi_reduction <maximumf>, %51, %cst_19 [1] : vector<16x8xf32> to vector<16xf32>
    %53 = vector.shape_cast %52 : vector<16xf32> to vector<16x1xf32>
    %54 = vector.broadcast %53 : vector<16x1xf32> to vector<16x8xf32>
    %55 = arith.subf %51, %54 : vector<16x8xf32>
    %56 = math.exp %55 : vector<16x8xf32>
    %cst_20 = arith.constant dense<0.000000e+00> : vector<16xf32>
    %57 = vector.multi_reduction <add>, %56, %cst_20 [1] : vector<16x8xf32> to vector<16xf32>
    %58 = vector.shape_cast %57 : vector<16xf32> to vector<16x1xf32>
    %59 = tpu.reciprocal %58 {approx = true} : vector<16x1xf32> -> vector<16x1xf32>
    %60 = vector.broadcast %59 : vector<16x1xf32> to vector<16x8xf32>
    %61 = arith.mulf %56, %60 : vector<16x8xf32>
    %62 = vector.shape_cast %61 : vector<16x8xf32> to vector<16x8x1xf32>
    %63 = vector.broadcast %62 : vector<16x8x1xf32> to vector<16x8x128xf32>
    %64 = arith.mulf %63, %7 : vector<16x8x128xf32>
    %cst_21 = arith.constant dense<0.000000e+00> : vector<16x128xf32>
    %65 = vector.multi_reduction <add>, %64, %cst_21 [1] : vector<16x8x128xf32> to vector<16x128xf32>
    %c0_22 = arith.constant 0 : index
    %c0_23 = arith.constant 0 : index
    %66 = vector.load %arg5[%c0_22, %c0_23] : memref<16x128xf32, #tpu.memory_space<vmem>>, vector<16x128xf32>
    %cst_24 = arith.constant 1.000000e-01 : f32
    %67 = vector.broadcast %cst_24 : f32 to vector<16x128xf32>
    %68 = arith.mulf %67, %66 : vector<16x128xf32>
    %69 = arith.addf %1, %68 : vector<16x128xf32>
    %c0_25 = arith.constant 0 : index
    %c0_26 = arith.constant 0 : index
    %70 = vector.load %arg6[%c0_25, %c0_26] : memref<16x128xf32, #tpu.memory_space<vmem>>, vector<16x128xf32>
    %cst_27 = arith.constant 1.000000e-01 : f32
    %71 = vector.broadcast %cst_27 : f32 to vector<16x128xf32>
    %72 = arith.mulf %71, %70 : vector<16x128xf32>
    %73 = arith.addf %39, %72 : vector<16x128xf32>
    %74 = tpu.concatenate %39, %65, %1, %3, %69, %73 in 0 : vector<16x128xf32>, vector<16x128xf32>, vector<16x128xf32>, vector<16x128xf32>, vector<16x128xf32>, vector<16x128xf32> -> vector<96x128xf32>
    %c0_28 = arith.constant 0 : index
    %c0_29 = arith.constant 0 : index
    %75 = vector.load %arg8[%c0_28, %c0_29] : memref<3x128xf32, #tpu.memory_space<vmem>>, vector<1x128xf32>
    %c1 = arith.constant 1 : index
    %c0_30 = arith.constant 0 : index
    %76 = vector.load %arg8[%c1, %c0_30] : memref<3x128xf32, #tpu.memory_space<vmem>>, vector<1x128xf32>
    %c2 = arith.constant 2 : index
    %c0_31 = arith.constant 0 : index
    %77 = vector.load %arg8[%c2, %c0_31] : memref<3x128xf32, #tpu.memory_space<vmem>>, vector<1x1xf32>
    %78 = arith.truncf %74 : vector<96x128xf32> to vector<96x128xbf16>
    %c0_32 = arith.constant 0 : index
    %c0_33 = arith.constant 0 : index
    %79 = vector.load %arg7[%c0_32, %c0_33] : memref<128x128xbf16, #tpu.memory_space<vmem>>, vector<128x128xbf16>
    %cst_34 = arith.constant dense<0.000000e+00> : vector<96x128xf32>
    %80 = tpu.matmul %78, %79, %cst_34 {dimension_numbers = #tpu.dot_dimension_numbers<[1], [0], [0], [1], [0, 0, 1, 1], [], []>} : vector<96x128xbf16>, vector<128x128xbf16>, vector<96x128xf32> -> vector<96x128xf32>
    %81 = vector.broadcast %75 : vector<1x128xf32> to vector<96x128xf32>
    %82 = arith.addf %80, %81 : vector<96x128xf32>
    %cst_35 = arith.constant 0.000000e+00 : f32
    %83 = vector.broadcast %cst_35 : f32 to vector<96x128xf32>
    %84 = arith.maximumf %82, %83 : vector<96x128xf32>
    %85 = vector.broadcast %76 : vector<1x128xf32> to vector<96x128xf32>
    %86 = arith.mulf %84, %85 : vector<96x128xf32>
    %cst_36 = arith.constant dense<0.000000e+00> : vector<96xf32>
    %87 = vector.multi_reduction <add>, %86, %cst_36 [1] : vector<96x128xf32> to vector<96xf32>
    %88 = vector.shape_cast %87 : vector<96xf32> to vector<96x1xf32>
    %89 = vector.broadcast %77 : vector<1x1xf32> to vector<96x1xf32>
    %90 = arith.addf %88, %89 : vector<96x1xf32>
    %91 = arith.negf %90 : vector<96x1xf32>
    %92 = math.exp %91 : vector<96x1xf32>
    %cst_37 = arith.constant 1.000000e+00 : f32
    %93 = vector.broadcast %cst_37 : f32 to vector<96x1xf32>
    %94 = arith.addf %93, %92 : vector<96x1xf32>
    %95 = arith.divf %93, %94 : vector<96x1xf32>
    %96 = vector.extract_strided_slice %95 {offsets = [0, 0], sizes = [16, 1], strides = [1, 1]} : vector<96x1xf32> to vector<16x1xf32>
    %97 = vector.extract_strided_slice %95 {offsets = [16, 0], sizes = [16, 1], strides = [1, 1]} : vector<96x1xf32> to vector<16x1xf32>
    %98 = vector.extract_strided_slice %95 {offsets = [32, 0], sizes = [16, 1], strides = [1, 1]} : vector<96x1xf32> to vector<16x1xf32>
    %99 = vector.extract_strided_slice %95 {offsets = [48, 0], sizes = [16, 1], strides = [1, 1]} : vector<96x1xf32> to vector<16x1xf32>
    %100 = vector.extract_strided_slice %95 {offsets = [64, 0], sizes = [16, 1], strides = [1, 1]} : vector<96x1xf32> to vector<16x1xf32>
    %101 = vector.extract_strided_slice %95 {offsets = [80, 0], sizes = [16, 1], strides = [1, 1]} : vector<96x1xf32> to vector<16x1xf32>
    %cst_38 = arith.constant 1.000000e+00 : f32
    %102 = vector.broadcast %cst_38 : f32 to vector<16x1xf32>
    %103 = arith.subf %102, %96 : vector<16x1xf32>
    %104 = arith.addf %103, %97 : vector<16x1xf32>
    %cst_39 = arith.constant 0.000000e+00 : f32
    %105 = vector.broadcast %cst_39 : f32 to vector<16x1xf32>
    %106 = arith.maximumf %104, %105 : vector<16x1xf32>
    %cst_40 = arith.constant 1.000000e+00 : f32
    %107 = vector.broadcast %cst_40 : f32 to vector<16x1xf32>
    %108 = arith.subf %107, %98 : vector<16x1xf32>
    %109 = arith.addf %108, %99 : vector<16x1xf32>
    %cst_41 = arith.constant 0.000000e+00 : f32
    %110 = vector.broadcast %cst_41 : f32 to vector<16x1xf32>
    %111 = arith.maximumf %109, %110 : vector<16x1xf32>
    %112 = arith.addf %106, %111 : vector<16x1xf32>
    %cst_42 = arith.constant 1.000000e+00 : f32
    %113 = vector.broadcast %cst_42 : f32 to vector<16x1xf32>
    %114 = arith.addf %113, %100 : vector<16x1xf32>
    %115 = arith.subf %114, %101 : vector<16x1xf32>
    %cst_43 = arith.constant 0.000000e+00 : f32
    %116 = vector.broadcast %cst_43 : f32 to vector<16x1xf32>
    %117 = arith.maximumf %115, %116 : vector<16x1xf32>
    %118 = arith.addf %112, %117 : vector<16x1xf32>
    %c16_i32 = arith.constant 16 : i32
    %119 = arith.muli %arg0, %c16_i32 : i32
    %120 = tpu.iota {dimensions = array<i32: 0>} : vector<16x1xi32>
    %121 = vector.broadcast %119 : i32 to vector<16x1xi32>
    %122 = arith.addi %121, %120 : vector<16x1xi32>
    %c4_i32 = arith.constant 4 : i32
    %123 = vector.broadcast %c4_i32 : i32 to vector<16x1xi32>
    %124 = arith.cmpi slt, %122, %123 : vector<16x1xi32>
    %125 = arith.extui %124 : vector<16x1xi1> to vector<16x1xi32>
    %126 = arith.sitofp %125 : vector<16x1xi32> to vector<16x1xf32>
    %127 = arith.mulf %126, %118 : vector<16x1xf32>
    %128 = vector.shape_cast %127 : vector<16x1xf32> to vector<1x16x1xf32>
    %cst_44 = arith.constant dense<0.000000e+00> : vector<1xf32>
    %129 = vector.multi_reduction <add>, %128, %cst_44 [1, 2] : vector<1x16x1xf32> to vector<1xf32>
    %130 = vector.shape_cast %129 : vector<1xf32> to vector<1x1x1xf32>
    %131 = vector.extract %130[0, 0, 0] : f32 from vector<1x1x1xf32>
    %132 = vector.broadcast %131 : f32 to vector<1x1xf32>
    %133 = vector.shape_cast %132 : vector<1x1xf32> to vector<1x1x1xf32>
    %c0_45 = arith.constant 0 : index
    %c0_46 = arith.constant 0 : index
    %c0_47 = arith.constant 0 : index
    %134 = vector.load %arg9[%c0_45, %c0_46, %c0_47] : memref<1x1x1xf32, #tpu.memory_space<vmem>>, vector<1x1x1xf32>
    tpu.vector_store %arg9[%c0_45, %c0_46, %c0_47], %133 {strides = array<i32>} : memref<1x1x1xf32, #tpu.memory_space<vmem>>, vector<1x1x1xf32>,
    return
  }
  func.func @transform_0(%arg0: i32) -> (i32, i32) {
    %c0_i32 = arith.constant 0 : i32
    %c0_i32_0 = arith.constant 0 : i32
    return %arg0, %c0_i32 : i32, i32
  }
  func.func @transform_1(%arg0: i32) -> (i32, i32) {
    %c0_i32 = arith.constant 0 : i32
    %c0_i32_0 = arith.constant 0 : i32
    return %arg0, %c0_i32 : i32, i32
  }
  func.func @transform_2(%arg0: i32) -> (i32, i32, i32) {
    %c0_i32 = arith.constant 0 : i32
    %c0_i32_0 = arith.constant 0 : i32
    %c0_i32_1 = arith.constant 0 : i32
    return %arg0, %c0_i32, %c0_i32_0 : i32, i32, i32
  }
  func.func @transform_3(%arg0: i32) -> (i32, i32, i32) {
    %c0_i32 = arith.constant 0 : i32
    %c0_i32_0 = arith.constant 0 : i32
    %c0_i32_1 = arith.constant 0 : i32
    return %arg0, %c0_i32, %c0_i32_0 : i32, i32, i32
  }
  func.func @transform_4(%arg0: i32) -> (i32, i32) {
    %c0_i32 = arith.constant 0 : i32
    %c0_i32_0 = arith.constant 0 : i32
    return %arg0, %c0_i32 : i32, i32
  }
  func.func @transform_5(%arg0: i32) -> (i32, i32) {
    %c0_i32 = arith.constant 0 : i32
    %c0_i32_0 = arith.constant 0 : i32
    return %arg0, %c0_i32 : i32, i32
  }
  func.func @transform_6(%arg0: i32) -> (i32, i32) {
    %c0_i32 = arith.constant 0 : i32
    %c0_i32_0 = arith.constant 0 : i32
    %c0_i32_1 = arith.constant 0 : i32
    return %c0_i32, %c0_i32_0 : i32, i32
  }
  func.func @transform_7(%arg0: i32) -> (i32, i32) {
    %c0_i32 = arith.constant 0 : i32
    %c0_i32_0 = arith.constant 0 : i32
    %c0_i32_1 = arith.constant 0 : i32
    return %c0_i32, %c0_i32_0 : i32, i32
  }
  func.func @transform_8(%arg0: i32) -> (i32, i32, i32) {
    %c0_i32 = arith.constant 0 : i32
    %c0_i32_0 = arith.constant 0 : i32
    %c0_i32_1 = arith.constant 0 : i32
    return %arg0, %c0_i32, %c0_i32_0 : i32, i32, i32
  }
}

</mosaic_0001>

<llo_original>
// kernel: adag_forward.2
$region0: #{adag_forward.2}
  #allocation0 [shape = 'u32[]', space=smem, size = 0x4, offset = 0x4, fixed_abs, tag = 'smem constant byte address 0x4 - core index']
  #allocation1 [shape = 'u32[72,128]{1,0:T(1,128)}', space=vmem, size = 0x9000, scoped, tag = 'internal scratch']
  %s0 = inlined_call_operand.hbm [shape: bf16[32,1536], index: 0, kind: input, shape index: {}]
  %s1 = inlined_call_operand.hbm [shape: bf16[1536,128], index: 1, kind: input, shape index: {}]
  %s2 = inlined_call_operand.vmem [shape: f32[1,128], index: 2, kind: input, shape index: {}]
  %s3 = inlined_call_operand.hbm [shape: bf16[128,128], index: 3, kind: input, shape index: {}]
  %s4 = inlined_call_operand.vmem [shape: f32[1,128], index: 4, kind: input, shape index: {}]
  %s5 = inlined_call_operand.vmem [shape: bf16[32,128], index: 5, kind: output, shape index: {0}]
  %s6 = inlined_call_operand.vmem [shape: f32[2,1,128], index: 6, kind: output, shape index: {1}]
  %7 = xla_tuple %s5, %s6
  %s8 = sld [smem:[#allocation0]]
  $region73: #{adag_forward.2} parent=0
    _
  %s10 = ssub.s32 1, %s8
  %s11 = scalar_select 0, %s10, %s8
  $region1: #{adag_forward.2} parent=0
    #allocation2 [shape = 'u8[98304]{0}', space=vmem, size = 0x18000, scoped, tag = 'input window, operand 0']
    #allocation3 [shape = 's32[2]{0}', space=sflag, size = 0x8, scoped, tag = 'scoped memory for adag_forward.2']
    #allocation4 [shape = 'u8[393216]{0}', space=vmem, size = 0x60000, scoped, tag = 'input window, operand 1, single buffered']
    #allocation5 [shape = 's32[1]{0}', space=sflag, size = 0x4, scoped, tag = 'scoped memory for adag_forward.2']
    #allocation6 [shape = 'u8[32768]{0}', space=vmem, size = 0x8000, scoped, tag = 'input window, operand 3, single buffered']
    %12 = vsyncpa [#allocation3], 0
    %s13 = scalar_lea.sflag [#allocation3], 1
    %14 = vsyncpa %s13, 0
    %15 = vsyncpa [#allocation5], 0
    loop: start=0, step=1, limit=4
    $region2: #{adag_forward.2} parent=1 // loop_pre_header
      _
    $region3: #{adag_forward.2} parent=1 // loop_header
      %s17 = sphi 0, %s21
      %p18 = scmp.ge.s32.totalorder %s17, 4
      %s27 = sphi 0, %s29
      %s30 = sphi 0, %s27
      %s31 = sphi 0, %s30
      %s47 = sphi 0, %s31
      %s51 = sphi 0, %s51
      %s53 = sphi 0, %s51
      %s54 = sphi 0, %s53
      %s68 = sphi 0, %s54
      %s72 = sphi 0, %s72
      %s74 = sphi 0, %s72
      %s75 = sphi 0, %s74
      %s89 = sphi 0, %s75
      %s93 = sphi 0, %s93
      %s95 = sphi 0, %s93
      %s96 = sphi 0, %s95
      %s110 = sphi 0, %s96
      %s114 = sphi 0, %s114
      %s116 = sphi 0, %s114
      %s117 = sphi 0, %s116
      %s131 = sphi 0, %s117
      %s137 = sphi 0, %s139
      %s140 = sphi 0, %s137
      %s141 = sphi 0, %s140
      %s157 = sphi 0, %s141
      %s163 = sphi 0, %s165
      %s166 = sphi 0, %s163
      %s167 = sphi 0, %s166
      %s183 = sphi 0, %s167
    $region4: #{adag_forward.2} parent=1 // loop_header_branch
      %20 = sbr.rel (%p18) target = $region8
    $region5: #{adag_forward.2} parent=1 // loop_body
      %s22 = ssub.s32 %s17, 1
      %s23 = ssub.s32 %s17, 2
      %s24 = sadd.s32 %s17, 1
      %s25 = ssub.s32 %s17, %s24
      %p26 = scmp.eq.s32.totalorder %s25, 0
      %s28 = sadd.s32 %s27, 1
      %s29 = scalar_select %p26, %s27, %s28
      %p32 = pneg %p26
      %p33 = scmp.eq.s32.totalorder %s17, 1
      %p34 = por %p32, %p33
      %p35 = scmp.ne.s32.totalorder %s27, %s30
      %p36 = scmp.eq.s32.totalorder %s17, 0
      %p37 = por %p35, %p36
      %p38 = scmp.ne.s32.totalorder %s27, %s30
      %p39 = scmp.eq.s32.totalorder %s22, 1
      %p40 = por %p38, %p39
      %p41 = scmp.ne.s32.totalorder %s30, %s31
      %p42 = scmp.eq.s32.totalorder %s22, 0
      %p43 = por %p41, %p42
      %p44 = scmp.ne.s32.totalorder %s30, %s31
      %p45 = scmp.eq.s32.totalorder %s23, 1
      %p46 = por %p44, %p45
      %p48 = scmp.ne.s32.totalorder %s31, %s47
      %p49 = scmp.eq.s32.totalorder %s23, 0
      %p50 = por %p48, %p49
      %s52 = sadd.s32 %s51, 1
      %p55 = scmp.eq.s32.totalorder %s17, 1
      %p56 = scmp.ne.s32.totalorder %s51, %s53
      %p57 = scmp.eq.s32.totalorder %s17, 0
      %p58 = por %p56, %p57
      %p59 = scmp.ne.s32.totalorder %s51, %s53
      %p60 = scmp.eq.s32.totalorder %s22, 1
      %p61 = por %p59, %p60
      %p62 = scmp.ne.s32.totalorder %s53, %s54
      %p63 = scmp.eq.s32.totalorder %s22, 0
      %p64 = por %p62, %p63
      %p65 = scmp.ne.s32.totalorder %s53, %s54
      %p66 = scmp.eq.s32.totalorder %s23, 1
      %p67 = por %p65, %p66
      %p69 = scmp.ne.s32.totalorder %s54, %s68
      %p70 = scmp.eq.s32.totalorder %s23, 0
      %p71 = por %p69, %p70
      %s73 = sadd.s32 %s72, 1
      %p76 = scmp.eq.s32.totalorder %s17, 1
      %p77 = scmp.ne.s32.totalorder %s72, %s74
      %p78 = scmp.eq.s32.totalorder %s17, 0
      %p79 = por %p77, %p78
      %p80 = scmp.ne.s32.totalorder %s72, %s74
      %p81 = scmp.eq.s32.totalorder %s22, 1
      %p82 = por %p80, %p81
      %p83 = scmp.ne.s32.totalorder %s74, %s75
      %p84 = scmp.eq.s32.totalorder %s22, 0
      %p85 = por %p83, %p84
      %p86 = scmp.ne.s32.totalorder %s74, %s75
      %p87 = scmp.eq.s32.totalorder %s23, 1
      %p88 = por %p86, %p87
      %p90 = scmp.ne.s32.totalorder %s75, %s89
      %p91 = scmp.eq.s32.totalorder %s23, 0
      %p92 = por %p90, %p91
      %s94 = sadd.s32 %s93, 1
      %p97 = scmp.eq.s32.totalorder %s17, 1
      %p98 = scmp.ne.s32.totalorder %s93, %s95
      %p99 = scmp.eq.s32.totalorder %s17, 0
      %p100 = por %p98, %p99
      %p101 = scmp.ne.s32.totalorder %s93, %s95
      %p102 = scmp.eq.s32.totalorder %s22, 1
      %p103 = por %p101, %p102
      %p104 = scmp.ne.s32.totalorder %s95, %s96
      %p105 = scmp.eq.s32.totalorder %s22, 0
      %p106 = por %p104, %p105
      %p107 = scmp.ne.s32.totalorder %s95, %s96
      %p108 = scmp.eq.s32.totalorder %s23, 1
      %p109 = por %p107, %p108
      %p111 = scmp.ne.s32.totalorder %s96, %s110
      %p112 = scmp.eq.s32.totalorder %s23, 0
      %p113 = por %p111, %p112
      %s115 = sadd.s32 %s114, 1
      %p118 = scmp.eq.s32.totalorder %s17, 1
      %p119 = scmp.ne.s32.totalorder %s114, %s116
      %p120 = scmp.eq.s32.totalorder %s17, 0
      %p121 = por %p119, %p120
      %p122 = scmp.ne.s32.totalorder %s114, %s116
      %p123 = scmp.eq.s32.totalorder %s22, 1
      %p124 = por %p122, %p123
      %p125 = scmp.ne.s32.totalorder %s116, %s117
      %p126 = scmp.eq.s32.totalorder %s22, 0
      %p127 = por %p125, %p126
      %p128 = scmp.ne.s32.totalorder %s116, %s117
      %p129 = scmp.eq.s32.totalorder %s23, 1
      %p130 = por %p128, %p129
      %p132 = scmp.ne.s32.totalorder %s117, %s131
      %p133 = scmp.eq.s32.totalorder %s23, 0
      %p134 = por %p132, %p133
      %s135 = ssub.s32 %s17, %s24
      %p136 = scmp.eq.s32.totalorder %s135, 0
      %s138 = sadd.s32 %s137, 1
      %s139 = scalar_select %p136, %s137, %s138
      %p142 = pneg %p136
      %p143 = scmp.eq.s32.totalorder %s17, 1
      %p144 = por %p142, %p143
      %p145 = scmp.ne.s32.totalorder %s137, %s140
      %p146 = scmp.eq.s32.totalorder %s17, 0
      %p147 = por %p145, %p146
      %p148 = scmp.ne.s32.totalorder %s137, %s140
      %p149 = scmp.eq.s32.totalorder %s22, 1
      %p150 = por %p148, %p149
      %p151 = scmp.ne.s32.totalorder %s140, %s141
      %p152 = scmp.eq.s32.totalorder %s22, 0
      %p153 = por %p151, %p152
      %p154 = scmp.ne.s32.totalorder %s140, %s141
      %p155 = scmp.eq.s32.totalorder %s23, 1
      %p156 = por %p154, %p155
      %p158 = scmp.ne.s32.totalorder %s141, %s157
      %p159 = scmp.eq.s32.totalorder %s23, 0
      %p160 = por %p158, %p159
      %s161 = ssub.s32 %s17, %s24
      %p162 = scmp.eq.s32.totalorder %s161, 0
      %s164 = sadd.s32 %s163, 1
      %s165 = scalar_select %p162, %s163, %s164
      %p168 = pneg %p162
      %p169 = scmp.eq.s32.totalorder %s17, 1
      %p170 = por %p168, %p169
      %p171 = scmp.ne.s32.totalorder %s163, %s166
      %p172 = scmp.eq.s32.totalorder %s17, 0
      %p173 = por %p171, %p172
      %p174 = scmp.ne.s32.totalorder %s163, %s166
      %p175 = scmp.eq.s32.totalorder %s22, 1
      %p176 = por %p174, %p175
      %p177 = scmp.ne.s32.totalorder %s166, %s167
      %p178 = scmp.eq.s32.totalorder %s22, 0
      %p179 = por %p177, %p178
      %p180 = scmp.ne.s32.totalorder %s166, %s167
      %p181 = scmp.eq.s32.totalorder %s23, 1
      %p182 = por %p180, %p181
      %p184 = scmp.ne.s32.totalorder %s167, %s183
      %p185 = scmp.eq.s32.totalorder %s23, 0
      %p186 = por %p184, %p185
      %p187 = scmp.le.s32.totalorder 1, %s17
      %p188 = scmp.lt.s32.totalorder %s17, 3
      %p189 = pnand %p187, %p188
      %p190 = pneg %p189
      // Predicated region
      $region9: #{adag_forward.2} parent=5 // pred_check
        _
      $region10: #{adag_forward.2} parent=5 // pred_check_branch
        %192 = sbr.rel (%p189) target = $region12
      $region11: #{adag_forward.2} parent=5 // pred_region
        %s193 = ssub.s32 %s17, 1
        // Predicated region
        $region13: #{adag_forward.2} parent=11 // pred_check
          %p194 = pneg %p64
        $region14: #{adag_forward.2} parent=11 // pred_check_branch
          %196 = sbr.rel (%p194) target = $region16
        $region15: #{adag_forward.2} parent=11 // pred_region
          %198 = vsyncadd [#allocation5], 0
          %s199 = sshll.u32 %s1, 4
          %s200 = int_to_ptr.hbm [resolvable:$true] %s199
          %s201 = sshll.u32 [#allocation4], 4
          %s202 = int_to_ptr.vmem [resolvable:$true] %s201
          %207 = dma.hbm_to_vmem [thread:$0]  %s200, 12288, %s202, [#allocation5], 64, 64, 4
        $region16: #{adag_forward.2} parent=11 // pred_fallthru
          _
        // Predicated region
        $region17: #{adag_forward.2} parent=11 // pred_check
          %p208 = pneg %p85
        $region18: #{adag_forward.2} parent=11 // pred_check_branch
          %210 = sbr.rel (%p208) target = $region20
        $region19: #{adag_forward.2} parent=11 // pred_region
          _
        $region20: #{adag_forward.2} parent=11 // pred_fallthru
          _
        // Predicated region
        $region21: #{adag_forward.2} parent=11 // pred_check
          %p211 = pneg %p106
        $region22: #{adag_forward.2} parent=11 // pred_check_branch
          %213 = sbr.rel (%p211) target = $region24
        $region23: #{adag_forward.2} parent=11 // pred_region
          %215 = vsyncadd [#allocation5], 0
          %s216 = sshll.u32 %s3, 4
          %s217 = int_to_ptr.hbm [resolvable:$true] %s216
          %s218 = sshll.u32 [#allocation6], 4
          %s219 = int_to_ptr.vmem [resolvable:$true] %s218
          %224 = dma.hbm_to_vmem [thread:$0]  %s217, 1024, %s219, [#allocation5], 64, 64, 4
        $region24: #{adag_forward.2} parent=11 // pred_fallthru
          _
        // Predicated region
        $region25: #{adag_forward.2} parent=11 // pred_check
          %p225 = pneg %p127
        $region26: #{adag_forward.2} parent=11 // pred_check_branch
          %227 = sbr.rel (%p225) target = $region28
        $region27: #{adag_forward.2} parent=11 // pred_region
          _
        $region28: #{adag_forward.2} parent=11 // pred_fallthru
          _
      $region12: #{adag_forward.2} parent=5 // pred_fallthru
        _
      %p228 = scmp.lt.s32.totalorder %s17, 2
      // Predicated region
      $region29: #{adag_forward.2} parent=5 // pred_check
        %p229 = pneg %p228
      $region30: #{adag_forward.2} parent=5 // pred_check_branch
        %231 = sbr.rel (%p229) target = $region32
      $region31: #{adag_forward.2} parent=5 // pred_region
        // Predicated region
        $region33: #{adag_forward.2} parent=31 // pred_check
          %p232 = pneg %p37
        $region34: #{adag_forward.2} parent=31 // pred_check_branch
          %234 = sbr.rel (%p232) target = $region36
        $region35: #{adag_forward.2} parent=31 // pred_region
          %s235 = sand.u32 %s27, 1
          %s236 = scalar_lea.sflag [#allocation3], %s235
          %s237 = sand.u32 %s27, 1
          %s238 = smul.addr %s237, 96
          %s239 = scalar_lea.vmem [#allocation2], %s238
          %s240 = smul.u32 2, %s17
          %242 = vsyncadd %s236, 0
          %s243 = smul.addr %s240, 12
          %s244 = smul.addr %s243, 4
          %s245 = scalar_lea.hbm %s0, %s244
          %s246 = sshll.u32 %s245, 4
          %s247 = int_to_ptr.hbm [resolvable:$true] %s246
          %s248 = sshll.u32 %s239, 4
          %s249 = int_to_ptr.vmem [resolvable:$true] %s248
          %254 = dma.hbm_to_vmem [thread:$0]  %s247, 1536, %s249, %s236, 768, 768, 48
        $region36: #{adag_forward.2} parent=31 // pred_fallthru
          _
      $region32: #{adag_forward.2} parent=5 // pred_fallthru
        _
      %p255 = scmp.le.s32.totalorder 1, %s17
      %p256 = scmp.lt.s32.totalorder %s17, 3
      %p257 = pnand %p255, %p256
      %p258 = pneg %p257
      // Predicated region
      $region37: #{adag_forward.2} parent=5 // pred_check
        _
      $region38: #{adag_forward.2} parent=5 // pred_check_branch
        %260 = sbr.rel (%p257) target = $region40
      $region39: #{adag_forward.2} parent=5 // pred_region
        %s261 = ssub.s32 %s17, 1
        %s262 = sand.u32 %s30, 1
        %s263 = scalar_lea.sflag [#allocation3], %s262
        %s264 = sand.u32 %s30, 1
        %s265 = smul.addr %s264, 96
        %s266 = scalar_lea.vmem [#allocation2], %s265
        // Predicated region
        $region41: #{adag_forward.2} parent=39 // pred_check
          %p267 = pneg %p43
        $region42: #{adag_forward.2} parent=39 // pred_check_branch
          %269 = sbr.rel (%p267) target = $region44
        $region43: #{adag_forward.2} parent=39 // pred_region
          %271 = dma.done %s263, 1536
        $region44: #{adag_forward.2} parent=39 // pred_fallthru
          _
        // Predicated region
        $region45: #{adag_forward.2} parent=39 // pred_check
          %p272 = pneg %p64
        $region46: #{adag_forward.2} parent=39 // pred_check_branch
          %274 = sbr.rel (%p272) target = $region48
        $region47: #{adag_forward.2} parent=39 // pred_region
          %276 = dma.done [#allocation5], 12288
        $region48: #{adag_forward.2} parent=39 // pred_fallthru
          _
        // Predicated region
        $region49: #{adag_forward.2} parent=39 // pred_check
          %p277 = pneg %p106
        $region50: #{adag_forward.2} parent=39 // pred_check_branch
          %279 = sbr.rel (%p277) target = $region52
        $region51: #{adag_forward.2} parent=39 // pred_region
          %281 = dma.done [#allocation5], 1024
        $region52: #{adag_forward.2} parent=39 // pred_fallthru
          _
        %s282 = sand.u32 %s30, 1
        %s283 = scalar_lea.sflag [#allocation3], %s282
        %s284 = sand.u32 %s30, 1
        %s285 = smul.addr %s284, 96
        %s286 = scalar_lea.vmem [#allocation2], %s285
        %p287 = pneg %p43
        %p288 = pneg %p40
        %p289 = pneg %p64
        %p290 = pneg %p61
        %p291 = pneg %p85
        %p292 = pneg %p82
        %p293 = pneg %p106
        %p294 = pneg %p103
        %p295 = pneg %p127
        %p296 = pneg %p124
        %p297 = pneg %p153
        %p298 = pneg %p150
        %s299 = smul.u32 2, %s22
        %p300 = scmp.lt.s32.totalorder %s299, 3
        %s301 = scalar_select %p300, %s299, 3
        %s302 = smul.addr %s301, 4
        %s303 = scalar_lea.vmem %s5, %s302
        %p304 = pneg %p179
        %p305 = pneg %p176
        %p306 = scmp.lt.s32.totalorder %s22, 1
        %s307 = scalar_select %p306, %s22, 1
        %s308 = scalar_lea.vmem %s6, %s307
        %s309 = smul.u32 2, %s22
        %s310 = smul.u32 2, %s22
        %p311 = scmp.lt.s32.totalorder %s310, 3
        %s312 = scalar_select %p311, %s310, 3
        %s313 = smul.addr %s312, 4
        %s314 = scalar_lea.vmem %s5, %s313
        %s315 = smul.u32 2, %s22
        %p316 = scmp.lt.s32.totalorder %s22, 1
        %s317 = scalar_select %p316, %s22, 1
        %s318 = scalar_lea.vmem %s6, %s317
        %v319 = vld [vmem:[%s266] sm:$0xff]
        %v320 = vld [vmem:[%s266 + $0x8] sm:$0xff]
        %v321 = vld [vmem:[%s266 + $0x10] sm:$0xff]
        %v322 = vld [vmem:[%s266 + $0x18] sm:$0xff]
        %v323 = vld [vmem:[%s266 + $0x20] sm:$0xff]
        %v324 = vld [vmem:[%s266 + $0x28] sm:$0xff]
        %v325 = vld [vmem:[%s266 + $0x30] sm:$0xff]
        %v326 = vld [vmem:[%s266 + $0x38] sm:$0xff]
        %v327 = vld [vmem:[%s266 + $0x40] sm:$0xff]
        %v328 = vld [vmem:[%s266 + $0x48] sm:$0xff]
        %v329 = vld [vmem:[%s266 + $0x50] sm:$0xff]
        %v330 = vld [vmem:[%s266 + $0x58] sm:$0xff]
        %v331 = vld [vmem:[#allocation4] sm:$0xf]
        %v332 = vld [vmem:[#allocation4 + $0x4] sm:$0xf]
        %v333 = vld [vmem:[#allocation4 + $0x8] sm:$0xf]
        %v334 = vld [vmem:[#allocation4 + $0xc] sm:$0xf]
        %v335 = vld [vmem:[#allocation4 + $0x10] sm:$0xf]
        %v336 = vld [vmem:[#allocation4 + $0x14] sm:$0xf]
        %v337 = vld [vmem:[#allocation4 + $0x18] sm:$0xf]
        %v338 = vld [vmem:[#allocation4 + $0x1c] sm:$0xf]
        %v339 = vld [vmem:[#allocation4 + $0x20] sm:$0xf]
        %v340 = vld [vmem:[#allocation4 + $0x24] sm:$0xf]
        %v341 = vld [vmem:[#allocation4 + $0x28] sm:$0xf]
        %v342 = vld [vmem:[#allocation4 + $0x2c] sm:$0xf]
        %v343 = vld [vmem:[#allocation4 + $0x30] sm:$0xf]
        %v344 = vld [vmem:[#allocation4 + $0x34] sm:$0xf]
        %v345 = vld [vmem:[#allocation4 + $0x38] sm:$0xf]
        %v346 = vld [vmem:[#allocation4 + $0x3c] sm:$0xf]
        %v347 = vld [vmem:[#allocation4 + $0x40] sm:$0xf]
        %v348 = vld [vmem:[#allocation4 + $0x44] sm:$0xf]
        %v349 = vld [vmem:[#allocation4 + $0x48] sm:$0xf]
        %v350 = vld [vmem:[#allocation4 + $0x4c] sm:$0xf]
        %v351 = vld [vmem:[#allocation4 + $0x50] sm:$0xf]
        %v352 = vld [vmem:[#allocation4 + $0x54] sm:$0xf]
        %v353 = vld [vmem:[#allocation4 + $0x58] sm:$0xf]
        %v354 = vld [vmem:[#allocation4 + $0x5c] sm:$0xf]
        %v355 = vld [vmem:[#allocation4 + $0x60] sm:$0xf]
        %v356 = vld [vmem:[#allocation4 + $0x64] sm:$0xf]
        %v357 = vld [vmem:[#allocation4 + $0x68] sm:$0xf]
        %v358 = vld [vmem:[#allocation4 + $0x6c] sm:$0xf]
        %v359 = vld [vmem:[#allocation4 + $0x70] sm:$0xf]
        %v360 = vld [vmem:[#allocation4 + $0x74] sm:$0xf]
        %v361 = vld [vmem:[#allocation4 + $0x78] sm:$0xf]
        %v362 = vld [vmem:[#allocation4 + $0x7c] sm:$0xf]
        %v363 = vld [vmem:[#allocation4 + $0x80] sm:$0xf]
        %v364 = vld [vmem:[#allocation4 + $0x84] sm:$0xf]
        %v365 = vld [vmem:[#allocation4 + $0x88] sm:$0xf]
        %v366 = vld [vmem:[#allocation4 + $0x8c] sm:$0xf]
        %v367 = vld [vmem:[#allocation4 + $0x90] sm:$0xf]
        %v368 = vld [vmem:[#allocation4 + $0x94] sm:$0xf]
        %v369 = vld [vmem:[#allocation4 + $0x98] sm:$0xf]
        %v370 = vld [vmem:[#allocation4 + $0x9c] sm:$0xf]
        %v371 = vld [vmem:[#allocation4 + $0xa0] sm:$0xf]
        %v372 = vld [vmem:[#allocation4 + $0xa4] sm:$0xf]
        %v373 = vld [vmem:[#allocation4 + $0xa8] sm:$0xf]
        %v374 = vld [vmem:[#allocation4 + $0xac] sm:$0xf]
        %v375 = vld [vmem:[#allocation4 + $0xb0] sm:$0xf]
        %v376 = vld [vmem:[#allocation4 + $0xb4] sm:$0xf]
        %v377 = vld [vmem:[#allocation4 + $0xb8] sm:$0xf]
        %v378 = vld [vmem:[#allocation4 + $0xbc] sm:$0xf]
        %v379 = vld [vmem:[#allocation4 + $0xc0] sm:$0xf]
        %v380 = vld [vmem:[#allocation4 + $0xc4] sm:$0xf]
        %v381 = vld [vmem:[#allocation4 + $0xc8] sm:$0xf]
        %v382 = vld [vmem:[#allocation4 + $0xcc] sm:$0xf]
        %v383 = vld [vmem:[#allocation4 + $0xd0] sm:$0xf]
        %v384 = vld [vmem:[#allocation4 + $0xd4] sm:$0xf]
        %v385 = vld [vmem:[#allocation4 + $0xd8] sm:$0xf]
        %v386 = vld [vmem:[#allocation4 + $0xdc] sm:$0xf]
        %v387 = vld [vmem:[#allocation4 + $0xe0] sm:$0xf]
        %v388 = vld [vmem:[#allocation4 + $0xe4] sm:$0xf]
        %v389 = vld [vmem:[#allocation4 + $0xe8] sm:$0xf]
        %v390 = vld [vmem:[#allocation4 + $0xec] sm:$0xf]
        %v391 = vld [vmem:[#allocation4 + $0xf0] sm:$0xf]
        %v392 = vld [vmem:[#allocation4 + $0xf4] sm:$0xf]
        %v393 = vld [vmem:[#allocation4 + $0xf8] sm:$0xf]
        %v394 = vld [vmem:[#allocation4 + $0xfc] sm:$0xf]
        %v395 = vld [vmem:[#allocation4 + $0x100] sm:$0xf]
        %v396 = vld [vmem:[#allocation4 + $0x104] sm:$0xf]
        %v397 = vld [vmem:[#allocation4 + $0x108] sm:$0xf]
        %v398 = vld [vmem:[#allocation4 + $0x10c] sm:$0xf]
        %v399 = vld [vmem:[#allocation4 + $0x110] sm:$0xf]
        %v400 = vld [vmem:[#allocation4 + $0x114] sm:$0xf]
        %v401 = vld [vmem:[#allocation4 + $0x118] sm:$0xf]
        %v402 = vld [vmem:[#allocation4 + $0x11c] sm:$0xf]
        %v403 = vld [vmem:[#allocation4 + $0x120] sm:$0xf]
        %v404 = vld [vmem:[#allocation4 + $0x124] sm:$0xf]
        %v405 = vld [vmem:[#allocation4 + $0x128] sm:$0xf]
        %v406 = vld [vmem:[#allocation4 + $0x12c] sm:$0xf]
        %v407 = vld [vmem:[#allocation4 + $0x130] sm:$0xf]
        %v408 = vld [vmem:[#allocation4 + $0x134] sm:$0xf]
        %v409 = vld [vmem:[#allocation4 + $0x138] sm:$0xf]
        %v410 = vld [vmem:[#allocation4 + $0x13c] sm:$0xf]
        %v411 = vld [vmem:[#allocation4 + $0x140] sm:$0xf]
        %v412 = vld [vmem:[#allocation4 + $0x144] sm:$0xf]
        %v413 = vld [vmem:[#allocation4 + $0x148] sm:$0xf]
        %v414 = vld [vmem:[#allocation4 + $0x14c] sm:$0xf]
        %v415 = vld [vmem:[#allocation4 + $0x150] sm:$0xf]
        %v416 = vld [vmem:[#allocation4 + $0x154] sm:$0xf]
        %v417 = vld [vmem:[#allocation4 + $0x158] sm:$0xf]
        %v418 = vld [vmem:[#allocation4 + $0x15c] sm:$0xf]
        %v419 = vld [vmem:[#allocation4 + $0x160] sm:$0xf]
        %v420 = vld [vmem:[#allocation4 + $0x164] sm:$0xf]
        %v421 = vld [vmem:[#allocation4 + $0x168] sm:$0xf]
        %v422 = vld [vmem:[#allocation4 + $0x16c] sm:$0xf]
        %v423 = vld [vmem:[#allocation4 + $0x170] sm:$0xf]
        %v424 = vld [vmem:[#allocation4 + $0x174] sm:$0xf]
        %v425 = vld [vmem:[#allocation4 + $0x178] sm:$0xf]
        %v426 = vld [vmem:[#allocation4 + $0x17c] sm:$0xf]
        %v427 = vld [vmem:[#allocation4 + $0x180] sm:$0xf]
        %v428 = vld [vmem:[#allocation4 + $0x184] sm:$0xf]
        %v429 = vld [vmem:[#allocation4 + $0x188] sm:$0xf]
        %v430 = vld [vmem:[#allocation4 + $0x18c] sm:$0xf]
        %v431 = vld [vmem:[#allocation4 + $0x190] sm:$0xf]
        %v432 = vld [vmem:[#allocation4 + $0x194] sm:$0xf]
        %v433 = vld [vmem:[#allocation4 + $0x198] sm:$0xf]
        %v434 = vld [vmem:[#allocation4 + $0x19c] sm:$0xf]
        %v435 = vld [vmem:[#allocation4 + $0x1a0] sm:$0xf]
        %v436 = vld [vmem:[#allocation4 + $0x1a4] sm:$0xf]
        %v437 = vld [vmem:[#allocation4 + $0x1a8] sm:$0xf]
        %v438 = vld [vmem:[#allocation4 + $0x1ac] sm:$0xf]
        %v439 = vld [vmem:[#allocation4 + $0x1b0] sm:$0xf]
        %v440 = vld [vmem:[#allocation4 + $0x1b4] sm:$0xf]
        %v441 = vld [vmem:[#allocation4 + $0x1b8] sm:$0xf]
        %v442 = vld [vmem:[#allocation4 + $0x1bc] sm:$0xf]
        %v443 = vld [vmem:[#allocation4 + $0x1c0] sm:$0xf]
        %v444 = vld [vmem:[#allocation4 + $0x1c4] sm:$0xf]
        %v445 = vld [vmem:[#allocation4 + $0x1c8] sm:$0xf]
        %v446 = vld [vmem:[#allocation4 + $0x1cc] sm:$0xf]
        %v447 = vld [vmem:[#allocation4 + $0x1d0] sm:$0xf]
        %v448 = vld [vmem:[#allocation4 + $0x1d4] sm:$0xf]
        %v449 = vld [vmem:[#allocation4 + $0x1d8] sm:$0xf]
        %v450 = vld [vmem:[#allocation4 + $0x1dc] sm:$0xf]
        %v451 = vld [vmem:[#allocation4 + $0x1e0] sm:$0xf]
        %v452 = vld [vmem:[#allocation4 + $0x1e4] sm:$0xf]
        %v453 = vld [vmem:[#allocation4 + $0x1e8] sm:$0xf]
        %v454 = vld [vmem:[#allocation4 + $0x1ec] sm:$0xf]
        %v455 = vld [vmem:[#allocation4 + $0x1f0] sm:$0xf]
        %v456 = vld [vmem:[#allocation4 + $0x1f4] sm:$0xf]
        %v457 = vld [vmem:[#allocation4 + $0x1f8] sm:$0xf]
        %v458 = vld [vmem:[#allocation4 + $0x1fc] sm:$0xf]
        %v459 = vld [vmem:[#allocation4 + $0x200] sm:$0xf]
        %v460 = vld [vmem:[#allocation4 + $0x204] sm:$0xf]
        %v461 = vld [vmem:[#allocation4 + $0x208] sm:$0xf]
        %v462 = vld [vmem:[#allocation4 + $0x20c] sm:$0xf]
        %v463 = vld [vmem:[#allocation4 + $0x210] sm:$0xf]
        %v464 = vld [vmem:[#allocation4 + $0x214] sm:$0xf]
        %v465 = vld [vmem:[#allocation4 + $0x218] sm:$0xf]
        %v466 = vld [vmem:[#allocation4 + $0x21c] sm:$0xf]
        %v467 = vld [vmem:[#allocation4 + $0x220] sm:$0xf]
        %v468 = vld [vmem:[#allocation4 + $0x224] sm:$0xf]
        %v469 = vld [vmem:[#allocation4 + $0x228] sm:$0xf]
        %v470 = vld [vmem:[#allocation4 + $0x22c] sm:$0xf]
        %v471 = vld [vmem:[#allocation4 + $0x230] sm:$0xf]
        %v472 = vld [vmem:[#allocation4 + $0x234] sm:$0xf]
        %v473 = vld [vmem:[#allocation4 + $0x238] sm:$0xf]
        %v474 = vld [vmem:[#allocation4 + $0x23c] sm:$0xf]
        %v475 = vld [vmem:[#allocation4 + $0x240] sm:$0xf]
        %v476 = vld [vmem:[#allocation4 + $0x244] sm:$0xf]
        %v477 = vld [vmem:[#allocation4 + $0x248] sm:$0xf]
        %v478 = vld [vmem:[#allocation4 + $0x24c] sm:$0xf]
        %v479 = vld [vmem:[#allocation4 + $0x250] sm:$0xf]
        %v480 = vld [vmem:[#allocation4 + $0x254] sm:$0xf]
        %v481 = vld [vmem:[#allocation4 + $0x258] sm:$0xf]
        %v482 = vld [vmem:[#allocation4 + $0x25c] sm:$0xf]
        %v483 = vld [vmem:[#allocation4 + $0x260] sm:$0xf]
        %v484 = vld [vmem:[#allocation4 + $0x264] sm:$0xf]
        %v485 = vld [vmem:[#allocation4 + $0x268] sm:$0xf]
        %v486 = vld [vmem:[#allocation4 + $0x26c] sm:$0xf]
        %v487 = vld [vmem:[#allocation4 + $0x270] sm:$0xf]
        %v488 = vld [vmem:[#allocation4 + $0x274] sm:$0xf]
        %v489 = vld [vmem:[#allocation4 + $0x278] sm:$0xf]
        %v490 = vld [vmem:[#allocation4 + $0x27c] sm:$0xf]
        %v491 = vld [vmem:[#allocation4 + $0x280] sm:$0xf]
        %v492 = vld [vmem:[#allocation4 + $0x284] sm:$0xf]
        %v493 = vld [vmem:[#allocation4 + $0x288] sm:$0xf]
        %v494 = vld [vmem:[#allocation4 + $0x28c] sm:$0xf]
        %v495 = vld [vmem:[#allocation4 + $0x290] sm:$0xf]
        %v496 = vld [vmem:[#allocation4 + $0x294] sm:$0xf]
        %v497 = vld [vmem:[#allocation4 + $0x298] sm:$0xf]
        %v498 = vld [vmem:[#allocation4 + $0x29c] sm:$0xf]
        %v499 = vld [vmem:[#allocation4 + $0x2a0] sm:$0xf]
        %v500 = vld [vmem:[#allocation4 + $0x2a4] sm:$0xf]
        %v501 = vld [vmem:[#allocation4 + $0x2a8] sm:$0xf]
        %v502 = vld [vmem:[#allocation4 + $0x2ac] sm:$0xf]
        %v503 = vld [vmem:[#allocation4 + $0x2b0] sm:$0xf]
        %v504 = vld [vmem:[#allocation4 + $0x2b4] sm:$0xf]
        %v505 = vld [vmem:[#allocation4 + $0x2b8] sm:$0xf]
        %v506 = vld [vmem:[#allocation4 + $0x2bc] sm:$0xf]
        %v507 = vld [vmem:[#allocation4 + $0x2c0] sm:$0xf]
        %v508 = vld [vmem:[#allocation4 + $0x2c4] sm:$0xf]
        %v509 = vld [vmem:[#allocation4 + $0x2c8] sm:$0xf]
        %v510 = vld [vmem:[#allocation4 + $0x2cc] sm:$0xf]
        %v511 = vld [vmem:[#allocation4 + $0x2d0] sm:$0xf]
        %v512 = vld [vmem:[#allocation4 + $0x2d4] sm:$0xf]
        %v513 = vld [vmem:[#allocation4 + $0x2d8] sm:$0xf]
        %v514 = vld [vmem:[#allocation4 + $0x2dc] sm:$0xf]
        %v515 = vld [vmem:[#allocation4 + $0x2e0] sm:$0xf]
        %v516 = vld [vmem:[#allocation4 + $0x2e4] sm:$0xf]
        %v517 = vld [vmem:[#allocation4 + $0x2e8] sm:$0xf]
        %v518 = vld [vmem:[#allocation4 + $0x2ec] sm:$0xf]
        %v519 = vld [vmem:[#allocation4 + $0x2f0] sm:$0xf]
        %v520 = vld [vmem:[#allocation4 + $0x2f4] sm:$0xf]
        %v521 = vld [vmem:[#allocation4 + $0x2f8] sm:$0xf]
        %v522 = vld [vmem:[#allocation4 + $0x2fc] sm:$0xf]
        %v523 = vld [vmem:[%s2] sm:$0x1]
        %v525 = vperm.slane %v523, 0
        %v539 = vunpack.c.l.b16 %v319
        %v540 = vunpack.c.h.b16 %v319
        %v541 = vunpack.c.l.b16 %v320
        %v542 = vunpack.c.h.b16 %v320
        %v543 = vunpack.c.l.b16 %v321
        %v544 = vunpack.c.h.b16 %v321
        %v545 = vunpack.c.l.b16 %v322
        %v546 = vunpack.c.h.b16 %v322
        %v547 = vunpack.c.l.b16 %v323
        %v548 = vunpack.c.h.b16 %v323
        %v549 = vunpack.c.l.b16 %v324
        %v550 = vunpack.c.h.b16 %v324
        %v551 = vunpack.c.l.b16 %v325
        %v552 = vunpack.c.h.b16 %v325
        %v553 = vunpack.c.l.b16 %v326
        %v554 = vunpack.c.h.b16 %v326
        %v555 = vunpack.c.l.b16 %v327
        %v556 = vunpack.c.h.b16 %v327
        %v557 = vunpack.c.l.b16 %v328
        %v558 = vunpack.c.h.b16 %v328
        %v559 = vunpack.c.l.b16 %v329
        %v560 = vunpack.c.h.b16 %v329
        %v561 = vunpack.c.l.b16 %v330
        %v562 = vunpack.c.h.b16 %v330
        %v563 = vpack.c.b16 %v551, %v539
        %v564 = vpack.c.b16 %v552, %v540
        %v565 = vpack.c.b16 %v553, %v541
        %v566 = vpack.c.b16 %v554, %v542
        %v567 = vpack.c.b16 %v555, %v543
        %v568 = vpack.c.b16 %v556, %v544
        %v569 = vpack.c.b16 %v557, %v545
        %v570 = vpack.c.b16 %v558, %v546
        %v571 = vpack.c.b16 %v559, %v547
        %v572 = vpack.c.b16 %v560, %v548
        %v573 = vpack.c.b16 %v561, %v549
        %v574 = vpack.c.b16 %v562, %v550
        %v779 = vunpack.c.l.b16 %v331
        %v780 = vunpack.c.l.b16 %v332
        %v781 = vunpack.c.l.b16 %v333
        %v782 = vunpack.c.l.b16 %v334
        %v783 = vunpack.c.l.b16 %v335
        %v784 = vunpack.c.l.b16 %v336
        %v785 = vunpack.c.l.b16 %v337
        %v786 = vunpack.c.l.b16 %v338
        %v787 = vunpack.c.l.b16 %v339
        %v788 = vunpack.c.l.b16 %v340
        %v789 = vunpack.c.l.b16 %v341
        %v790 = vunpack.c.l.b16 %v342
        %v791 = vunpack.c.l.b16 %v343
        %v792 = vunpack.c.l.b16 %v344
        %v793 = vunpack.c.l.b16 %v345
        %v794 = vunpack.c.l.b16 %v346
        %v795 = vunpack.c.l.b16 %v347
        %v796 = vunpack.c.l.b16 %v348
        %v797 = vunpack.c.l.b16 %v349
        %v798 = vunpack.c.l.b16 %v350
        %v799 = vunpack.c.l.b16 %v351
        %v800 = vunpack.c.l.b16 %v352
        %v801 = vunpack.c.l.b16 %v353
        %v802 = vunpack.c.l.b16 %v354
        %v803 = vunpack.c.l.b16 %v355
        %v804 = vunpack.c.l.b16 %v356
        %v805 = vunpack.c.l.b16 %v357
        %v806 = vunpack.c.l.b16 %v358
        %v807 = vunpack.c.l.b16 %v359
        %v808 = vunpack.c.l.b16 %v360
        %v809 = vunpack.c.l.b16 %v361
        %v810 = vunpack.c.l.b16 %v362
        %v811 = vunpack.c.l.b16 %v363
        %v812 = vunpack.c.l.b16 %v364
        %v813 = vunpack.c.l.b16 %v365
        %v814 = vunpack.c.l.b16 %v366
        %v815 = vunpack.c.l.b16 %v367
        %v816 = vunpack.c.l.b16 %v368
        %v817 = vunpack.c.l.b16 %v369
        %v818 = vunpack.c.l.b16 %v370
        %v819 = vunpack.c.l.b16 %v371
        %v820 = vunpack.c.l.b16 %v372
        %v821 = vunpack.c.l.b16 %v373
        %v822 = vunpack.c.l.b16 %v374
        %v823 = vunpack.c.l.b16 %v375
        %v824 = vunpack.c.l.b16 %v376
        %v825 = vunpack.c.l.b16 %v377
        %v826 = vunpack.c.l.b16 %v378
        %v827 = vunpack.c.l.b16 %v379
        %v828 = vunpack.c.l.b16 %v380
        %v829 = vunpack.c.l.b16 %v381
        %v830 = vunpack.c.l.b16 %v382
        %v831 = vunpack.c.l.b16 %v383
        %v832 = vunpack.c.l.b16 %v384
        %v833 = vunpack.c.l.b16 %v385
        %v834 = vunpack.c.l.b16 %v386
        %v835 = vunpack.c.l.b16 %v387
        %v836 = vunpack.c.l.b16 %v388
        %v837 = vunpack.c.l.b16 %v389
        %v838 = vunpack.c.l.b16 %v390
        %v839 = vunpack.c.l.b16 %v391
        %v840 = vunpack.c.l.b16 %v392
        %v841 = vunpack.c.l.b16 %v393
        %v842 = vunpack.c.l.b16 %v394
        %v843 = vunpack.c.l.b16 %v395
        %v844 = vunpack.c.l.b16 %v396
        %v845 = vunpack.c.l.b16 %v397
        %v846 = vunpack.c.l.b16 %v398
        %v847 = vunpack.c.l.b16 %v399
        %v848 = vunpack.c.l.b16 %v400
        %v849 = vunpack.c.l.b16 %v401
        %v850 = vunpack.c.l.b16 %v402
        %v851 = vunpack.c.l.b16 %v403
        %v852 = vunpack.c.l.b16 %v404
        %v853 = vunpack.c.l.b16 %v405
        %v854 = vunpack.c.l.b16 %v406
        %v855 = vunpack.c.l.b16 %v407
        %v856 = vunpack.c.l.b16 %v408
        %v857 = vunpack.c.l.b16 %v409
        %v858 = vunpack.c.l.b16 %v410
        %v859 = vunpack.c.l.b16 %v411
        %v860 = vunpack.c.l.b16 %v412
        %v861 = vunpack.c.l.b16 %v413
        %v862 = vunpack.c.l.b16 %v414
        %v863 = vunpack.c.l.b16 %v415
        %v864 = vunpack.c.l.b16 %v416
        %v865 = vunpack.c.l.b16 %v417
        %v866 = vunpack.c.l.b16 %v418
        %v867 = vunpack.c.l.b16 %v419
        %v868 = vunpack.c.l.b16 %v420
        %v869 = vunpack.c.l.b16 %v421
        %v870 = vunpack.c.l.b16 %v422
        %v871 = vunpack.c.l.b16 %v423
        %v872 = vunpack.c.l.b16 %v424
        %v873 = vunpack.c.l.b16 %v425
        %v874 = vunpack.c.l.b16 %v426
        %v875 = vunpack.c.l.b16 %v427
        %v876 = vunpack.c.l.b16 %v428
        %v877 = vunpack.c.l.b16 %v429
        %v878 = vunpack.c.l.b16 %v430
        %v879 = vunpack.c.l.b16 %v431
        %v880 = vunpack.c.l.b16 %v432
        %v881 = vunpack.c.l.b16 %v433
        %v882 = vunpack.c.l.b16 %v434
        %v883 = vunpack.c.l.b16 %v435
        %v884 = vunpack.c.l.b16 %v436
        %v885 = vunpack.c.l.b16 %v437
        %v886 = vunpack.c.l.b16 %v438
        %v887 = vunpack.c.l.b16 %v439
        %v888 = vunpack.c.l.b16 %v440
        %v889 = vunpack.c.l.b16 %v441
        %v890 = vunpack.c.l.b16 %v442
        %v891 = vunpack.c.l.b16 %v443
        %v892 = vunpack.c.l.b16 %v444
        %v893 = vunpack.c.l.b16 %v445
        %v894 = vunpack.c.l.b16 %v446
        %v895 = vunpack.c.l.b16 %v447
        %v896 = vunpack.c.l.b16 %v448
        %v897 = vunpack.c.l.b16 %v449
        %v898 = vunpack.c.l.b16 %v450
        %v899 = vunpack.c.l.b16 %v451
        %v900 = vunpack.c.l.b16 %v452
        %v901 = vunpack.c.l.b16 %v453
        %v902 = vunpack.c.l.b16 %v454
        %v903 = vunpack.c.l.b16 %v455
        %v904 = vunpack.c.l.b16 %v456
        %v905 = vunpack.c.l.b16 %v457
        %v906 = vunpack.c.l.b16 %v458
        %v907 = vunpack.c.l.b16 %v459
        %v908 = vunpack.c.l.b16 %v460
        %v909 = vunpack.c.l.b16 %v461
        %v910 = vunpack.c.l.b16 %v462
        %v911 = vunpack.c.l.b16 %v463
        %v912 = vunpack.c.l.b16 %v464
        %v913 = vunpack.c.l.b16 %v465
        %v914 = vunpack.c.l.b16 %v466
        %v915 = vunpack.c.l.b16 %v467
        %v916 = vunpack.c.l.b16 %v468
        %v917 = vunpack.c.l.b16 %v469
        %v918 = vunpack.c.l.b16 %v470
        %v919 = vunpack.c.l.b16 %v471
        %v920 = vunpack.c.l.b16 %v472
        %v921 = vunpack.c.l.b16 %v473
        %v922 = vunpack.c.l.b16 %v474
        %v923 = vunpack.c.l.b16 %v475
        %v924 = vunpack.c.l.b16 %v476
        %v925 = vunpack.c.l.b16 %v477
        %v926 = vunpack.c.l.b16 %v478
        %v927 = vunpack.c.l.b16 %v479
        %v928 = vunpack.c.l.b16 %v480
        %v929 = vunpack.c.l.b16 %v481
        %v930 = vunpack.c.l.b16 %v482
        %v931 = vunpack.c.l.b16 %v483
        %v932 = vunpack.c.l.b16 %v484
        %v933 = vunpack.c.l.b16 %v485
        %v934 = vunpack.c.l.b16 %v486
        %v935 = vunpack.c.l.b16 %v487
        %v936 = vunpack.c.l.b16 %v488
        %v937 = vunpack.c.l.b16 %v489
        %v938 = vunpack.c.l.b16 %v490
        %v939 = vunpack.c.l.b16 %v491
        %v940 = vunpack.c.l.b16 %v492
        %v941 = vunpack.c.l.b16 %v493
        %v942 = vunpack.c.l.b16 %v494
        %v943 = vunpack.c.l.b16 %v495
        %v944 = vunpack.c.l.b16 %v496
        %v945 = vunpack.c.l.b16 %v497
        %v946 = vunpack.c.l.b16 %v498
        %v947 = vunpack.c.l.b16 %v499
        %v948 = vunpack.c.l.b16 %v500
        %v949 = vunpack.c.l.b16 %v501
        %v950 = vunpack.c.l.b16 %v502
        %v951 = vunpack.c.l.b16 %v503
        %v952 = vunpack.c.l.b16 %v504
        %v953 = vunpack.c.l.b16 %v505
        %v954 = vunpack.c.l.b16 %v506
        %v955 = vunpack.c.l.b16 %v507
        %v956 = vunpack.c.l.b16 %v508
        %v957 = vunpack.c.l.b16 %v509
        %v958 = vunpack.c.l.b16 %v510
        %v959 = vunpack.c.l.b16 %v511
        %v960 = vunpack.c.l.b16 %v512
        %v961 = vunpack.c.l.b16 %v513
        %v962 = vunpack.c.l.b16 %v514
        %v963 = vunpack.c.l.b16 %v515
        %v964 = vunpack.c.l.b16 %v516
        %v965 = vunpack.c.l.b16 %v517
        %v966 = vunpack.c.l.b16 %v518
        %v967 = vunpack.c.l.b16 %v519
        %v968 = vunpack.c.l.b16 %v520
        %v969 = vunpack.c.l.b16 %v521
        %v970 = vunpack.c.l.b16 %v522
        %v971 = vpack.c.b16 %v780, %v779
        %v972 = vpack.c.b16 %v782, %v781
        %v973 = vpack.c.b16 %v784, %v783
        %v974 = vpack.c.b16 %v786, %v785
        %v975 = vpack.c.b16 %v788, %v787
        %v976 = vpack.c.b16 %v790, %v789
        %v977 = vpack.c.b16 %v792, %v791
        %v978 = vpack.c.b16 %v794, %v793
        %v979 = vpack.c.b16 %v796, %v795
        %v980 = vpack.c.b16 %v798, %v797
        %v981 = vpack.c.b16 %v800, %v799
        %v982 = vpack.c.b16 %v802, %v801
        %v983 = vpack.c.b16 %v804, %v803
        %v984 = vpack.c.b16 %v806, %v805
        %v985 = vpack.c.b16 %v808, %v807
        %v986 = vpack.c.b16 %v810, %v809
        %v987 = vpack.c.b16 %v812, %v811
        %v988 = vpack.c.b16 %v814, %v813
        %v989 = vpack.c.b16 %v816, %v815
        %v990 = vpack.c.b16 %v818, %v817
        %v991 = vpack.c.b16 %v820, %v819
        %v992 = vpack.c.b16 %v822, %v821
        %v993 = vpack.c.b16 %v824, %v823
        %v994 = vpack.c.b16 %v826, %v825
        %v995 = vpack.c.b16 %v828, %v827
        %v996 = vpack.c.b16 %v830, %v829
        %v997 = vpack.c.b16 %v832, %v831
        %v998 = vpack.c.b16 %v834, %v833
        %v999 = vpack.c.b16 %v836, %v835
        %v1000 = vpack.c.b16 %v838, %v837
        %v1001 = vpack.c.b16 %v840, %v839
        %v1002 = vpack.c.b16 %v842, %v841
        %v1003 = vpack.c.b16 %v844, %v843
        %v1004 = vpack.c.b16 %v846, %v845
        %v1005 = vpack.c.b16 %v848, %v847
        %v1006 = vpack.c.b16 %v850, %v849
        %v1007 = vpack.c.b16 %v852, %v851
        %v1008 = vpack.c.b16 %v854, %v853
        %v1009 = vpack.c.b16 %v856, %v855
        %v1010 = vpack.c.b16 %v858, %v857
        %v1011 = vpack.c.b16 %v860, %v859
        %v1012 = vpack.c.b16 %v862, %v861
        %v1013 = vpack.c.b16 %v864, %v863
        %v1014 = vpack.c.b16 %v866, %v865
        %v1015 = vpack.c.b16 %v868, %v867
        %v1016 = vpack.c.b16 %v870, %v869
        %v1017 = vpack.c.b16 %v872, %v871
        %v1018 = vpack.c.b16 %v874, %v873
        %v1019 = vpack.c.b16 %v876, %v875
        %v1020 = vpack.c.b16 %v878, %v877
        %v1021 = vpack.c.b16 %v880, %v879
        %v1022 = vpack.c.b16 %v882, %v881
        %v1023 = vpack.c.b16 %v884, %v883
        %v1024 = vpack.c.b16 %v886, %v885
        %v1025 = vpack.c.b16 %v888, %v887
        %v1026 = vpack.c.b16 %v890, %v889
        %v1027 = vpack.c.b16 %v892, %v891
        %v1028 = vpack.c.b16 %v894, %v893
        %v1029 = vpack.c.b16 %v896, %v895
        %v1030 = vpack.c.b16 %v898, %v897
        %v1031 = vpack.c.b16 %v900, %v899
        %v1032 = vpack.c.b16 %v902, %v901
        %v1033 = vpack.c.b16 %v904, %v903
        %v1034 = vpack.c.b16 %v906, %v905
        %v1035 = vpack.c.b16 %v908, %v907
        %v1036 = vpack.c.b16 %v910, %v909
        %v1037 = vpack.c.b16 %v912, %v911
        %v1038 = vpack.c.b16 %v914, %v913
        %v1039 = vpack.c.b16 %v916, %v915
        %v1040 = vpack.c.b16 %v918, %v917
        %v1041 = vpack.c.b16 %v920, %v919
        %v1042 = vpack.c.b16 %v922, %v921
        %v1043 = vpack.c.b16 %v924, %v923
        %v1044 = vpack.c.b16 %v926, %v925
        %v1045 = vpack.c.b16 %v928, %v927
        %v1046 = vpack.c.b16 %v930, %v929
        %v1047 = vpack.c.b16 %v932, %v931
        %v1048 = vpack.c.b16 %v934, %v933
        %v1049 = vpack.c.b16 %v936, %v935
        %v1050 = vpack.c.b16 %v938, %v937
        %v1051 = vpack.c.b16 %v940, %v939
        %v1052 = vpack.c.b16 %v942, %v941
        %v1053 = vpack.c.b16 %v944, %v943
        %v1054 = vpack.c.b16 %v946, %v945
        %v1055 = vpack.c.b16 %v948, %v947
        %v1056 = vpack.c.b16 %v950, %v949
        %v1057 = vpack.c.b16 %v952, %v951
        %v1058 = vpack.c.b16 %v954, %v953
        %v1059 = vpack.c.b16 %v956, %v955
        %v1060 = vpack.c.b16 %v958, %v957
        %v1061 = vpack.c.b16 %v960, %v959
        %v1062 = vpack.c.b16 %v962, %v961
        %v1063 = vpack.c.b16 %v964, %v963
        %v1064 = vpack.c.b16 %v966, %v965
        %v1065 = vpack.c.b16 %v968, %v967
        %v1066 = vpack.c.b16 %v970, %v969
        %1163 = vmatpush.bf16.msra.mxu0 %v978
        %1164 = vmatpush.bf16.msra.mxu0 %v977
        %1165 = vmatpush.bf16.msra.mxu0 %v976
        %1166 = vmatpush.bf16.msra.mxu0 %v975
        %1167 = vmatpush.bf16.msra.mxu0 %v974
        %1168 = vmatpush.bf16.msra.mxu0 %v973
        %1169 = vmatpush.bf16.msra.mxu0 %v972
        %1170 = vmatpush.bf16.msra.mxu0 %v971
        %1171 = vmatmul.bf16.gmra.mxu0 %v563
        %v1172 = vpop.f32.mrf.mxu0
        %v1173 = vadd.f32 %v525, %v1172
        %v1174 = vpop.f32.mrf.mxu0
        %v1175 = vadd.f32 %v525, %v1174
        %1176 = vdwg.mxu0
        %1177 = vmatpush.bf16.msra.mxu0 %v986
        %1178 = vmatpush.bf16.msra.mxu0 %v985
        %1179 = vmatpush.bf16.msra.mxu0 %v984
        %1180 = vmatpush.bf16.msra.mxu0 %v983
        %1181 = vmatpush.bf16.msra.mxu0 %v982
        %1182 = vmatpush.bf16.msra.mxu0 %v981
        %1183 = vmatpush.bf16.msra.mxu0 %v980
        %1184 = vmatpush.bf16.msra.mxu0 %v979
        %1185 = vmatmul.bf16.gmra.mxu0 %v564
        %v1186 = vpop.f32.mrf.mxu0
        %v1187 = vadd.f32 %v1173, %v1186
        %v1188 = vpop.f32.mrf.mxu0
        %v1189 = vadd.f32 %v1175, %v1188
        %1190 = vdwg.mxu0
        %1191 = vmatpush.bf16.msra.mxu0 %v994
        %1192 = vmatpush.bf16.msra.mxu0 %v993
        %1193 = vmatpush.bf16.msra.mxu0 %v992
        %1194 = vmatpush.bf16.msra.mxu0 %v991
        %1195 = vmatpush.bf16.msra.mxu0 %v990
        %1196 = vmatpush.bf16.msra.mxu0 %v989
        %1197 = vmatpush.bf16.msra.mxu0 %v988
        %1198 = vmatpush.bf16.msra.mxu0 %v987
        %1199 = vmatmul.bf16.gmra.mxu0 %v565
        %v1200 = vpop.f32.mrf.mxu0
        %v1201 = vadd.f32 %v1187, %v1200
        %v1202 = vpop.f32.mrf.mxu0
        %v1203 = vadd.f32 %v1189, %v1202
        %1204 = vdwg.mxu0
        %1205 = vmatpush.bf16.msra.mxu0 %v1002
        %1206 = vmatpush.bf16.msra.mxu0 %v1001
        %1207 = vmatpush.bf16.msra.mxu0 %v1000
        %1208 = vmatpush.bf16.msra.mxu0 %v999
        %1209 = vmatpush.bf16.msra.mxu0 %v998
        %1210 = vmatpush.bf16.msra.mxu0 %v997
        %1211 = vmatpush.bf16.msra.mxu0 %v996
        %1212 = vmatpush.bf16.msra.mxu0 %v995
        %1213 = vmatmul.bf16.gmra.mxu0 %v566
        %v1214 = vpop.f32.mrf.mxu0
        %v1215 = vadd.f32 %v1201, %v1214
        %v1216 = vpop.f32.mrf.mxu0
        %v1217 = vadd.f32 %v1203, %v1216
        %1218 = vdwg.mxu0
        %1219 = vmatpush.bf16.msra.mxu0 %v1010
        %1220 = vmatpush.bf16.msra.mxu0 %v1009
        %1221 = vmatpush.bf16.msra.mxu0 %v1008
        %1222 = vmatpush.bf16.msra.mxu0 %v1007
        %1223 = vmatpush.bf16.msra.mxu0 %v1006
        %1224 = vmatpush.bf16.msra.mxu0 %v1005
        %1225 = vmatpush.bf16.msra.mxu0 %v1004
        %1226 = vmatpush.bf16.msra.mxu0 %v1003
        %1227 = vmatmul.bf16.gmra.mxu0 %v567
        %v1228 = vpop.f32.mrf.mxu0
        %v1229 = vadd.f32 %v1215, %v1228
        %v1230 = vpop.f32.mrf.mxu0
        %v1231 = vadd.f32 %v1217, %v1230
        %1232 = vdwg.mxu0
        %1233 = vmatpush.bf16.msra.mxu0 %v1018
        %1234 = vmatpush.bf16.msra.mxu0 %v1017
        %1235 = vmatpush.bf16.msra.mxu0 %v1016
        %1236 = vmatpush.bf16.msra.mxu0 %v1015
        %1237 = vmatpush.bf16.msra.mxu0 %v1014
        %1238 = vmatpush.bf16.msra.mxu0 %v1013
        %1239 = vmatpush.bf16.msra.mxu0 %v1012
        %1240 = vmatpush.bf16.msra.mxu0 %v1011
        %1241 = vmatmul.bf16.gmra.mxu0 %v568
        %v1242 = vpop.f32.mrf.mxu0
        %v1243 = vadd.f32 %v1229, %v1242
        %v1244 = vpop.f32.mrf.mxu0
        %v1245 = vadd.f32 %v1231, %v1244
        %1246 = vdwg.mxu0
        %1247 = vmatpush.bf16.msra.mxu0 %v1026
        %1248 = vmatpush.bf16.msra.mxu0 %v1025
        %1249 = vmatpush.bf16.msra.mxu0 %v1024
        %1250 = vmatpush.bf16.msra.mxu0 %v1023
        %1251 = vmatpush.bf16.msra.mxu0 %v1022
        %1252 = vmatpush.bf16.msra.mxu0 %v1021
        %1253 = vmatpush.bf16.msra.mxu0 %v1020
        %1254 = vmatpush.bf16.msra.mxu0 %v1019
        %1255 = vmatmul.bf16.gmra.mxu0 %v569
        %v1256 = vpop.f32.mrf.mxu0
        %v1257 = vadd.f32 %v1243, %v1256
        %v1258 = vpop.f32.mrf.mxu0
        %v1259 = vadd.f32 %v1245, %v1258
        %1260 = vdwg.mxu0
        %1261 = vmatpush.bf16.msra.mxu0 %v1034
        %1262 = vmatpush.bf16.msra.mxu0 %v1033
        %1263 = vmatpush.bf16.msra.mxu0 %v1032
        %1264 = vmatpush.bf16.msra.mxu0 %v1031
        %1265 = vmatpush.bf16.msra.mxu0 %v1030
        %1266 = vmatpush.bf16.msra.mxu0 %v1029
        %1267 = vmatpush.bf16.msra.mxu0 %v1028
        %1268 = vmatpush.bf16.msra.mxu0 %v1027
        %1269 = vmatmul.bf16.gmra.mxu0 %v570
        %v1270 = vpop.f32.mrf.mxu0
        %v1271 = vadd.f32 %v1257, %v1270
        %v1272 = vpop.f32.mrf.mxu0
        %v1273 = vadd.f32 %v1259, %v1272
        %1274 = vdwg.mxu0
        %1275 = vmatpush.bf16.msra.mxu0 %v1042
        %1276 = vmatpush.bf16.msra.mxu0 %v1041
        %1277 = vmatpush.bf16.msra.mxu0 %v1040
        %1278 = vmatpush.bf16.msra.mxu0 %v1039
        %1279 = vmatpush.bf16.msra.mxu0 %v1038
        %1280 = vmatpush.bf16.msra.mxu0 %v1037
        %1281 = vmatpush.bf16.msra.mxu0 %v1036
        %1282 = vmatpush.bf16.msra.mxu0 %v1035
        %1283 = vmatmul.bf16.gmra.mxu0 %v571
        %v1284 = vpop.f32.mrf.mxu0
        %v1285 = vadd.f32 %v1271, %v1284
        %v1286 = vpop.f32.mrf.mxu0
        %v1287 = vadd.f32 %v1273, %v1286
        %1288 = vdwg.mxu0
        %1289 = vmatpush.bf16.msra.mxu0 %v1050
        %1290 = vmatpush.bf16.msra.mxu0 %v1049
        %1291 = vmatpush.bf16.msra.mxu0 %v1048
        %1292 = vmatpush.bf16.msra.mxu0 %v1047
        %1293 = vmatpush.bf16.msra.mxu0 %v1046
        %1294 = vmatpush.bf16.msra.mxu0 %v1045
        %1295 = vmatpush.bf16.msra.mxu0 %v1044
        %1296 = vmatpush.bf16.msra.mxu0 %v1043
        %1297 = vmatmul.bf16.gmra.mxu0 %v572
        %v1298 = vpop.f32.mrf.mxu0
        %v1299 = vadd.f32 %v1285, %v1298
        %v1300 = vpop.f32.mrf.mxu0
        %v1301 = vadd.f32 %v1287, %v1300
        %1302 = vdwg.mxu0
        %1303 = vmatpush.bf16.msra.mxu0 %v1058
        %1304 = vmatpush.bf16.msra.mxu0 %v1057
        %1305 = vmatpush.bf16.msra.mxu0 %v1056
        %1306 = vmatpush.bf16.msra.mxu0 %v1055
        %1307 = vmatpush.bf16.msra.mxu0 %v1054
        %1308 = vmatpush.bf16.msra.mxu0 %v1053
        %1309 = vmatpush.bf16.msra.mxu0 %v1052
        %1310 = vmatpush.bf16.msra.mxu0 %v1051
        %1311 = vmatmul.bf16.gmra.mxu0 %v573
        %v1312 = vpop.f32.mrf.mxu0
        %v1313 = vadd.f32 %v1299, %v1312
        %v1314 = vpop.f32.mrf.mxu0
        %v1315 = vadd.f32 %v1301, %v1314
        %1316 = vdwg.mxu0
        %1317 = vmatpush.bf16.msra.mxu0 %v1066
        %1318 = vmatpush.bf16.msra.mxu0 %v1065
        %1319 = vmatpush.bf16.msra.mxu0 %v1064
        %1320 = vmatpush.bf16.msra.mxu0 %v1063
        %1321 = vmatpush.bf16.msra.mxu0 %v1062
        %1322 = vmatpush.bf16.msra.mxu0 %v1061
        %1323 = vmatpush.bf16.msra.mxu0 %v1060
        %1324 = vmatpush.bf16.msra.mxu0 %v1059
        %1325 = vmatmul.bf16.gmra.mxu0 %v574
        %v1326 = vpop.f32.mrf.mxu0
        %v1327 = vadd.f32 %v1313, %v1326
        %v1328 = vpop.f32.mrf.mxu0
        %v1329 = vadd.f32 %v1315, %v1328
        %1330 = vdwg.mxu0
        %v1331 = vmax.f32 %v1327, 0.0
        %v1332 = vmax.f32 %v1329, 0.0
        %v1333 = vpack.c.bf16 %v1332, %v1331
        %v1334 = vld [vmem:[#allocation6] sm:$0xf]
        %v1335 = vld [vmem:[#allocation6 + $0x4] sm:$0xf]
        %v1336 = vld [vmem:[#allocation6 + $0x8] sm:$0xf]
        %v1337 = vld [vmem:[#allocation6 + $0xc] sm:$0xf]
        %v1338 = vld [vmem:[#allocation6 + $0x10] sm:$0xf]
        %v1339 = vld [vmem:[#allocation6 + $0x14] sm:$0xf]
        %v1340 = vld [vmem:[#allocation6 + $0x18] sm:$0xf]
        %v1341 = vld [vmem:[#allocation6 + $0x1c] sm:$0xf]
        %v1342 = vld [vmem:[#allocation6 + $0x20] sm:$0xf]
        %v1343 = vld [vmem:[#allocation6 + $0x24] sm:$0xf]
        %v1344 = vld [vmem:[#allocation6 + $0x28] sm:$0xf]
        %v1345 = vld [vmem:[#allocation6 + $0x2c] sm:$0xf]
        %v1346 = vld [vmem:[#allocation6 + $0x30] sm:$0xf]
        %v1347 = vld [vmem:[#allocation6 + $0x34] sm:$0xf]
        %v1348 = vld [vmem:[#allocation6 + $0x38] sm:$0xf]
        %v1349 = vld [vmem:[#allocation6 + $0x3c] sm:$0xf]
        %v1350 = vld [vmem:[%s4] sm:$0x1]
        %v1352 = vperm.slane %v1350, 0
        %v1370 = vunpack.c.l.b16 %v1334
        %v1371 = vunpack.c.l.b16 %v1335
        %v1372 = vunpack.c.l.b16 %v1336
        %v1373 = vunpack.c.l.b16 %v1337
        %v1374 = vunpack.c.l.b16 %v1338
        %v1375 = vunpack.c.l.b16 %v1339
        %v1376 = vunpack.c.l.b16 %v1340
        %v1377 = vunpack.c.l.b16 %v1341
        %v1378 = vunpack.c.l.b16 %v1342
        %v1379 = vunpack.c.l.b16 %v1343
        %v1380 = vunpack.c.l.b16 %v1344
        %v1381 = vunpack.c.l.b16 %v1345
        %v1382 = vunpack.c.l.b16 %v1346
        %v1383 = vunpack.c.l.b16 %v1347
        %v1384 = vunpack.c.l.b16 %v1348
        %v1385 = vunpack.c.l.b16 %v1349
        %v1386 = vpack.c.b16 %v1371, %v1370
        %v1387 = vpack.c.b16 %v1373, %v1372
        %v1388 = vpack.c.b16 %v1375, %v1374
        %v1389 = vpack.c.b16 %v1377, %v1376
        %v1390 = vpack.c.b16 %v1379, %v1378
        %v1391 = vpack.c.b16 %v1381, %v1380
        %v1392 = vpack.c.b16 %v1383, %v1382
        %v1393 = vpack.c.b16 %v1385, %v1384
        %1402 = vmatpush.bf16.msra.mxu0 %v1393
        %1403 = vmatpush.bf16.msra.mxu0 %v1392
        %1404 = vmatpush.bf16.msra.mxu0 %v1391
        %1405 = vmatpush.bf16.msra.mxu0 %v1390
        %1406 = vmatpush.bf16.msra.mxu0 %v1389
        %1407 = vmatpush.bf16.msra.mxu0 %v1388
        %1408 = vmatpush.bf16.msra.mxu0 %v1387
        %1409 = vmatpush.bf16.msra.mxu0 %v1386
        %1410 = vmatmul.bf16.gmra.mxu0 %v1333
        %v1411 = vpop.f32.mrf.mxu0
        %v1412 = vadd.f32 %v1352, %v1411
        %v1413 = vpop.f32.mrf.mxu0
        %v1414 = vadd.f32 %v1352, %v1413
        %1415 = vdwg.mxu0
        %s1416 = smul.u32 %s22, 16
        %v1417 = vlaneseq
        %v1418 = vshrl.u32 %v1417, 7
        %v1419 = vadd.s32 %v1418, 8
        %v1420 = vstv %s1416
        %v1421 = vadd.s32 %v1420, %v1418
        %v1422 = vadd.s32 %v1420, %v1419
        %vm1423 = vcmp.lt.s32.totalorder %v1421, 32
        %vm1424 = vcmp.lt.s32.totalorder %v1422, 32
        %v1425 = vsel %vm1423, 1, 0
        %v1426 = vsel %vm1424, 1, 0
        %vm1427 = vcmp.eq.s32.totalorder %v1425, 1
        %vm1428 = vcmp.eq.s32.totalorder %v1426, 1
        %v1429 = vsel %vm1427, %v1412, 0.0
        %v1430 = vsel %vm1428, %v1414, 0.0
        %v1431 = vadd.f32 %v1429, %v1430
        %v1432 = vrot.slane %v1431, 4
        %v1433 = vadd.f32 %v1431, %v1432
        %v1434 = vrot.slane %v1433, 2
        %v1435 = vadd.f32 %v1433, %v1434
        %v1436 = vrot.slane %v1435, 1
        %v1437 = vadd.f32 %v1435, %v1436
        %1438 = vst [vmem:[%s318] sm:$0x1] %v1437
        %v1439 = vpack.c.bf16 %v1412, %v1412
        %v1440 = vpack.c.bf16 %v1414, %v1414
        %1441 = vst [vmem:[%s314] sm:$0xf] %v1439
        %1442 = vst [vmem:[%s314 + $0x4] sm:$0xf] %v1440
        %s1443 = smul.u32 2, %s22
        %p1444 = scmp.lt.s32.totalorder %s1443, 3
        %s1445 = scalar_select %p1444, %s1443, 3
        %s1446 = smul.addr %s1445, 4
        %s1447 = scalar_lea.vmem %s5, %s1446
        %p1448 = scmp.lt.s32.totalorder %s22, 1
        %s1449 = scalar_select %p1448, %s22, 1
        %s1450 = scalar_lea.vmem %s6, %s1449
        // Predicated region
        $region53: #{adag_forward.2} parent=39 // pred_check
          %p1451 = pneg %p150
        $region54: #{adag_forward.2} parent=39 // pred_check_branch
          %1453 = sbr.rel (%p1451) target = $region56
        $region55: #{adag_forward.2} parent=39 // pred_region
          %s1454 = smul.u32 2, %s22
        $region56: #{adag_forward.2} parent=39 // pred_fallthru
          _
        // Predicated region
        $region57: #{adag_forward.2} parent=39 // pred_check
          %p1455 = pneg %p176
        $region58: #{adag_forward.2} parent=39 // pred_check_branch
          %1457 = sbr.rel (%p1455) target = $region60
        $region59: #{adag_forward.2} parent=39 // pred_region
          _
        $region60: #{adag_forward.2} parent=39 // pred_fallthru
          _
      $region40: #{adag_forward.2} parent=5 // pred_fallthru
        _
      %p1458 = scmp.le.s32.totalorder 2, %s17
      // Predicated region
      $region61: #{adag_forward.2} parent=5 // pred_check
        %p1459 = pneg %p1458
      $region62: #{adag_forward.2} parent=5 // pred_check_branch
        %1461 = sbr.rel (%p1459) target = $region64
      $region63: #{adag_forward.2} parent=5 // pred_region
        %s1462 = ssub.s32 %s17, 2
        // Predicated region
        $region65: #{adag_forward.2} parent=63 // pred_check
          %p1463 = pneg %p156
        $region66: #{adag_forward.2} parent=63 // pred_check_branch
          %1465 = sbr.rel (%p1463) target = $region68
        $region67: #{adag_forward.2} parent=63 // pred_region
          %s1466 = smul.u32 2, %s23
          %p1467 = scmp.lt.s32.totalorder %s1466, 3
          %s1468 = scalar_select %p1467, %s1466, 3
          %s1469 = smul.addr %s1468, 4
          %s1470 = scalar_lea.vmem %s5, %s1469
        $region68: #{adag_forward.2} parent=63 // pred_fallthru
          _
        // Predicated region
        $region69: #{adag_forward.2} parent=63 // pred_check
          %p1471 = pneg %p182
        $region70: #{adag_forward.2} parent=63 // pred_check_branch
          %1473 = sbr.rel (%p1471) target = $region72
        $region71: #{adag_forward.2} parent=63 // pred_region
          %p1474 = scmp.lt.s32.totalorder %s23, 1
          %s1475 = scalar_select %p1474, %s23, 1
          %s1476 = scalar_lea.vmem %s6, %s1475
        $region72: #{adag_forward.2} parent=63 // pred_fallthru
          _
      $region64: #{adag_forward.2} parent=5 // pred_fallthru
        _
    $region6: #{adag_forward.2} parent=1 // loop_footer
      %s21 = sadd.s32 1, %s17
    $region7: #{adag_forward.2} parent=1 // loop_footer_branch
      %16 = sbr.rel target = $region3
    $region8: #{adag_forward.2} parent=1 // loop_exit
      _
    %1477 = vsyncpa [#allocation3], 1
    %s1478 = scalar_lea.sflag [#allocation3], 1
    %1479 = vsyncpa %s1478, 1
    %1480 = vsyncpa [#allocation5], 1

// kernel: adag_forward.3
$region0: #{adag_forward.3}
  #allocation0 [shape = 'u32[]', space=smem, size = 0x4, offset = 0x4, fixed_abs, tag = 'smem constant byte address 0x4 - core index']
  #allocation1 [shape = 'u32[72,128]{1,0:T(1,128)}', space=vmem, size = 0x9000, scoped, tag = 'internal scratch']
  %s0 = inlined_call_operand.vmem [shape: bf16[16,128], index: 0, kind: input, shape index: {}]
  %s1 = inlined_call_operand.vmem [shape: bf16[16,128], index: 1, kind: input, shape index: {}]
  %s2 = inlined_call_operand.vmem [shape: bf16[16,8,128], index: 2, kind: input, shape index: {}]
  %s3 = inlined_call_operand.vmem [shape: bf16[16,8,128], index: 3, kind: input, shape index: {}]
  %s4 = inlined_call_operand.vmem [shape: f32[16,128], index: 4, kind: input, shape index: {}]
  %s5 = inlined_call_operand.vmem [shape: f32[16,128], index: 5, kind: input, shape index: {}]
  %s6 = inlined_call_operand.vmem [shape: bf16[128,128], index: 6, kind: input, shape index: {}]
  %s7 = inlined_call_operand.vmem [shape: f32[3,128], index: 7, kind: input, shape index: {}]
  %s8 = inlined_call_operand.hbm [shape: f32[1,1,1], index: 8, kind: output, shape index: {}]
  %s9 = sld [smem:[#allocation0]]
  $region42: #{adag_forward.3} parent=0
    _
  %s11 = ssub.s32 1, %s9
  %s12 = scalar_select 0, %s11, %s9
  $region1: #{adag_forward.3} parent=0
    #allocation2 [shape = 'u8[512]{0}', space=vmem, size = 0x400, scoped, tag = 'output window, operand 0, single buffered']
    #allocation3 [shape = 's32[1]{0}', space=sflag, size = 0x4, scoped, tag = 'scoped memory for adag_forward.3']
    %13 = vsyncpa [#allocation3], 0
    // Predicated region
    $region2: #{adag_forward.3} parent=1 // pred_check
      _
    $region3: #{adag_forward.3} parent=1 // pred_check_branch
      %15 = sbr.rel (0) target = $region5
    $region4: #{adag_forward.3} parent=1 // pred_region
      _
    $region5: #{adag_forward.3} parent=1 // pred_fallthru
      _
    // Predicated region
    $region6: #{adag_forward.3} parent=1 // pred_check
      _
    $region7: #{adag_forward.3} parent=1 // pred_check_branch
      %17 = sbr.rel (0) target = $region9
    $region8: #{adag_forward.3} parent=1 // pred_region
      _
    $region9: #{adag_forward.3} parent=1 // pred_fallthru
      _
    // Predicated region
    $region10: #{adag_forward.3} parent=1 // pred_check
      _
    $region11: #{adag_forward.3} parent=1 // pred_check_branch
      %19 = sbr.rel (0) target = $region13
    $region12: #{adag_forward.3} parent=1 // pred_region
      _
    $region13: #{adag_forward.3} parent=1 // pred_fallthru
      _
    // Predicated region
    $region14: #{adag_forward.3} parent=1 // pred_check
      _
    $region15: #{adag_forward.3} parent=1 // pred_check_branch
      %21 = sbr.rel (0) target = $region17
    $region16: #{adag_forward.3} parent=1 // pred_region
      _
    $region17: #{adag_forward.3} parent=1 // pred_fallthru
      _
    // Predicated region
    $region18: #{adag_forward.3} parent=1 // pred_check
      _
    $region19: #{adag_forward.3} parent=1 // pred_check_branch
      %23 = sbr.rel (0) target = $region21
    $region20: #{adag_forward.3} parent=1 // pred_region
      _
    $region21: #{adag_forward.3} parent=1 // pred_fallthru
      _
    // Predicated region
    $region22: #{adag_forward.3} parent=1 // pred_check
      _
    $region23: #{adag_forward.3} parent=1 // pred_check_branch
      %25 = sbr.rel (0) target = $region25
    $region24: #{adag_forward.3} parent=1 // pred_region
      _
    $region25: #{adag_forward.3} parent=1 // pred_fallthru
      _
    // Predicated region
    $region26: #{adag_forward.3} parent=1 // pred_check
      _
    $region27: #{adag_forward.3} parent=1 // pred_check_branch
      %27 = sbr.rel (0) target = $region29
    $region28: #{adag_forward.3} parent=1 // pred_region
      _
    $region29: #{adag_forward.3} parent=1 // pred_fallthru
      _
    // Predicated region
    $region30: #{adag_forward.3} parent=1 // pred_check
      _
    $region31: #{adag_forward.3} parent=1 // pred_check_branch
      %29 = sbr.rel (0) target = $region33
    $region32: #{adag_forward.3} parent=1 // pred_region
      _
    $region33: #{adag_forward.3} parent=1 // pred_fallthru
      _
    %v30 = vld [vmem:[%s0] sm:$0xf]
    %v31 = vld [vmem:[%s0 + $0x4] sm:$0xf]
    %v32 = vunpack.c.l.bf16 %v30
    %v33 = vunpack.c.l.bf16 %v31
    %v34 = vld [vmem:[%s1] sm:$0xf]
    %v35 = vld [vmem:[%s1 + $0x4] sm:$0xf]
    %v36 = vunpack.c.l.bf16 %v34
    %v37 = vunpack.c.l.bf16 %v35
    %v38 = vld [vmem:[%s2] sm:$0xf]
    %v39 = vld [vmem:[%s2 + $0x4] sm:$0xf]
    %v40 = vld [vmem:[%s2 + $0x8] sm:$0xf]
    %v41 = vld [vmem:[%s2 + $0xc] sm:$0xf]
    %v42 = vld [vmem:[%s2 + $0x10] sm:$0xf]
    %v43 = vld [vmem:[%s2 + $0x14] sm:$0xf]
    %v44 = vld [vmem:[%s2 + $0x18] sm:$0xf]
    %v45 = vld [vmem:[%s2 + $0x1c] sm:$0xf]
    %v46 = vld [vmem:[%s2 + $0x20] sm:$0xf]
    %v47 = vld [vmem:[%s2 + $0x24] sm:$0xf]
    %v48 = vld [vmem:[%s2 + $0x28] sm:$0xf]
    %v49 = vld [vmem:[%s2 + $0x2c] sm:$0xf]
    %v50 = vld [vmem:[%s2 + $0x30] sm:$0xf]
    %v51 = vld [vmem:[%s2 + $0x34] sm:$0xf]
    %v52 = vld [vmem:[%s2 + $0x38] sm:$0xf]
    %v53 = vld [vmem:[%s2 + $0x3c] sm:$0xf]
    %v54 = vunpack.c.l.bf16 %v38
    %v55 = vunpack.c.l.bf16 %v39
    %v56 = vunpack.c.l.bf16 %v40
    %v57 = vunpack.c.l.bf16 %v41
    %v58 = vunpack.c.l.bf16 %v42
    %v59 = vunpack.c.l.bf16 %v43
    %v60 = vunpack.c.l.bf16 %v44
    %v61 = vunpack.c.l.bf16 %v45
    %v62 = vunpack.c.l.bf16 %v46
    %v63 = vunpack.c.l.bf16 %v47
    %v64 = vunpack.c.l.bf16 %v48
    %v65 = vunpack.c.l.bf16 %v49
    %v66 = vunpack.c.l.bf16 %v50
    %v67 = vunpack.c.l.bf16 %v51
    %v68 = vunpack.c.l.bf16 %v52
    %v69 = vunpack.c.l.bf16 %v53
    %v70 = vld [vmem:[%s3] sm:$0xf]
    %v71 = vld [vmem:[%s3 + $0x4] sm:$0xf]
    %v72 = vld [vmem:[%s3 + $0x8] sm:$0xf]
    %v73 = vld [vmem:[%s3 + $0xc] sm:$0xf]
    %v74 = vld [vmem:[%s3 + $0x10] sm:$0xf]
    %v75 = vld [vmem:[%s3 + $0x14] sm:$0xf]
    %v76 = vld [vmem:[%s3 + $0x18] sm:$0xf]
    %v77 = vld [vmem:[%s3 + $0x1c] sm:$0xf]
    %v78 = vld [vmem:[%s3 + $0x20] sm:$0xf]
    %v79 = vld [vmem:[%s3 + $0x24] sm:$0xf]
    %v80 = vld [vmem:[%s3 + $0x28] sm:$0xf]
    %v81 = vld [vmem:[%s3 + $0x2c] sm:$0xf]
    %v82 = vld [vmem:[%s3 + $0x30] sm:$0xf]
    %v83 = vld [vmem:[%s3 + $0x34] sm:$0xf]
    %v84 = vld [vmem:[%s3 + $0x38] sm:$0xf]
    %v85 = vld [vmem:[%s3 + $0x3c] sm:$0xf]
    %v86 = vunpack.c.l.bf16 %v70
    %v87 = vunpack.c.l.bf16 %v71
    %v88 = vunpack.c.l.bf16 %v72
    %v89 = vunpack.c.l.bf16 %v73
    %v90 = vunpack.c.l.bf16 %v74
    %v91 = vunpack.c.l.bf16 %v75
    %v92 = vunpack.c.l.bf16 %v76
    %v93 = vunpack.c.l.bf16 %v77
    %v94 = vunpack.c.l.bf16 %v78
    %v95 = vunpack.c.l.bf16 %v79
    %v96 = vunpack.c.l.bf16 %v80
    %v97 = vunpack.c.l.bf16 %v81
    %v98 = vunpack.c.l.bf16 %v82
    %v99 = vunpack.c.l.bf16 %v83
    %v100 = vunpack.c.l.bf16 %v84
    %v101 = vunpack.c.l.bf16 %v85
    %v102 = vmul.f32 %v32, %v32
    %v103 = vmul.f32 %v33, %v33
    %104 = vadd.xlane.f32.xlu0 %v102
    %v105 = vpop.xlane.xlu0 %104
    %106 = vadd.xlane.f32.xlu0 %v103
    %v107 = vpop.xlane.xlu0 %106
    %v108 = vmax.f32 %v105, 1e-16
    %v109 = vmax.f32 %v107, 1e-16
    %v110 = vrsqrt.pop %v108
    %v111 = vmul.f32 %v110, %v108
    %v112 = vmul.f32 %v111, %v110
    %v113 = vmul.f32 0.5, %v112
    %v114 = vsub.f32 1.5, %v113
    %v115 = vmul.f32 %v110, %v114
    %vm116 = vweird.f32 %v108
    %vm117 = vweird.f32 %v110
    %vm118 = vmor %vm116, %vm117
    %v119 = vsel %vm118, %v110, %v115
    %v120 = vrsqrt.pop %v109
    %v121 = vmul.f32 %v120, %v109
    %v122 = vmul.f32 %v121, %v120
    %v123 = vmul.f32 0.5, %v122
    %v124 = vsub.f32 1.5, %v123
    %v125 = vmul.f32 %v120, %v124
    %vm126 = vweird.f32 %v109
    %vm127 = vweird.f32 %v120
    %vm128 = vmor %vm126, %vm127
    %v129 = vsel %vm128, %v120, %v125
    %v132 = vrot.slane %v32, 1
    %v133 = vrot.slane %v32, 2
    %v134 = vrot.slane %v32, 3
    %v135 = vrot.slane %v32, 4
    %v136 = vrot.slane %v32, 5
    %v137 = vrot.slane %v32, 6
    %v138 = vrot.slane %v32, 7
    %v139 = vrot.slane %v33, 1
    %v140 = vrot.slane %v33, 2
    %v141 = vrot.slane %v33, 3
    %v142 = vrot.slane %v33, 4
    %v143 = vrot.slane %v33, 5
    %v144 = vrot.slane %v33, 6
    %v145 = vrot.slane %v33, 7
    %v146 = vperm.slane %v32, 0
    %v147 = vperm.slane %v132, 0
    %v148 = vperm.slane %v133, 0
    %v149 = vperm.slane %v134, 0
    %v150 = vperm.slane %v135, 0
    %v151 = vperm.slane %v136, 0
    %v152 = vperm.slane %v137, 0
    %v153 = vperm.slane %v138, 0
    %v154 = vperm.slane %v33, 0
    %v155 = vperm.slane %v139, 0
    %v156 = vperm.slane %v140, 0
    %v157 = vperm.slane %v141, 0
    %v158 = vperm.slane %v142, 0
    %v159 = vperm.slane %v143, 0
    %v160 = vperm.slane %v144, 0
    %v161 = vperm.slane %v145, 0
    %v178 = vmul.f32 %v146, %v54
    %v179 = vmul.f32 %v147, %v55
    %v180 = vmul.f32 %v148, %v56
    %v181 = vmul.f32 %v149, %v57
    %v182 = vmul.f32 %v150, %v58
    %v183 = vmul.f32 %v151, %v59
    %v184 = vmul.f32 %v152, %v60
    %v185 = vmul.f32 %v153, %v61
    %v186 = vmul.f32 %v154, %v62
    %v187 = vmul.f32 %v155, %v63
    %v188 = vmul.f32 %v156, %v64
    %v189 = vmul.f32 %v157, %v65
    %v190 = vmul.f32 %v158, %v66
    %v191 = vmul.f32 %v159, %v67
    %v192 = vmul.f32 %v160, %v68
    %v193 = vmul.f32 %v161, %v69
    %194 = vadd.xlane.f32.xlu0 %v178
    %v195 = vpop.xlane.xlu0 %194
    %196 = vadd.xlane.f32.xlu0 %v179
    %v197 = vpop.xlane.xlu0 %196
    %198 = vadd.xlane.f32.xlu0 %v180
    %v199 = vpop.xlane.xlu0 %198
    %200 = vadd.xlane.f32.xlu0 %v181
    %v201 = vpop.xlane.xlu0 %200
    %202 = vadd.xlane.f32.xlu0 %v182
    %v203 = vpop.xlane.xlu0 %202
    %204 = vadd.xlane.f32.xlu0 %v183
    %v205 = vpop.xlane.xlu0 %204
    %206 = vadd.xlane.f32.xlu0 %v184
    %v207 = vpop.xlane.xlu0 %206
    %208 = vadd.xlane.f32.xlu0 %v185
    %v209 = vpop.xlane.xlu0 %208
    %210 = vadd.xlane.f32.xlu0 %v186
    %v211 = vpop.xlane.xlu0 %210
    %212 = vadd.xlane.f32.xlu0 %v187
    %v213 = vpop.xlane.xlu0 %212
    %214 = vadd.xlane.f32.xlu0 %v188
    %v215 = vpop.xlane.xlu0 %214
    %216 = vadd.xlane.f32.xlu0 %v189
    %v217 = vpop.xlane.xlu0 %216
    %218 = vadd.xlane.f32.xlu0 %v190
    %v219 = vpop.xlane.xlu0 %218
    %220 = vadd.xlane.f32.xlu0 %v191
    %v221 = vpop.xlane.xlu0 %220
    %222 = vadd.xlane.f32.xlu0 %v192
    %v223 = vpop.xlane.xlu0 %222
    %224 = vadd.xlane.f32.xlu0 %v193
    %v225 = vpop.xlane.xlu0 %224
    %v226 = vmul.f32 %v54, %v54
    %v227 = vmul.f32 %v55, %v55
    %v228 = vmul.f32 %v56, %v56
    %v229 = vmul.f32 %v57, %v57
    %v230 = vmul.f32 %v58, %v58
    %v231 = vmul.f32 %v59, %v59
    %v232 = vmul.f32 %v60, %v60
    %v233 = vmul.f32 %v61, %v61
    %v234 = vmul.f32 %v62, %v62
    %v235 = vmul.f32 %v63, %v63
    %v236 = vmul.f32 %v64, %v64
    %v237 = vmul.f32 %v65, %v65
    %v238 = vmul.f32 %v66, %v66
    %v239 = vmul.f32 %v67, %v67
    %v240 = vmul.f32 %v68, %v68
    %v241 = vmul.f32 %v69, %v69
    %242 = vadd.xlane.f32.xlu0 %v226
    %v243 = vpop.xlane.xlu0 %242
    %244 = vadd.xlane.f32.xlu0 %v227
    %v245 = vpop.xlane.xlu0 %244
    %246 = vadd.xlane.f32.xlu0 %v228
    %v247 = vpop.xlane.xlu0 %246
    %248 = vadd.xlane.f32.xlu0 %v229
    %v249 = vpop.xlane.xlu0 %248
    %250 = vadd.xlane.f32.xlu0 %v230
    %v251 = vpop.xlane.xlu0 %250
    %252 = vadd.xlane.f32.xlu0 %v231
    %v253 = vpop.xlane.xlu0 %252
    %254 = vadd.xlane.f32.xlu0 %v232
    %v255 = vpop.xlane.xlu0 %254
    %256 = vadd.xlane.f32.xlu0 %v233
    %v257 = vpop.xlane.xlu0 %256
    %258 = vadd.xlane.f32.xlu0 %v234
    %v259 = vpop.xlane.xlu0 %258
    %260 = vadd.xlane.f32.xlu0 %v235
    %v261 = vpop.xlane.xlu0 %260
    %262 = vadd.xlane.f32.xlu0 %v236
    %v263 = vpop.xlane.xlu0 %262
    %264 = vadd.xlane.f32.xlu0 %v237
    %v265 = vpop.xlane.xlu0 %264
    %266 = vadd.xlane.f32.xlu0 %v238
    %v267 = vpop.xlane.xlu0 %266
    %268 = vadd.xlane.f32.xlu0 %v239
    %v269 = vpop.xlane.xlu0 %268
    %270 = vadd.xlane.f32.xlu0 %v240
    %v271 = vpop.xlane.xlu0 %270
    %272 = vadd.xlane.f32.xlu0 %v241
    %v273 = vpop.xlane.xlu0 %272
    %v274 = vmax.f32 %v243, 1e-16
    %v275 = vmax.f32 %v245, 1e-16
    %v276 = vmax.f32 %v247, 1e-16
    %v277 = vmax.f32 %v249, 1e-16
    %v278 = vmax.f32 %v251, 1e-16
    %v279 = vmax.f32 %v253, 1e-16
    %v280 = vmax.f32 %v255, 1e-16
    %v281 = vmax.f32 %v257, 1e-16
    %v282 = vmax.f32 %v259, 1e-16
    %v283 = vmax.f32 %v261, 1e-16
    %v284 = vmax.f32 %v263, 1e-16
    %v285 = vmax.f32 %v265, 1e-16
    %v286 = vmax.f32 %v267, 1e-16
    %v287 = vmax.f32 %v269, 1e-16
    %v288 = vmax.f32 %v271, 1e-16
    %v289 = vmax.f32 %v273, 1e-16
    %v290 = vrsqrt.pop %v274
    %v291 = vmul.f32 %v290, %v274
    %v292 = vmul.f32 %v291, %v290
    %v293 = vmul.f32 0.5, %v292
    %v294 = vsub.f32 1.5, %v293
    %v295 = vmul.f32 %v290, %v294
    %vm296 = vweird.f32 %v274
    %vm297 = vweird.f32 %v290
    %vm298 = vmor %vm296, %vm297
    %v299 = vsel %vm298, %v290, %v295
    %v300 = vrsqrt.pop %v275
    %v301 = vmul.f32 %v300, %v275
    %v302 = vmul.f32 %v301, %v300
    %v303 = vmul.f32 0.5, %v302
    %v304 = vsub.f32 1.5, %v303
    %v305 = vmul.f32 %v300, %v304
    %vm306 = vweird.f32 %v275
    %vm307 = vweird.f32 %v300
    %vm308 = vmor %vm306, %vm307
    %v309 = vsel %vm308, %v300, %v305
    %v310 = vrsqrt.pop %v276
    %v311 = vmul.f32 %v310, %v276
    %v312 = vmul.f32 %v311, %v310
    %v313 = vmul.f32 0.5, %v312
    %v314 = vsub.f32 1.5, %v313
    %v315 = vmul.f32 %v310, %v314
    %vm316 = vweird.f32 %v276
    %vm317 = vweird.f32 %v310
    %vm318 = vmor %vm316, %vm317
    %v319 = vsel %vm318, %v310, %v315
    %v320 = vrsqrt.pop %v277
    %v321 = vmul.f32 %v320, %v277
    %v322 = vmul.f32 %v321, %v320
    %v323 = vmul.f32 0.5, %v322
    %v324 = vsub.f32 1.5, %v323
    %v325 = vmul.f32 %v320, %v324
    %vm326 = vweird.f32 %v277
    %vm327 = vweird.f32 %v320
    %vm328 = vmor %vm326, %vm327
    %v329 = vsel %vm328, %v320, %v325
    %v330 = vrsqrt.pop %v278
    %v331 = vmul.f32 %v330, %v278
    %v332 = vmul.f32 %v331, %v330
    %v333 = vmul.f32 0.5, %v332
    %v334 = vsub.f32 1.5, %v333
    %v335 = vmul.f32 %v330, %v334
    %vm336 = vweird.f32 %v278
    %vm337 = vweird.f32 %v330
    %vm338 = vmor %vm336, %vm337
    %v339 = vsel %vm338, %v330, %v335
    %v340 = vrsqrt.pop %v279
    %v341 = vmul.f32 %v340, %v279
    %v342 = vmul.f32 %v341, %v340
    %v343 = vmul.f32 0.5, %v342
    %v344 = vsub.f32 1.5, %v343
    %v345 = vmul.f32 %v340, %v344
    %vm346 = vweird.f32 %v279
    %vm347 = vweird.f32 %v340
    %vm348 = vmor %vm346, %vm347
    %v349 = vsel %vm348, %v340, %v345
    %v350 = vrsqrt.pop %v280
    %v351 = vmul.f32 %v350, %v280
    %v352 = vmul.f32 %v351, %v350
    %v353 = vmul.f32 0.5, %v352
    %v354 = vsub.f32 1.5, %v353
    %v355 = vmul.f32 %v350, %v354
    %vm356 = vweird.f32 %v280
    %vm357 = vweird.f32 %v350
    %vm358 = vmor %vm356, %vm357
    %v359 = vsel %vm358, %v350, %v355
    %v360 = vrsqrt.pop %v281
    %v361 = vmul.f32 %v360, %v281
    %v362 = vmul.f32 %v361, %v360
    %v363 = vmul.f32 0.5, %v362
    %v364 = vsub.f32 1.5, %v363
    %v365 = vmul.f32 %v360, %v364
    %vm366 = vweird.f32 %v281
    %vm367 = vweird.f32 %v360
    %vm368 = vmor %vm366, %vm367
    %v369 = vsel %vm368, %v360, %v365
    %v370 = vrsqrt.pop %v282
    %v371 = vmul.f32 %v370, %v282
    %v372 = vmul.f32 %v371, %v370
    %v373 = vmul.f32 0.5, %v372
    %v374 = vsub.f32 1.5, %v373
    %v375 = vmul.f32 %v370, %v374
    %vm376 = vweird.f32 %v282
    %vm377 = vweird.f32 %v370
    %vm378 = vmor %vm376, %vm377
    %v379 = vsel %vm378, %v370, %v375
    %v380 = vrsqrt.pop %v283
    %v381 = vmul.f32 %v380, %v283
    %v382 = vmul.f32 %v381, %v380
    %v383 = vmul.f32 0.5, %v382
    %v384 = vsub.f32 1.5, %v383
    %v385 = vmul.f32 %v380, %v384
    %vm386 = vweird.f32 %v283
    %vm387 = vweird.f32 %v380
    %vm388 = vmor %vm386, %vm387
    %v389 = vsel %vm388, %v380, %v385
    %v390 = vrsqrt.pop %v284
    %v391 = vmul.f32 %v390, %v284
    %v392 = vmul.f32 %v391, %v390
    %v393 = vmul.f32 0.5, %v392
    %v394 = vsub.f32 1.5, %v393
    %v395 = vmul.f32 %v390, %v394
    %vm396 = vweird.f32 %v284
    %vm397 = vweird.f32 %v390
    %vm398 = vmor %vm396, %vm397
    %v399 = vsel %vm398, %v390, %v395
    %v400 = vrsqrt.pop %v285
    %v401 = vmul.f32 %v400, %v285
    %v402 = vmul.f32 %v401, %v400
    %v403 = vmul.f32 0.5, %v402
    %v404 = vsub.f32 1.5, %v403
    %v405 = vmul.f32 %v400, %v404
    %vm406 = vweird.f32 %v285
    %vm407 = vweird.f32 %v400
    %vm408 = vmor %vm406, %vm407
    %v409 = vsel %vm408, %v400, %v405
    %v410 = vrsqrt.pop %v286
    %v411 = vmul.f32 %v410, %v286
    %v412 = vmul.f32 %v411, %v410
    %v413 = vmul.f32 0.5, %v412
    %v414 = vsub.f32 1.5, %v413
    %v415 = vmul.f32 %v410, %v414
    %vm416 = vweird.f32 %v286
    %vm417 = vweird.f32 %v410
    %vm418 = vmor %vm416, %vm417
    %v419 = vsel %vm418, %v410, %v415
    %v420 = vrsqrt.pop %v287
    %v421 = vmul.f32 %v420, %v287
    %v422 = vmul.f32 %v421, %v420
    %v423 = vmul.f32 0.5, %v422
    %v424 = vsub.f32 1.5, %v423
    %v425 = vmul.f32 %v420, %v424
    %vm426 = vweird.f32 %v287
    %vm427 = vweird.f32 %v420
    %vm428 = vmor %vm426, %vm427
    %v429 = vsel %vm428, %v420, %v425
    %v430 = vrsqrt.pop %v288
    %v431 = vmul.f32 %v430, %v288
    %v432 = vmul.f32 %v431, %v430
    %v433 = vmul.f32 0.5, %v432
    %v434 = vsub.f32 1.5, %v433
    %v435 = vmul.f32 %v430, %v434
    %vm436 = vweird.f32 %v288
    %vm437 = vweird.f32 %v430
    %vm438 = vmor %vm436, %vm437
    %v439 = vsel %vm438, %v430, %v435
    %v440 = vrsqrt.pop %v289
    %v441 = vmul.f32 %v440, %v289
    %v442 = vmul.f32 %v441, %v440
    %v443 = vmul.f32 0.5, %v442
    %v444 = vsub.f32 1.5, %v443
    %v445 = vmul.f32 %v440, %v444
    %vm446 = vweird.f32 %v289
    %vm447 = vweird.f32 %v440
    %vm448 = vmor %vm446, %vm447
    %v449 = vsel %vm448, %v440, %v445
    %v452 = vperm.slane %v119, 0
    %v453 = vperm.slane %v119, 1
    %v454 = vperm.slane %v119, 2
    %v455 = vperm.slane %v119, 3
    %v456 = vperm.slane %v119, 4
    %v457 = vperm.slane %v119, 5
    %v458 = vperm.slane %v119, 6
    %v459 = vperm.slane %v119, 7
    %v460 = vperm.slane %v129, 0
    %v461 = vperm.slane %v129, 1
    %v462 = vperm.slane %v129, 2
    %v463 = vperm.slane %v129, 3
    %v464 = vperm.slane %v129, 4
    %v465 = vperm.slane %v129, 5
    %v466 = vperm.slane %v129, 6
    %v467 = vperm.slane %v129, 7
    %v484 = vmul.f32 %v195, %v452
    %v485 = vmul.f32 %v197, %v453
    %v486 = vmul.f32 %v199, %v454
    %v487 = vmul.f32 %v201, %v455
    %v488 = vmul.f32 %v203, %v456
    %v489 = vmul.f32 %v205, %v457
    %v490 = vmul.f32 %v207, %v458
    %v491 = vmul.f32 %v209, %v459
    %v492 = vmul.f32 %v211, %v460
    %v493 = vmul.f32 %v213, %v461
    %v494 = vmul.f32 %v215, %v462
    %v495 = vmul.f32 %v217, %v463
    %v496 = vmul.f32 %v219, %v464
    %v497 = vmul.f32 %v221, %v465
    %v498 = vmul.f32 %v223, %v466
    %v499 = vmul.f32 %v225, %v467
    %v500 = vmul.f32 %v484, %v299
    %v501 = vmul.f32 %v485, %v309
    %v502 = vmul.f32 %v486, %v319
    %v503 = vmul.f32 %v487, %v329
    %v504 = vmul.f32 %v488, %v339
    %v505 = vmul.f32 %v489, %v349
    %v506 = vmul.f32 %v490, %v359
    %v507 = vmul.f32 %v491, %v369
    %v508 = vmul.f32 %v492, %v379
    %v509 = vmul.f32 %v493, %v389
    %v510 = vmul.f32 %v494, %v399
    %v511 = vmul.f32 %v495, %v409
    %v512 = vmul.f32 %v496, %v419
    %v513 = vmul.f32 %v497, %v429
    %v514 = vmul.f32 %v498, %v439
    %v515 = vmul.f32 %v499, %v449
    %532 = vset.pattern.permute.xlu0 0
    %533 = vperm.xlu0 %532, %v500
    %v534 = vpop.permute.xlu0 %533
    %535 = vset.pattern.permute.xlu0 0
    %536 = vperm.xlu0 %535, %v501
    %v537 = vpop.permute.xlu0 %536
    %538 = vset.pattern.permute.xlu0 0
    %539 = vperm.xlu0 %538, %v502
    %v540 = vpop.permute.xlu0 %539
    %541 = vset.pattern.permute.xlu0 0
    %542 = vperm.xlu0 %541, %v503
    %v543 = vpop.permute.xlu0 %542
    %544 = vset.pattern.permute.xlu0 0
    %545 = vperm.xlu0 %544, %v504
    %v546 = vpop.permute.xlu0 %545
    %547 = vset.pattern.permute.xlu0 0
    %548 = vperm.xlu0 %547, %v505
    %v549 = vpop.permute.xlu0 %548
    %550 = vset.pattern.permute.xlu0 0
    %551 = vperm.xlu0 %550, %v506
    %v552 = vpop.permute.xlu0 %551
    %553 = vset.pattern.permute.xlu0 0
    %554 = vperm.xlu0 %553, %v507
    %v555 = vpop.permute.xlu0 %554
    %556 = vset.pattern.permute.xlu0 0
    %557 = vperm.xlu0 %556, %v508
    %v558 = vpop.permute.xlu0 %557
    %559 = vset.pattern.permute.xlu0 0
    %560 = vperm.xlu0 %559, %v509
    %v561 = vpop.permute.xlu0 %560
    %562 = vset.pattern.permute.xlu0 0
    %563 = vperm.xlu0 %562, %v510
    %v564 = vpop.permute.xlu0 %563
    %565 = vset.pattern.permute.xlu0 0
    %566 = vperm.xlu0 %565, %v511
    %v567 = vpop.permute.xlu0 %566
    %568 = vset.pattern.permute.xlu0 0
    %569 = vperm.xlu0 %568, %v512
    %v570 = vpop.permute.xlu0 %569
    %571 = vset.pattern.permute.xlu0 0
    %572 = vperm.xlu0 %571, %v513
    %v573 = vpop.permute.xlu0 %572
    %574 = vset.pattern.permute.xlu0 0
    %575 = vperm.xlu0 %574, %v514
    %v576 = vpop.permute.xlu0 %575
    %577 = vset.pattern.permute.xlu0 0
    %578 = vperm.xlu0 %577, %v515
    %v579 = vpop.permute.xlu0 %578
    %v580 = vlaneseq
    %v581 = vand.u32 %v580, 127
    %v582 = vperm.slane %v534, %v581
    %v583 = vperm.slane %v537, %v581
    %v584 = vperm.slane %v540, %v581
    %v585 = vperm.slane %v543, %v581
    %v586 = vperm.slane %v546, %v581
    %v587 = vperm.slane %v549, %v581
    %v588 = vperm.slane %v552, %v581
    %v589 = vperm.slane %v555, %v581
    %v590 = vperm.slane %v558, %v581
    %v591 = vperm.slane %v561, %v581
    %v592 = vperm.slane %v564, %v581
    %v593 = vperm.slane %v567, %v581
    %v594 = vperm.slane %v570, %v581
    %v595 = vperm.slane %v573, %v581
    %v596 = vperm.slane %v576, %v581
    %v597 = vperm.slane %v579, %v581
    %vm598 = vcmask 1041409
    %v599 = vsel %vm598, %v583, %v582
    %vm600 = vcmask 1042434
    %v601 = vsel %vm600, %v584, %v599
    %vm602 = vcmask 1043459
    %v603 = vsel %vm602, %v585, %v601
    %vm604 = vcmask 1044484
    %v605 = vsel %vm604, %v586, %v603
    %vm606 = vcmask 1045509
    %v607 = vsel %vm606, %v587, %v605
    %vm608 = vcmask 1046534
    %v609 = vsel %vm608, %v588, %v607
    %vm610 = vcmask 1047559
    %v611 = vsel %vm610, %v589, %v609
    %v612 = vsel %vm598, %v591, %v590
    %v613 = vsel %vm600, %v592, %v612
    %v614 = vsel %vm602, %v593, %v613
    %v615 = vsel %vm604, %v594, %v614
    %v616 = vsel %vm606, %v595, %v615
    %v617 = vsel %vm608, %v596, %v616
    %v618 = vsel %vm610, %v597, %v617
    %vm621 = vcmask 64512
    %v622 = vsel %vm621, %v611, -inf
    %623 = vmax.xlane.f32.xlu0 %v622
    %v624 = vpop.xlane.xlu0 %623
    %v625 = vsel %vm621, %v618, -inf
    %626 = vmax.xlane.f32.xlu0 %v625
    %v627 = vpop.xlane.xlu0 %626
    %v630 = vperm.slane %v624, 0
    %v631 = vperm.slane %v624, 1
    %v632 = vperm.slane %v624, 2
    %v633 = vperm.slane %v624, 3
    %v634 = vperm.slane %v624, 4
    %v635 = vperm.slane %v624, 5
    %v636 = vperm.slane %v624, 6
    %v637 = vperm.slane %v624, 7
    %v638 = vperm.slane %v627, 0
    %v639 = vperm.slane %v627, 1
    %v640 = vperm.slane %v627, 2
    %v641 = vperm.slane %v627, 3
    %v642 = vperm.slane %v627, 4
    %v643 = vperm.slane %v627, 5
    %v644 = vperm.slane %v627, 6
    %v645 = vperm.slane %v627, 7
    %v662 = vsub.f32 %v500, %v630
    %v663 = vsub.f32 %v501, %v631
    %v664 = vsub.f32 %v502, %v632
    %v665 = vsub.f32 %v503, %v633
    %v666 = vsub.f32 %v504, %v634
    %v667 = vsub.f32 %v505, %v635
    %v668 = vsub.f32 %v506, %v636
    %v669 = vsub.f32 %v507, %v637
    %v670 = vsub.f32 %v508, %v638
    %v671 = vsub.f32 %v509, %v639
    %v672 = vsub.f32 %v510, %v640
    %v673 = vsub.f32 %v511, %v641
    %v674 = vsub.f32 %v512, %v642
    %v675 = vsub.f32 %v513, %v643
    %v676 = vsub.f32 %v514, %v644
    %v677 = vsub.f32 %v515, %v645
    %v678 = vmul.f32 %v662, 1.442695
    %v679 = vpow.pop %v678
    %v680 = vmul.f32 %v663, 1.442695
    %v681 = vpow.pop %v680
    %v682 = vmul.f32 %v664, 1.442695
    %v683 = vpow.pop %v682
    %v684 = vmul.f32 %v665, 1.442695
    %v685 = vpow.pop %v684
    %v686 = vmul.f32 %v666, 1.442695
    %v687 = vpow.pop %v686
    %v688 = vmul.f32 %v667, 1.442695
    %v689 = vpow.pop %v688
    %v690 = vmul.f32 %v668, 1.442695
    %v691 = vpow.pop %v690
    %v692 = vmul.f32 %v669, 1.442695
    %v693 = vpow.pop %v692
    %v694 = vmul.f32 %v670, 1.442695
    %v695 = vpow.pop %v694
    %v696 = vmul.f32 %v671, 1.442695
    %v697 = vpow.pop %v696
    %v698 = vmul.f32 %v672, 1.442695
    %v699 = vpow.pop %v698
    %v700 = vmul.f32 %v673, 1.442695
    %v701 = vpow.pop %v700
    %v702 = vmul.f32 %v674, 1.442695
    %v703 = vpow.pop %v702
    %v704 = vmul.f32 %v675, 1.442695
    %v705 = vpow.pop %v704
    %v706 = vmul.f32 %v676, 1.442695
    %v707 = vpow.pop %v706
    %v708 = vmul.f32 %v677, 1.442695
    %v709 = vpow.pop %v708
    %726 = vset.pattern.permute.xlu0 0
    %727 = vperm.xlu0 %726, %v679
    %v728 = vpop.permute.xlu0 %727
    %729 = vset.pattern.permute.xlu0 0
    %730 = vperm.xlu0 %729, %v681
    %v731 = vpop.permute.xlu0 %730
    %732 = vset.pattern.permute.xlu0 0
    %733 = vperm.xlu0 %732, %v683
    %v734 = vpop.permute.xlu0 %733
    %735 = vset.pattern.permute.xlu0 0
    %736 = vperm.xlu0 %735, %v685
    %v737 = vpop.permute.xlu0 %736
    %738 = vset.pattern.permute.xlu0 0
    %739 = vperm.xlu0 %738, %v687
    %v740 = vpop.permute.xlu0 %739
    %741 = vset.pattern.permute.xlu0 0
    %742 = vperm.xlu0 %741, %v689
    %v743 = vpop.permute.xlu0 %742
    %744 = vset.pattern.permute.xlu0 0
    %745 = vperm.xlu0 %744, %v691
    %v746 = vpop.permute.xlu0 %745
    %747 = vset.pattern.permute.xlu0 0
    %748 = vperm.xlu0 %747, %v693
    %v749 = vpop.permute.xlu0 %748
    %750 = vset.pattern.permute.xlu0 0
    %751 = vperm.xlu0 %750, %v695
    %v752 = vpop.permute.xlu0 %751
    %753 = vset.pattern.permute.xlu0 0
    %754 = vperm.xlu0 %753, %v697
    %v755 = vpop.permute.xlu0 %754
    %756 = vset.pattern.permute.xlu0 0
    %757 = vperm.xlu0 %756, %v699
    %v758 = vpop.permute.xlu0 %757
    %759 = vset.pattern.permute.xlu0 0
    %760 = vperm.xlu0 %759, %v701
    %v761 = vpop.permute.xlu0 %760
    %762 = vset.pattern.permute.xlu0 0
    %763 = vperm.xlu0 %762, %v703
    %v764 = vpop.permute.xlu0 %763
    %765 = vset.pattern.permute.xlu0 0
    %766 = vperm.xlu0 %765, %v705
    %v767 = vpop.permute.xlu0 %766
    %768 = vset.pattern.permute.xlu0 0
    %769 = vperm.xlu0 %768, %v707
    %v770 = vpop.permute.xlu0 %769
    %771 = vset.pattern.permute.xlu0 0
    %772 = vperm.xlu0 %771, %v709
    %v773 = vpop.permute.xlu0 %772
    %v774 = vperm.slane %v728, %v581
    %v775 = vperm.slane %v731, %v581
    %v776 = vperm.slane %v734, %v581
    %v777 = vperm.slane %v737, %v581
    %v778 = vperm.slane %v740, %v581
    %v779 = vperm.slane %v743, %v581
    %v780 = vperm.slane %v746, %v581
    %v781 = vperm.slane %v749, %v581
    %v782 = vperm.slane %v752, %v581
    %v783 = vperm.slane %v755, %v581
    %v784 = vperm.slane %v758, %v581
    %v785 = vperm.slane %v761, %v581
    %v786 = vperm.slane %v764, %v581
    %v787 = vperm.slane %v767, %v581
    %v788 = vperm.slane %v770, %v581
    %v789 = vperm.slane %v773, %v581
    %v790 = vsel %vm598, %v775, %v774
    %v791 = vsel %vm600, %v776, %v790
    %v792 = vsel %vm602, %v777, %v791
    %v793 = vsel %vm604, %v778, %v792
    %v794 = vsel %vm606, %v779, %v793
    %v795 = vsel %vm608, %v780, %v794
    %v796 = vsel %vm610, %v781, %v795
    %v797 = vsel %vm598, %v783, %v782
    %v798 = vsel %vm600, %v784, %v797
    %v799 = vsel %vm602, %v785, %v798
    %v800 = vsel %vm604, %v786, %v799
    %v801 = vsel %vm606, %v787, %v800
    %v802 = vsel %vm608, %v788, %v801
    %v803 = vsel %vm610, %v789, %v802
    %v806 = vsel %vm621, %v796, 0.0
    %807 = vadd.xlane.f32.xlu0 %v806
    %v808 = vpop.xlane.xlu0 %807
    %v809 = vsel %vm621, %v803, 0.0
    %810 = vadd.xlane.f32.xlu0 %v809
    %v811 = vpop.xlane.xlu0 %810
    %v812 = vrcp.pop %v808
    %v813 = vrcp.pop %v811
    %v816 = vperm.slane %v812, 0
    %v817 = vperm.slane %v812, 1
    %v818 = vperm.slane %v812, 2
    %v819 = vperm.slane %v812, 3
    %v820 = vperm.slane %v812, 4
    %v821 = vperm.slane %v812, 5
    %v822 = vperm.slane %v812, 6
    %v823 = vperm.slane %v812, 7
    %v824 = vperm.slane %v813, 0
    %v825 = vperm.slane %v813, 1
    %v826 = vperm.slane %v813, 2
    %v827 = vperm.slane %v813, 3
    %v828 = vperm.slane %v813, 4
    %v829 = vperm.slane %v813, 5
    %v830 = vperm.slane %v813, 6
    %v831 = vperm.slane %v813, 7
    %v848 = vmul.f32 %v679, %v816
    %v849 = vmul.f32 %v681, %v817
    %v850 = vmul.f32 %v683, %v818
    %v851 = vmul.f32 %v685, %v819
    %v852 = vmul.f32 %v687, %v820
    %v853 = vmul.f32 %v689, %v821
    %v854 = vmul.f32 %v691, %v822
    %v855 = vmul.f32 %v693, %v823
    %v856 = vmul.f32 %v695, %v824
    %v857 = vmul.f32 %v697, %v825
    %v858 = vmul.f32 %v699, %v826
    %v859 = vmul.f32 %v701, %v827
    %v860 = vmul.f32 %v703, %v828
    %v861 = vmul.f32 %v705, %v829
    %v862 = vmul.f32 %v707, %v830
    %v863 = vmul.f32 %v709, %v831
    %865 = vset.pattern.permute.xlu0 0
    %866 = vperm.xlu0 %865, %v848
    %v867 = vpop.permute.xlu0 %866
    %870 = vset.pattern.permute.xlu0 0
    %871 = vperm.xlu0 %870, %v849
    %v872 = vpop.permute.xlu0 %871
    %875 = vset.pattern.permute.xlu0 0
    %876 = vperm.xlu0 %875, %v850
    %v877 = vpop.permute.xlu0 %876
    %880 = vset.pattern.permute.xlu0 0
    %881 = vperm.xlu0 %880, %v851
    %v882 = vpop.permute.xlu0 %881
    %885 = vset.pattern.permute.xlu0 0
    %886 = vperm.xlu0 %885, %v852
    %v887 = vpop.permute.xlu0 %886
    %890 = vset.pattern.permute.xlu0 0
    %891 = vperm.xlu0 %890, %v853
    %v892 = vpop.permute.xlu0 %891
    %895 = vset.pattern.permute.xlu0 0
    %896 = vperm.xlu0 %895, %v854
    %v897 = vpop.permute.xlu0 %896
    %900 = vset.pattern.permute.xlu0 0
    %901 = vperm.xlu0 %900, %v855
    %v902 = vpop.permute.xlu0 %901
    %905 = vset.pattern.permute.xlu0 0
    %906 = vperm.xlu0 %905, %v856
    %v907 = vpop.permute.xlu0 %906
    %910 = vset.pattern.permute.xlu0 0
    %911 = vperm.xlu0 %910, %v857
    %v912 = vpop.permute.xlu0 %911
    %915 = vset.pattern.permute.xlu0 0
    %916 = vperm.xlu0 %915, %v858
    %v917 = vpop.permute.xlu0 %916
    %920 = vset.pattern.permute.xlu0 0
    %921 = vperm.xlu0 %920, %v859
    %v922 = vpop.permute.xlu0 %921
    %925 = vset.pattern.permute.xlu0 0
    %926 = vperm.xlu0 %925, %v860
    %v927 = vpop.permute.xlu0 %926
    %930 = vset.pattern.permute.xlu0 0
    %931 = vperm.xlu0 %930, %v861
    %v932 = vpop.permute.xlu0 %931
    %935 = vset.pattern.permute.xlu0 0
    %936 = vperm.xlu0 %935, %v862
    %v937 = vpop.permute.xlu0 %936
    %940 = vset.pattern.permute.xlu0 0
    %941 = vperm.xlu0 %940, %v863
    %v942 = vpop.permute.xlu0 %941
    %v944 = vmul.f32 %v867, %v54
    %v945 = vmul.f32 %v872, %v55
    %v946 = vmul.f32 %v877, %v56
    %v947 = vmul.f32 %v882, %v57
    %v948 = vmul.f32 %v887, %v58
    %v949 = vmul.f32 %v892, %v59
    %v950 = vmul.f32 %v897, %v60
    %v951 = vmul.f32 %v902, %v61
    %v952 = vmul.f32 %v907, %v62
    %v953 = vmul.f32 %v912, %v63
    %v954 = vmul.f32 %v917, %v64
    %v955 = vmul.f32 %v922, %v65
    %v956 = vmul.f32 %v927, %v66
    %v957 = vmul.f32 %v932, %v67
    %v958 = vmul.f32 %v937, %v68
    %v959 = vmul.f32 %v942, %v69
    %v960 = vrot.slane %v944, 4
    %v961 = vadd.f32 %v944, %v960
    %v962 = vrot.slane %v961, 2
    %v963 = vadd.f32 %v961, %v962
    %v964 = vrot.slane %v963, 1
    %v965 = vadd.f32 %v963, %v964
    %v966 = vrot.slane %v945, 4
    %v967 = vadd.f32 %v945, %v966
    %v968 = vrot.slane %v967, 2
    %v969 = vadd.f32 %v967, %v968
    %v970 = vrot.slane %v969, 1
    %v971 = vadd.f32 %v969, %v970
    %v972 = vrot.slane %v946, 4
    %v973 = vadd.f32 %v946, %v972
    %v974 = vrot.slane %v973, 2
    %v975 = vadd.f32 %v973, %v974
    %v976 = vrot.slane %v975, 1
    %v977 = vadd.f32 %v975, %v976
    %v978 = vrot.slane %v947, 4
    %v979 = vadd.f32 %v947, %v978
    %v980 = vrot.slane %v979, 2
    %v981 = vadd.f32 %v979, %v980
    %v982 = vrot.slane %v981, 1
    %v983 = vadd.f32 %v981, %v982
    %v984 = vrot.slane %v948, 4
    %v985 = vadd.f32 %v948, %v984
    %v986 = vrot.slane %v985, 2
    %v987 = vadd.f32 %v985, %v986
    %v988 = vrot.slane %v987, 1
    %v989 = vadd.f32 %v987, %v988
    %v990 = vrot.slane %v949, 4
    %v991 = vadd.f32 %v949, %v990
    %v992 = vrot.slane %v991, 2
    %v993 = vadd.f32 %v991, %v992
    %v994 = vrot.slane %v993, 1
    %v995 = vadd.f32 %v993, %v994
    %v996 = vrot.slane %v950, 4
    %v997 = vadd.f32 %v950, %v996
    %v998 = vrot.slane %v997, 2
    %v999 = vadd.f32 %v997, %v998
    %v1000 = vrot.slane %v999, 1
    %v1001 = vadd.f32 %v999, %v1000
    %v1002 = vrot.slane %v951, 4
    %v1003 = vadd.f32 %v951, %v1002
    %v1004 = vrot.slane %v1003, 2
    %v1005 = vadd.f32 %v1003, %v1004
    %v1006 = vrot.slane %v1005, 1
    %v1007 = vadd.f32 %v1005, %v1006
    %v1008 = vrot.slane %v952, 4
    %v1009 = vadd.f32 %v952, %v1008
    %v1010 = vrot.slane %v1009, 2
    %v1011 = vadd.f32 %v1009, %v1010
    %v1012 = vrot.slane %v1011, 1
    %v1013 = vadd.f32 %v1011, %v1012
    %v1014 = vrot.slane %v953, 4
    %v1015 = vadd.f32 %v953, %v1014
    %v1016 = vrot.slane %v1015, 2
    %v1017 = vadd.f32 %v1015, %v1016
    %v1018 = vrot.slane %v1017, 1
    %v1019 = vadd.f32 %v1017, %v1018
    %v1020 = vrot.slane %v954, 4
    %v1021 = vadd.f32 %v954, %v1020
    %v1022 = vrot.slane %v1021, 2
    %v1023 = vadd.f32 %v1021, %v1022
    %v1024 = vrot.slane %v1023, 1
    %v1025 = vadd.f32 %v1023, %v1024
    %v1026 = vrot.slane %v955, 4
    %v1027 = vadd.f32 %v955, %v1026
    %v1028 = vrot.slane %v1027, 2
    %v1029 = vadd.f32 %v1027, %v1028
    %v1030 = vrot.slane %v1029, 1
    %v1031 = vadd.f32 %v1029, %v1030
    %v1032 = vrot.slane %v956, 4
    %v1033 = vadd.f32 %v956, %v1032
    %v1034 = vrot.slane %v1033, 2
    %v1035 = vadd.f32 %v1033, %v1034
    %v1036 = vrot.slane %v1035, 1
    %v1037 = vadd.f32 %v1035, %v1036
    %v1038 = vrot.slane %v957, 4
    %v1039 = vadd.f32 %v957, %v1038
    %v1040 = vrot.slane %v1039, 2
    %v1041 = vadd.f32 %v1039, %v1040
    %v1042 = vrot.slane %v1041, 1
    %v1043 = vadd.f32 %v1041, %v1042
    %v1044 = vrot.slane %v958, 4
    %v1045 = vadd.f32 %v958, %v1044
    %v1046 = vrot.slane %v1045, 2
    %v1047 = vadd.f32 %v1045, %v1046
    %v1048 = vrot.slane %v1047, 1
    %v1049 = vadd.f32 %v1047, %v1048
    %v1050 = vrot.slane %v959, 4
    %v1051 = vadd.f32 %v959, %v1050
    %v1052 = vrot.slane %v1051, 2
    %v1053 = vadd.f32 %v1051, %v1052
    %v1054 = vrot.slane %v1053, 1
    %v1055 = vadd.f32 %v1053, %v1054
    %v1056 = vmul.f32 %v146, %v86
    %v1057 = vmul.f32 %v147, %v87
    %v1058 = vmul.f32 %v148, %v88
    %v1059 = vmul.f32 %v149, %v89
    %v1060 = vmul.f32 %v150, %v90
    %v1061 = vmul.f32 %v151, %v91
    %v1062 = vmul.f32 %v152, %v92
    %v1063 = vmul.f32 %v153, %v93
    %v1064 = vmul.f32 %v154, %v94
    %v1065 = vmul.f32 %v155, %v95
    %v1066 = vmul.f32 %v156, %v96
    %v1067 = vmul.f32 %v157, %v97
    %v1068 = vmul.f32 %v158, %v98
    %v1069 = vmul.f32 %v159, %v99
    %v1070 = vmul.f32 %v160, %v100
    %v1071 = vmul.f32 %v161, %v101
    %1072 = vadd.xlane.f32.xlu0 %v1056
    %v1073 = vpop.xlane.xlu0 %1072
    %1074 = vadd.xlane.f32.xlu0 %v1057
    %v1075 = vpop.xlane.xlu0 %1074
    %1076 = vadd.xlane.f32.xlu0 %v1058
    %v1077 = vpop.xlane.xlu0 %1076
    %1078 = vadd.xlane.f32.xlu0 %v1059
    %v1079 = vpop.xlane.xlu0 %1078
    %1080 = vadd.xlane.f32.xlu0 %v1060
    %v1081 = vpop.xlane.xlu0 %1080
    %1082 = vadd.xlane.f32.xlu0 %v1061
    %v1083 = vpop.xlane.xlu0 %1082
    %1084 = vadd.xlane.f32.xlu0 %v1062
    %v1085 = vpop.xlane.xlu0 %1084
    %1086 = vadd.xlane.f32.xlu0 %v1063
    %v1087 = vpop.xlane.xlu0 %1086
    %1088 = vadd.xlane.f32.xlu0 %v1064
    %v1089 = vpop.xlane.xlu0 %1088
    %1090 = vadd.xlane.f32.xlu0 %v1065
    %v1091 = vpop.xlane.xlu0 %1090
    %1092 = vadd.xlane.f32.xlu0 %v1066
    %v1093 = vpop.xlane.xlu0 %1092
    %1094 = vadd.xlane.f32.xlu0 %v1067
    %v1095 = vpop.xlane.xlu0 %1094
    %1096 = vadd.xlane.f32.xlu0 %v1068
    %v1097 = vpop.xlane.xlu0 %1096
    %1098 = vadd.xlane.f32.xlu0 %v1069
    %v1099 = vpop.xlane.xlu0 %1098
    %1100 = vadd.xlane.f32.xlu0 %v1070
    %v1101 = vpop.xlane.xlu0 %1100
    %1102 = vadd.xlane.f32.xlu0 %v1071
    %v1103 = vpop.xlane.xlu0 %1102
    %v1104 = vmul.f32 %v86, %v86
    %v1105 = vmul.f32 %v87, %v87
    %v1106 = vmul.f32 %v88, %v88
    %v1107 = vmul.f32 %v89, %v89
    %v1108 = vmul.f32 %v90, %v90
    %v1109 = vmul.f32 %v91, %v91
    %v1110 = vmul.f32 %v92, %v92
    %v1111 = vmul.f32 %v93, %v93
    %v1112 = vmul.f32 %v94, %v94
    %v1113 = vmul.f32 %v95, %v95
    %v1114 = vmul.f32 %v96, %v96
    %v1115 = vmul.f32 %v97, %v97
    %v1116 = vmul.f32 %v98, %v98
    %v1117 = vmul.f32 %v99, %v99
    %v1118 = vmul.f32 %v100, %v100
    %v1119 = vmul.f32 %v101, %v101
    %1120 = vadd.xlane.f32.xlu0 %v1104
    %v1121 = vpop.xlane.xlu0 %1120
    %1122 = vadd.xlane.f32.xlu0 %v1105
    %v1123 = vpop.xlane.xlu0 %1122
    %1124 = vadd.xlane.f32.xlu0 %v1106
    %v1125 = vpop.xlane.xlu0 %1124
    %1126 = vadd.xlane.f32.xlu0 %v1107
    %v1127 = vpop.xlane.xlu0 %1126
    %1128 = vadd.xlane.f32.xlu0 %v1108
    %v1129 = vpop.xlane.xlu0 %1128
    %1130 = vadd.xlane.f32.xlu0 %v1109
    %v1131 = vpop.xlane.xlu0 %1130
    %1132 = vadd.xlane.f32.xlu0 %v1110
    %v1133 = vpop.xlane.xlu0 %1132
    %1134 = vadd.xlane.f32.xlu0 %v1111
    %v1135 = vpop.xlane.xlu0 %1134
    %1136 = vadd.xlane.f32.xlu0 %v1112
    %v1137 = vpop.xlane.xlu0 %1136
    %1138 = vadd.xlane.f32.xlu0 %v1113
    %v1139 = vpop.xlane.xlu0 %1138
    %1140 = vadd.xlane.f32.xlu0 %v1114
    %v1141 = vpop.xlane.xlu0 %1140
    %1142 = vadd.xlane.f32.xlu0 %v1115
    %v1143 = vpop.xlane.xlu0 %1142
    %1144 = vadd.xlane.f32.xlu0 %v1116
    %v1145 = vpop.xlane.xlu0 %1144
    %1146 = vadd.xlane.f32.xlu0 %v1117
    %v1147 = vpop.xlane.xlu0 %1146
    %1148 = vadd.xlane.f32.xlu0 %v1118
    %v1149 = vpop.xlane.xlu0 %1148
    %1150 = vadd.xlane.f32.xlu0 %v1119
    %v1151 = vpop.xlane.xlu0 %1150
    %v1152 = vmax.f32 %v1121, 1e-16
    %v1153 = vmax.f32 %v1123, 1e-16
    %v1154 = vmax.f32 %v1125, 1e-16
    %v1155 = vmax.f32 %v1127, 1e-16
    %v1156 = vmax.f32 %v1129, 1e-16
    %v1157 = vmax.f32 %v1131, 1e-16
    %v1158 = vmax.f32 %v1133, 1e-16
    %v1159 = vmax.f32 %v1135, 1e-16
    %v1160 = vmax.f32 %v1137, 1e-16
    %v1161 = vmax.f32 %v1139, 1e-16
    %v1162 = vmax.f32 %v1141, 1e-16
    %v1163 = vmax.f32 %v1143, 1e-16
    %v1164 = vmax.f32 %v1145, 1e-16
    %v1165 = vmax.f32 %v1147, 1e-16
    %v1166 = vmax.f32 %v1149, 1e-16
    %v1167 = vmax.f32 %v1151, 1e-16
    %v1168 = vrsqrt.pop %v1152
    %v1169 = vmul.f32 %v1168, %v1152
    %v1170 = vmul.f32 %v1169, %v1168
    %v1171 = vmul.f32 0.5, %v1170
    %v1172 = vsub.f32 1.5, %v1171
    %v1173 = vmul.f32 %v1168, %v1172
    %vm1174 = vweird.f32 %v1152
    %vm1175 = vweird.f32 %v1168
    %vm1176 = vmor %vm1174, %vm1175
    %v1177 = vsel %vm1176, %v1168, %v1173
    %v1178 = vrsqrt.pop %v1153
    %v1179 = vmul.f32 %v1178, %v1153
    %v1180 = vmul.f32 %v1179, %v1178
    %v1181 = vmul.f32 0.5, %v1180
    %v1182 = vsub.f32 1.5, %v1181
    %v1183 = vmul.f32 %v1178, %v1182
    %vm1184 = vweird.f32 %v1153
    %vm1185 = vweird.f32 %v1178
    %vm1186 = vmor %vm1184, %vm1185
    %v1187 = vsel %vm1186, %v1178, %v1183
    %v1188 = vrsqrt.pop %v1154
    %v1189 = vmul.f32 %v1188, %v1154
    %v1190 = vmul.f32 %v1189, %v1188
    %v1191 = vmul.f32 0.5, %v1190
    %v1192 = vsub.f32 1.5, %v1191
    %v1193 = vmul.f32 %v1188, %v1192
    %vm1194 = vweird.f32 %v1154
    %vm1195 = vweird.f32 %v1188
    %vm1196 = vmor %vm1194, %vm1195
    %v1197 = vsel %vm1196, %v1188, %v1193
    %v1198 = vrsqrt.pop %v1155
    %v1199 = vmul.f32 %v1198, %v1155
    %v1200 = vmul.f32 %v1199, %v1198
    %v1201 = vmul.f32 0.5, %v1200
    %v1202 = vsub.f32 1.5, %v1201
    %v1203 = vmul.f32 %v1198, %v1202
    %vm1204 = vweird.f32 %v1155
    %vm1205 = vweird.f32 %v1198
    %vm1206 = vmor %vm1204, %vm1205
    %v1207 = vsel %vm1206, %v1198, %v1203
    %v1208 = vrsqrt.pop %v1156
    %v1209 = vmul.f32 %v1208, %v1156
    %v1210 = vmul.f32 %v1209, %v1208
    %v1211 = vmul.f32 0.5, %v1210
    %v1212 = vsub.f32 1.5, %v1211
    %v1213 = vmul.f32 %v1208, %v1212
    %vm1214 = vweird.f32 %v1156
    %vm1215 = vweird.f32 %v1208
    %vm1216 = vmor %vm1214, %vm1215
    %v1217 = vsel %vm1216, %v1208, %v1213
    %v1218 = vrsqrt.pop %v1157
    %v1219 = vmul.f32 %v1218, %v1157
    %v1220 = vmul.f32 %v1219, %v1218
    %v1221 = vmul.f32 0.5, %v1220
    %v1222 = vsub.f32 1.5, %v1221
    %v1223 = vmul.f32 %v1218, %v1222
    %vm1224 = vweird.f32 %v1157
    %vm1225 = vweird.f32 %v1218
    %vm1226 = vmor %vm1224, %vm1225
    %v1227 = vsel %vm1226, %v1218, %v1223
    %v1228 = vrsqrt.pop %v1158
    %v1229 = vmul.f32 %v1228, %v1158
    %v1230 = vmul.f32 %v1229, %v1228
    %v1231 = vmul.f32 0.5, %v1230
    %v1232 = vsub.f32 1.5, %v1231
    %v1233 = vmul.f32 %v1228, %v1232
    %vm1234 = vweird.f32 %v1158
    %vm1235 = vweird.f32 %v1228
    %vm1236 = vmor %vm1234, %vm1235
    %v1237 = vsel %vm1236, %v1228, %v1233
    %v1238 = vrsqrt.pop %v1159
    %v1239 = vmul.f32 %v1238, %v1159
    %v1240 = vmul.f32 %v1239, %v1238
    %v1241 = vmul.f32 0.5, %v1240
    %v1242 = vsub.f32 1.5, %v1241
    %v1243 = vmul.f32 %v1238, %v1242
    %vm1244 = vweird.f32 %v1159
    %vm1245 = vweird.f32 %v1238
    %vm1246 = vmor %vm1244, %vm1245
    %v1247 = vsel %vm1246, %v1238, %v1243
    %v1248 = vrsqrt.pop %v1160
    %v1249 = vmul.f32 %v1248, %v1160
    %v1250 = vmul.f32 %v1249, %v1248
    %v1251 = vmul.f32 0.5, %v1250
    %v1252 = vsub.f32 1.5, %v1251
    %v1253 = vmul.f32 %v1248, %v1252
    %vm1254 = vweird.f32 %v1160
    %vm1255 = vweird.f32 %v1248
    %vm1256 = vmor %vm1254, %vm1255
    %v1257 = vsel %vm1256, %v1248, %v1253
    %v1258 = vrsqrt.pop %v1161
    %v1259 = vmul.f32 %v1258, %v1161
    %v1260 = vmul.f32 %v1259, %v1258
    %v1261 = vmul.f32 0.5, %v1260
    %v1262 = vsub.f32 1.5, %v1261
    %v1263 = vmul.f32 %v1258, %v1262
    %vm1264 = vweird.f32 %v1161
    %vm1265 = vweird.f32 %v1258
    %vm1266 = vmor %vm1264, %vm1265
    %v1267 = vsel %vm1266, %v1258, %v1263
    %v1268 = vrsqrt.pop %v1162
    %v1269 = vmul.f32 %v1268, %v1162
    %v1270 = vmul.f32 %v1269, %v1268
    %v1271 = vmul.f32 0.5, %v1270
    %v1272 = vsub.f32 1.5, %v1271
    %v1273 = vmul.f32 %v1268, %v1272
    %vm1274 = vweird.f32 %v1162
    %vm1275 = vweird.f32 %v1268
    %vm1276 = vmor %vm1274, %vm1275
    %v1277 = vsel %vm1276, %v1268, %v1273
    %v1278 = vrsqrt.pop %v1163
    %v1279 = vmul.f32 %v1278, %v1163
    %v1280 = vmul.f32 %v1279, %v1278
    %v1281 = vmul.f32 0.5, %v1280
    %v1282 = vsub.f32 1.5, %v1281
    %v1283 = vmul.f32 %v1278, %v1282
    %vm1284 = vweird.f32 %v1163
    %vm1285 = vweird.f32 %v1278
    %vm1286 = vmor %vm1284, %vm1285
    %v1287 = vsel %vm1286, %v1278, %v1283
    %v1288 = vrsqrt.pop %v1164
    %v1289 = vmul.f32 %v1288, %v1164
    %v1290 = vmul.f32 %v1289, %v1288
    %v1291 = vmul.f32 0.5, %v1290
    %v1292 = vsub.f32 1.5, %v1291
    %v1293 = vmul.f32 %v1288, %v1292
    %vm1294 = vweird.f32 %v1164
    %vm1295 = vweird.f32 %v1288
    %vm1296 = vmor %vm1294, %vm1295
    %v1297 = vsel %vm1296, %v1288, %v1293
    %v1298 = vrsqrt.pop %v1165
    %v1299 = vmul.f32 %v1298, %v1165
    %v1300 = vmul.f32 %v1299, %v1298
    %v1301 = vmul.f32 0.5, %v1300
    %v1302 = vsub.f32 1.5, %v1301
    %v1303 = vmul.f32 %v1298, %v1302
    %vm1304 = vweird.f32 %v1165
    %vm1305 = vweird.f32 %v1298
    %vm1306 = vmor %vm1304, %vm1305
    %v1307 = vsel %vm1306, %v1298, %v1303
    %v1308 = vrsqrt.pop %v1166
    %v1309 = vmul.f32 %v1308, %v1166
    %v1310 = vmul.f32 %v1309, %v1308
    %v1311 = vmul.f32 0.5, %v1310
    %v1312 = vsub.f32 1.5, %v1311
    %v1313 = vmul.f32 %v1308, %v1312
    %vm1314 = vweird.f32 %v1166
    %vm1315 = vweird.f32 %v1308
    %vm1316 = vmor %vm1314, %vm1315
    %v1317 = vsel %vm1316, %v1308, %v1313
    %v1318 = vrsqrt.pop %v1167
    %v1319 = vmul.f32 %v1318, %v1167
    %v1320 = vmul.f32 %v1319, %v1318
    %v1321 = vmul.f32 0.5, %v1320
    %v1322 = vsub.f32 1.5, %v1321
    %v1323 = vmul.f32 %v1318, %v1322
    %vm1324 = vweird.f32 %v1167
    %vm1325 = vweird.f32 %v1318
    %vm1326 = vmor %vm1324, %vm1325
    %v1327 = vsel %vm1326, %v1318, %v1323
    %v1328 = vmul.f32 %v1073, %v452
    %v1329 = vmul.f32 %v1075, %v453
    %v1330 = vmul.f32 %v1077, %v454
    %v1331 = vmul.f32 %v1079, %v455
    %v1332 = vmul.f32 %v1081, %v456
    %v1333 = vmul.f32 %v1083, %v457
    %v1334 = vmul.f32 %v1085, %v458
    %v1335 = vmul.f32 %v1087, %v459
    %v1336 = vmul.f32 %v1089, %v460
    %v1337 = vmul.f32 %v1091, %v461
    %v1338 = vmul.f32 %v1093, %v462
    %v1339 = vmul.f32 %v1095, %v463
    %v1340 = vmul.f32 %v1097, %v464
    %v1341 = vmul.f32 %v1099, %v465
    %v1342 = vmul.f32 %v1101, %v466
    %v1343 = vmul.f32 %v1103, %v467
    %v1344 = vmul.f32 %v1328, %v1177
    %v1345 = vmul.f32 %v1329, %v1187
    %v1346 = vmul.f32 %v1330, %v1197
    %v1347 = vmul.f32 %v1331, %v1207
    %v1348 = vmul.f32 %v1332, %v1217
    %v1349 = vmul.f32 %v1333, %v1227
    %v1350 = vmul.f32 %v1334, %v1237
    %v1351 = vmul.f32 %v1335, %v1247
    %v1352 = vmul.f32 %v1336, %v1257
    %v1353 = vmul.f32 %v1337, %v1267
    %v1354 = vmul.f32 %v1338, %v1277
    %v1355 = vmul.f32 %v1339, %v1287
    %v1356 = vmul.f32 %v1340, %v1297
    %v1357 = vmul.f32 %v1341, %v1307
    %v1358 = vmul.f32 %v1342, %v1317
    %v1359 = vmul.f32 %v1343, %v1327
    %1376 = vset.pattern.permute.xlu0 0
    %1377 = vperm.xlu0 %1376, %v1344
    %v1378 = vpop.permute.xlu0 %1377
    %1379 = vset.pattern.permute.xlu0 0
    %1380 = vperm.xlu0 %1379, %v1345
    %v1381 = vpop.permute.xlu0 %1380
    %1382 = vset.pattern.permute.xlu0 0
    %1383 = vperm.xlu0 %1382, %v1346
    %v1384 = vpop.permute.xlu0 %1383
    %1385 = vset.pattern.permute.xlu0 0
    %1386 = vperm.xlu0 %1385, %v1347
    %v1387 = vpop.permute.xlu0 %1386
    %1388 = vset.pattern.permute.xlu0 0
    %1389 = vperm.xlu0 %1388, %v1348
    %v1390 = vpop.permute.xlu0 %1389
    %1391 = vset.pattern.permute.xlu0 0
    %1392 = vperm.xlu0 %1391, %v1349
    %v1393 = vpop.permute.xlu0 %1392
    %1394 = vset.pattern.permute.xlu0 0
    %1395 = vperm.xlu0 %1394, %v1350
    %v1396 = vpop.permute.xlu0 %1395
    %1397 = vset.pattern.permute.xlu0 0
    %1398 = vperm.xlu0 %1397, %v1351
    %v1399 = vpop.permute.xlu0 %1398
    %1400 = vset.pattern.permute.xlu0 0
    %1401 = vperm.xlu0 %1400, %v1352
    %v1402 = vpop.permute.xlu0 %1401
    %1403 = vset.pattern.permute.xlu0 0
    %1404 = vperm.xlu0 %1403, %v1353
    %v1405 = vpop.permute.xlu0 %1404
    %1406 = vset.pattern.permute.xlu0 0
    %1407 = vperm.xlu0 %1406, %v1354
    %v1408 = vpop.permute.xlu0 %1407
    %1409 = vset.pattern.permute.xlu0 0
    %1410 = vperm.xlu0 %1409, %v1355
    %v1411 = vpop.permute.xlu0 %1410
    %1412 = vset.pattern.permute.xlu0 0
    %1413 = vperm.xlu0 %1412, %v1356
    %v1414 = vpop.permute.xlu0 %1413
    %1415 = vset.pattern.permute.xlu0 0
    %1416 = vperm.xlu0 %1415, %v1357
    %v1417 = vpop.permute.xlu0 %1416
    %1418 = vset.pattern.permute.xlu0 0
    %1419 = vperm.xlu0 %1418, %v1358
    %v1420 = vpop.permute.xlu0 %1419
    %1421 = vset.pattern.permute.xlu0 0
    %1422 = vperm.xlu0 %1421, %v1359
    %v1423 = vpop.permute.xlu0 %1422
    %v1424 = vperm.slane %v1378, %v581
    %v1425 = vperm.slane %v1381, %v581
    %v1426 = vperm.slane %v1384, %v581
    %v1427 = vperm.slane %v1387, %v581
    %v1428 = vperm.slane %v1390, %v581
    %v1429 = vperm.slane %v1393, %v581
    %v1430 = vperm.slane %v1396, %v581
    %v1431 = vperm.slane %v1399, %v581
    %v1432 = vperm.slane %v1402, %v581
    %v1433 = vperm.slane %v1405, %v581
    %v1434 = vperm.slane %v1408, %v581
    %v1435 = vperm.slane %v1411, %v581
    %v1436 = vperm.slane %v1414, %v581
    %v1437 = vperm.slane %v1417, %v581
    %v1438 = vperm.slane %v1420, %v581
    %v1439 = vperm.slane %v1423, %v581
    %v1440 = vsel %vm598, %v1425, %v1424
    %v1441 = vsel %vm600, %v1426, %v1440
    %v1442 = vsel %vm602, %v1427, %v1441
    %v1443 = vsel %vm604, %v1428, %v1442
    %v1444 = vsel %vm606, %v1429, %v1443
    %v1445 = vsel %vm608, %v1430, %v1444
    %v1446 = vsel %vm610, %v1431, %v1445
    %v1447 = vsel %vm598, %v1433, %v1432
    %v1448 = vsel %vm600, %v1434, %v1447
    %v1449 = vsel %vm602, %v1435, %v1448
    %v1450 = vsel %vm604, %v1436, %v1449
    %v1451 = vsel %vm606, %v1437, %v1450
    %v1452 = vsel %vm608, %v1438, %v1451
    %v1453 = vsel %vm610, %v1439, %v1452
    %v1456 = vsel %vm621, %v1446, -inf
    %1457 = vmax.xlane.f32.xlu0 %v1456
    %v1458 = vpop.xlane.xlu0 %1457
    %v1459 = vsel %vm621, %v1453, -inf
    %1460 = vmax.xlane.f32.xlu0 %v1459
    %v1461 = vpop.xlane.xlu0 %1460
    %v1464 = vperm.slane %v1458, 0
    %v1465 = vperm.slane %v1458, 1
    %v1466 = vperm.slane %v1458, 2
    %v1467 = vperm.slane %v1458, 3
    %v1468 = vperm.slane %v1458, 4
    %v1469 = vperm.slane %v1458, 5
    %v1470 = vperm.slane %v1458, 6
    %v1471 = vperm.slane %v1458, 7
    %v1472 = vperm.slane %v1461, 0
    %v1473 = vperm.slane %v1461, 1
    %v1474 = vperm.slane %v1461, 2
    %v1475 = vperm.slane %v1461, 3
    %v1476 = vperm.slane %v1461, 4
    %v1477 = vperm.slane %v1461, 5
    %v1478 = vperm.slane %v1461, 6
    %v1479 = vperm.slane %v1461, 7
    %v1496 = vsub.f32 %v1344, %v1464
    %v1497 = vsub.f32 %v1345, %v1465
    %v1498 = vsub.f32 %v1346, %v1466
    %v1499 = vsub.f32 %v1347, %v1467
    %v1500 = vsub.f32 %v1348, %v1468
    %v1501 = vsub.f32 %v1349, %v1469
    %v1502 = vsub.f32 %v1350, %v1470
    %v1503 = vsub.f32 %v1351, %v1471
    %v1504 = vsub.f32 %v1352, %v1472
    %v1505 = vsub.f32 %v1353, %v1473
    %v1506 = vsub.f32 %v1354, %v1474
    %v1507 = vsub.f32 %v1355, %v1475
    %v1508 = vsub.f32 %v1356, %v1476
    %v1509 = vsub.f32 %v1357, %v1477
    %v1510 = vsub.f32 %v1358, %v1478
    %v1511 = vsub.f32 %v1359, %v1479
    %v1512 = vmul.f32 %v1496, 1.442695
    %v1513 = vpow.pop %v1512
    %v1514 = vmul.f32 %v1497, 1.442695
    %v1515 = vpow.pop %v1514
    %v1516 = vmul.f32 %v1498, 1.442695
    %v1517 = vpow.pop %v1516
    %v1518 = vmul.f32 %v1499, 1.442695
    %v1519 = vpow.pop %v1518
    %v1520 = vmul.f32 %v1500, 1.442695
    %v1521 = vpow.pop %v1520
    %v1522 = vmul.f32 %v1501, 1.442695
    %v1523 = vpow.pop %v1522
    %v1524 = vmul.f32 %v1502, 1.442695
    %v1525 = vpow.pop %v1524
    %v1526 = vmul.f32 %v1503, 1.442695
    %v1527 = vpow.pop %v1526
    %v1528 = vmul.f32 %v1504, 1.442695
    %v1529 = vpow.pop %v1528
    %v1530 = vmul.f32 %v1505, 1.442695
    %v1531 = vpow.pop %v1530
    %v1532 = vmul.f32 %v1506, 1.442695
    %v1533 = vpow.pop %v1532
    %v1534 = vmul.f32 %v1507, 1.442695
    %v1535 = vpow.pop %v1534
    %v1536 = vmul.f32 %v1508, 1.442695
    %v1537 = vpow.pop %v1536
    %v1538 = vmul.f32 %v1509, 1.442695
    %v1539 = vpow.pop %v1538
    %v1540 = vmul.f32 %v1510, 1.442695
    %v1541 = vpow.pop %v1540
    %v1542 = vmul.f32 %v1511, 1.442695
    %v1543 = vpow.pop %v1542
    %1560 = vset.pattern.permute.xlu0 0
    %1561 = vperm.xlu0 %1560, %v1513
    %v1562 = vpop.permute.xlu0 %1561
    %1563 = vset.pattern.permute.xlu0 0
    %1564 = vperm.xlu0 %1563, %v1515
    %v1565 = vpop.permute.xlu0 %1564
    %1566 = vset.pattern.permute.xlu0 0
    %1567 = vperm.xlu0 %1566, %v1517
    %v1568 = vpop.permute.xlu0 %1567
    %1569 = vset.pattern.permute.xlu0 0
    %1570 = vperm.xlu0 %1569, %v1519
    %v1571 = vpop.permute.xlu0 %1570
    %1572 = vset.pattern.permute.xlu0 0
    %1573 = vperm.xlu0 %1572, %v1521
    %v1574 = vpop.permute.xlu0 %1573
    %1575 = vset.pattern.permute.xlu0 0
    %1576 = vperm.xlu0 %1575, %v1523
    %v1577 = vpop.permute.xlu0 %1576
    %1578 = vset.pattern.permute.xlu0 0
    %1579 = vperm.xlu0 %1578, %v1525
    %v1580 = vpop.permute.xlu0 %1579
    %1581 = vset.pattern.permute.xlu0 0
    %1582 = vperm.xlu0 %1581, %v1527
    %v1583 = vpop.permute.xlu0 %1582
    %1584 = vset.pattern.permute.xlu0 0
    %1585 = vperm.xlu0 %1584, %v1529
    %v1586 = vpop.permute.xlu0 %1585
    %1587 = vset.pattern.permute.xlu0 0
    %1588 = vperm.xlu0 %1587, %v1531
    %v1589 = vpop.permute.xlu0 %1588
    %1590 = vset.pattern.permute.xlu0 0
    %1591 = vperm.xlu0 %1590, %v1533
    %v1592 = vpop.permute.xlu0 %1591
    %1593 = vset.pattern.permute.xlu0 0
    %1594 = vperm.xlu0 %1593, %v1535
    %v1595 = vpop.permute.xlu0 %1594
    %1596 = vset.pattern.permute.xlu0 0
    %1597 = vperm.xlu0 %1596, %v1537
    %v1598 = vpop.permute.xlu0 %1597
    %1599 = vset.pattern.permute.xlu0 0
    %1600 = vperm.xlu0 %1599, %v1539
    %v1601 = vpop.permute.xlu0 %1600
    %1602 = vset.pattern.permute.xlu0 0
    %1603 = vperm.xlu0 %1602, %v1541
    %v1604 = vpop.permute.xlu0 %1603
    %1605 = vset.pattern.permute.xlu0 0
    %1606 = vperm.xlu0 %1605, %v1543
    %v1607 = vpop.permute.xlu0 %1606
    %v1608 = vperm.slane %v1562, %v581
    %v1609 = vperm.slane %v1565, %v581
    %v1610 = vperm.slane %v1568, %v581
    %v1611 = vperm.slane %v1571, %v581
    %v1612 = vperm.slane %v1574, %v581
    %v1613 = vperm.slane %v1577, %v581
    %v1614 = vperm.slane %v1580, %v581
    %v1615 = vperm.slane %v1583, %v581
    %v1616 = vperm.slane %v1586, %v581
    %v1617 = vperm.slane %v1589, %v581
    %v1618 = vperm.slane %v1592, %v581
    %v1619 = vperm.slane %v1595, %v581
    %v1620 = vperm.slane %v1598, %v581
    %v1621 = vperm.slane %v1601, %v581
    %v1622 = vperm.slane %v1604, %v581
    %v1623 = vperm.slane %v1607, %v581
    %v1624 = vsel %vm598, %v1609, %v1608
    %v1625 = vsel %vm600, %v1610, %v1624
    %v1626 = vsel %vm602, %v1611, %v1625
    %v1627 = vsel %vm604, %v1612, %v1626
    %v1628 = vsel %vm606, %v1613, %v1627
    %v1629 = vsel %vm608, %v1614, %v1628
    %v1630 = vsel %vm610, %v1615, %v1629
    %v1631 = vsel %vm598, %v1617, %v1616
    %v1632 = vsel %vm600, %v1618, %v1631
    %v1633 = vsel %vm602, %v1619, %v1632
    %v1634 = vsel %vm604, %v1620, %v1633
    %v1635 = vsel %vm606, %v1621, %v1634
    %v1636 = vsel %vm608, %v1622, %v1635
    %v1637 = vsel %vm610, %v1623, %v1636
    %v1640 = vsel %vm621, %v1630, 0.0
    %1641 = vadd.xlane.f32.xlu0 %v1640
    %v1642 = vpop.xlane.xlu0 %1641
    %v1643 = vsel %vm621, %v1637, 0.0
    %1644 = vadd.xlane.f32.xlu0 %v1643
    %v1645 = vpop.xlane.xlu0 %1644
    %v1646 = vrcp.pop %v1642
    %v1647 = vrcp.pop %v1645
    %v1650 = vperm.slane %v1646, 0
    %v1651 = vperm.slane %v1646, 1
    %v1652 = vperm.slane %v1646, 2
    %v1653 = vperm.slane %v1646, 3
    %v1654 = vperm.slane %v1646, 4
    %v1655 = vperm.slane %v1646, 5
    %v1656 = vperm.slane %v1646, 6
    %v1657 = vperm.slane %v1646, 7
    %v1658 = vperm.slane %v1647, 0
    %v1659 = vperm.slane %v1647, 1
    %v1660 = vperm.slane %v1647, 2
    %v1661 = vperm.slane %v1647, 3
    %v1662 = vperm.slane %v1647, 4
    %v1663 = vperm.slane %v1647, 5
    %v1664 = vperm.slane %v1647, 6
    %v1665 = vperm.slane %v1647, 7
    %v1682 = vmul.f32 %v1513, %v1650
    %v1683 = vmul.f32 %v1515, %v1651
    %v1684 = vmul.f32 %v1517, %v1652
    %v1685 = vmul.f32 %v1519, %v1653
    %v1686 = vmul.f32 %v1521, %v1654
    %v1687 = vmul.f32 %v1523, %v1655
    %v1688 = vmul.f32 %v1525, %v1656
    %v1689 = vmul.f32 %v1527, %v1657
    %v1690 = vmul.f32 %v1529, %v1658
    %v1691 = vmul.f32 %v1531, %v1659
    %v1692 = vmul.f32 %v1533, %v1660
    %v1693 = vmul.f32 %v1535, %v1661
    %v1694 = vmul.f32 %v1537, %v1662
    %v1695 = vmul.f32 %v1539, %v1663
    %v1696 = vmul.f32 %v1541, %v1664
    %v1697 = vmul.f32 %v1543, %v1665
    %1699 = vset.pattern.permute.xlu0 0
    %1700 = vperm.xlu0 %1699, %v1682
    %v1701 = vpop.permute.xlu0 %1700
    %1704 = vset.pattern.permute.xlu0 0
    %1705 = vperm.xlu0 %1704, %v1683
    %v1706 = vpop.permute.xlu0 %1705
    %1709 = vset.pattern.permute.xlu0 0
    %1710 = vperm.xlu0 %1709, %v1684
    %v1711 = vpop.permute.xlu0 %1710
    %1714 = vset.pattern.permute.xlu0 0
    %1715 = vperm.xlu0 %1714, %v1685
    %v1716 = vpop.permute.xlu0 %1715
    %1719 = vset.pattern.permute.xlu0 0
    %1720 = vperm.xlu0 %1719, %v1686
    %v1721 = vpop.permute.xlu0 %1720
    %1724 = vset.pattern.permute.xlu0 0
    %1725 = vperm.xlu0 %1724, %v1687
    %v1726 = vpop.permute.xlu0 %1725
    %1729 = vset.pattern.permute.xlu0 0
    %1730 = vperm.xlu0 %1729, %v1688
    %v1731 = vpop.permute.xlu0 %1730
    %1734 = vset.pattern.permute.xlu0 0
    %1735 = vperm.xlu0 %1734, %v1689
    %v1736 = vpop.permute.xlu0 %1735
    %1739 = vset.pattern.permute.xlu0 0
    %1740 = vperm.xlu0 %1739, %v1690
    %v1741 = vpop.permute.xlu0 %1740
    %1744 = vset.pattern.permute.xlu0 0
    %1745 = vperm.xlu0 %1744, %v1691
    %v1746 = vpop.permute.xlu0 %1745
    %1749 = vset.pattern.permute.xlu0 0
    %1750 = vperm.xlu0 %1749, %v1692
    %v1751 = vpop.permute.xlu0 %1750
    %1754 = vset.pattern.permute.xlu0 0
    %1755 = vperm.xlu0 %1754, %v1693
    %v1756 = vpop.permute.xlu0 %1755
    %1759 = vset.pattern.permute.xlu0 0
    %1760 = vperm.xlu0 %1759, %v1694
    %v1761 = vpop.permute.xlu0 %1760
    %1764 = vset.pattern.permute.xlu0 0
    %1765 = vperm.xlu0 %1764, %v1695
    %v1766 = vpop.permute.xlu0 %1765
    %1769 = vset.pattern.permute.xlu0 0
    %1770 = vperm.xlu0 %1769, %v1696
    %v1771 = vpop.permute.xlu0 %1770
    %1774 = vset.pattern.permute.xlu0 0
    %1775 = vperm.xlu0 %1774, %v1697
    %v1776 = vpop.permute.xlu0 %1775
    %v1778 = vmul.f32 %v1701, %v86
    %v1779 = vmul.f32 %v1706, %v87
    %v1780 = vmul.f32 %v1711, %v88
    %v1781 = vmul.f32 %v1716, %v89
    %v1782 = vmul.f32 %v1721, %v90
    %v1783 = vmul.f32 %v1726, %v91
    %v1784 = vmul.f32 %v1731, %v92
    %v1785 = vmul.f32 %v1736, %v93
    %v1786 = vmul.f32 %v1741, %v94
    %v1787 = vmul.f32 %v1746, %v95
    %v1788 = vmul.f32 %v1751, %v96
    %v1789 = vmul.f32 %v1756, %v97
    %v1790 = vmul.f32 %v1761, %v98
    %v1791 = vmul.f32 %v1766, %v99
    %v1792 = vmul.f32 %v1771, %v100
    %v1793 = vmul.f32 %v1776, %v101
    %v1794 = vrot.slane %v1778, 4
    %v1795 = vadd.f32 %v1778, %v1794
    %v1796 = vrot.slane %v1795, 2
    %v1797 = vadd.f32 %v1795, %v1796
    %v1798 = vrot.slane %v1797, 1
    %v1799 = vadd.f32 %v1797, %v1798
    %v1800 = vrot.slane %v1779, 4
    %v1801 = vadd.f32 %v1779, %v1800
    %v1802 = vrot.slane %v1801, 2
    %v1803 = vadd.f32 %v1801, %v1802
    %v1804 = vrot.slane %v1803, 1
    %v1805 = vadd.f32 %v1803, %v1804
    %v1806 = vrot.slane %v1780, 4
    %v1807 = vadd.f32 %v1780, %v1806
    %v1808 = vrot.slane %v1807, 2
    %v1809 = vadd.f32 %v1807, %v1808
    %v1810 = vrot.slane %v1809, 1
    %v1811 = vadd.f32 %v1809, %v1810
    %v1812 = vrot.slane %v1781, 4
    %v1813 = vadd.f32 %v1781, %v1812
    %v1814 = vrot.slane %v1813, 2
    %v1815 = vadd.f32 %v1813, %v1814
    %v1816 = vrot.slane %v1815, 1
    %v1817 = vadd.f32 %v1815, %v1816
    %v1818 = vrot.slane %v1782, 4
    %v1819 = vadd.f32 %v1782, %v1818
    %v1820 = vrot.slane %v1819, 2
    %v1821 = vadd.f32 %v1819, %v1820
    %v1822 = vrot.slane %v1821, 1
    %v1823 = vadd.f32 %v1821, %v1822
    %v1824 = vrot.slane %v1783, 4
    %v1825 = vadd.f32 %v1783, %v1824
    %v1826 = vrot.slane %v1825, 2
    %v1827 = vadd.f32 %v1825, %v1826
    %v1828 = vrot.slane %v1827, 1
    %v1829 = vadd.f32 %v1827, %v1828
    %v1830 = vrot.slane %v1784, 4
    %v1831 = vadd.f32 %v1784, %v1830
    %v1832 = vrot.slane %v1831, 2
    %v1833 = vadd.f32 %v1831, %v1832
    %v1834 = vrot.slane %v1833, 1
    %v1835 = vadd.f32 %v1833, %v1834
    %v1836 = vrot.slane %v1785, 4
    %v1837 = vadd.f32 %v1785, %v1836
    %v1838 = vrot.slane %v1837, 2
    %v1839 = vadd.f32 %v1837, %v1838
    %v1840 = vrot.slane %v1839, 1
    %v1841 = vadd.f32 %v1839, %v1840
    %v1842 = vrot.slane %v1786, 4
    %v1843 = vadd.f32 %v1786, %v1842
    %v1844 = vrot.slane %v1843, 2
    %v1845 = vadd.f32 %v1843, %v1844
    %v1846 = vrot.slane %v1845, 1
    %v1847 = vadd.f32 %v1845, %v1846
    %v1848 = vrot.slane %v1787, 4
    %v1849 = vadd.f32 %v1787, %v1848
    %v1850 = vrot.slane %v1849, 2
    %v1851 = vadd.f32 %v1849, %v1850
    %v1852 = vrot.slane %v1851, 1
    %v1853 = vadd.f32 %v1851, %v1852
    %v1854 = vrot.slane %v1788, 4
    %v1855 = vadd.f32 %v1788, %v1854
    %v1856 = vrot.slane %v1855, 2
    %v1857 = vadd.f32 %v1855, %v1856
    %v1858 = vrot.slane %v1857, 1
    %v1859 = vadd.f32 %v1857, %v1858
    %v1860 = vrot.slane %v1789, 4
    %v1861 = vadd.f32 %v1789, %v1860
    %v1862 = vrot.slane %v1861, 2
    %v1863 = vadd.f32 %v1861, %v1862
    %v1864 = vrot.slane %v1863, 1
    %v1865 = vadd.f32 %v1863, %v1864
    %v1866 = vrot.slane %v1790, 4
    %v1867 = vadd.f32 %v1790, %v1866
    %v1868 = vrot.slane %v1867, 2
    %v1869 = vadd.f32 %v1867, %v1868
    %v1870 = vrot.slane %v1869, 1
    %v1871 = vadd.f32 %v1869, %v1870
    %v1872 = vrot.slane %v1791, 4
    %v1873 = vadd.f32 %v1791, %v1872
    %v1874 = vrot.slane %v1873, 2
    %v1875 = vadd.f32 %v1873, %v1874
    %v1876 = vrot.slane %v1875, 1
    %v1877 = vadd.f32 %v1875, %v1876
    %v1878 = vrot.slane %v1792, 4
    %v1879 = vadd.f32 %v1792, %v1878
    %v1880 = vrot.slane %v1879, 2
    %v1881 = vadd.f32 %v1879, %v1880
    %v1882 = vrot.slane %v1881, 1
    %v1883 = vadd.f32 %v1881, %v1882
    %v1884 = vrot.slane %v1793, 4
    %v1885 = vadd.f32 %v1793, %v1884
    %v1886 = vrot.slane %v1885, 2
    %v1887 = vadd.f32 %v1885, %v1886
    %v1888 = vrot.slane %v1887, 1
    %v1889 = vadd.f32 %v1887, %v1888
    %v1890 = vld [vmem:[%s4] sm:$0xff]
    %v1891 = vld [vmem:[%s4 + $0x8] sm:$0xff]
    %v1892 = vmul.f32 %v1890, 0.1
    %v1893 = vmul.f32 %v1891, 0.1
    %v1894 = vadd.f32 %v32, %v1892
    %v1895 = vadd.f32 %v33, %v1893
    %v1896 = vld [vmem:[%s5] sm:$0xff]
    %v1897 = vld [vmem:[%s5 + $0x8] sm:$0xff]
    %v1898 = vmul.f32 %v1896, 0.1
    %v1899 = vmul.f32 %v1897, 0.1
    %v1902 = vrot.slane %v1898, 1
    %v1903 = vrot.slane %v1898, 2
    %v1904 = vrot.slane %v1898, 3
    %v1905 = vrot.slane %v1898, 4
    %v1906 = vrot.slane %v1898, 5
    %v1907 = vrot.slane %v1898, 6
    %v1908 = vrot.slane %v1898, 7
    %v1909 = vrot.slane %v1899, 1
    %v1910 = vrot.slane %v1899, 2
    %v1911 = vrot.slane %v1899, 3
    %v1912 = vrot.slane %v1899, 4
    %v1913 = vrot.slane %v1899, 5
    %v1914 = vrot.slane %v1899, 6
    %v1915 = vrot.slane %v1899, 7
    %v1932 = vadd.f32 %v965, %v1898
    %v1933 = vadd.f32 %v971, %v1902
    %v1934 = vadd.f32 %v977, %v1903
    %v1935 = vadd.f32 %v983, %v1904
    %v1936 = vadd.f32 %v989, %v1905
    %v1937 = vadd.f32 %v995, %v1906
    %v1938 = vadd.f32 %v1001, %v1907
    %v1939 = vadd.f32 %v1007, %v1908
    %v1940 = vadd.f32 %v1013, %v1899
    %v1941 = vadd.f32 %v1019, %v1909
    %v1942 = vadd.f32 %v1025, %v1910
    %v1943 = vadd.f32 %v1031, %v1911
    %v1944 = vadd.f32 %v1037, %v1912
    %v1945 = vadd.f32 %v1043, %v1913
    %v1946 = vadd.f32 %v1049, %v1914
    %v1947 = vadd.f32 %v1055, %v1915
    %v1964 = vsel %vm598, %v971, %v965
    %v1965 = vsel %vm600, %v977, %v1964
    %v1966 = vsel %vm602, %v983, %v1965
    %v1967 = vsel %vm604, %v989, %v1966
    %v1968 = vsel %vm606, %v995, %v1967
    %v1969 = vsel %vm608, %v1001, %v1968
    %v1970 = vsel %vm610, %v1007, %v1969
    %v1971 = vsel %vm598, %v1019, %v1013
    %v1972 = vsel %vm600, %v1025, %v1971
    %v1973 = vsel %vm602, %v1031, %v1972
    %v1974 = vsel %vm604, %v1037, %v1973
    %v1975 = vsel %vm606, %v1043, %v1974
    %v1976 = vsel %vm608, %v1049, %v1975
    %v1977 = vsel %vm610, %v1055, %v1976
    %v1996 = vsel %vm598, %v1805, %v1799
    %v1997 = vsel %vm600, %v1811, %v1996
    %v1998 = vsel %vm602, %v1817, %v1997
    %v1999 = vsel %vm604, %v1823, %v1998
    %v2000 = vsel %vm606, %v1829, %v1999
    %v2001 = vsel %vm608, %v1835, %v2000
    %v2002 = vsel %vm610, %v1841, %v2001
    %v2003 = vsel %vm598, %v1853, %v1847
    %v2004 = vsel %vm600, %v1859, %v2003
    %v2005 = vsel %vm602, %v1865, %v2004
    %v2006 = vsel %vm604, %v1871, %v2005
    %v2007 = vsel %vm606, %v1877, %v2006
    %v2008 = vsel %vm608, %v1883, %v2007
    %v2009 = vsel %vm610, %v1889, %v2008
    %v2028 = vrot.slane %v1933, 7
    %v2029 = vsel %vm598, %v2028, %v1932
    %v2030 = vrot.slane %v1934, 6
    %v2031 = vsel %vm600, %v2030, %v2029
    %v2032 = vrot.slane %v1935, 5
    %v2033 = vsel %vm602, %v2032, %v2031
    %v2034 = vrot.slane %v1936, 4
    %v2035 = vsel %vm604, %v2034, %v2033
    %v2036 = vrot.slane %v1937, 3
    %v2037 = vsel %vm606, %v2036, %v2035
    %v2038 = vrot.slane %v1938, 2
    %v2039 = vsel %vm608, %v2038, %v2037
    %v2040 = vrot.slane %v1939, 1
    %v2041 = vsel %vm610, %v2040, %v2039
    %v2042 = vrot.slane %v1941, 7
    %v2043 = vsel %vm598, %v2042, %v1940
    %v2044 = vrot.slane %v1942, 6
    %v2045 = vsel %vm600, %v2044, %v2043
    %v2046 = vrot.slane %v1943, 5
    %v2047 = vsel %vm602, %v2046, %v2045
    %v2048 = vrot.slane %v1944, 4
    %v2049 = vsel %vm604, %v2048, %v2047
    %v2050 = vrot.slane %v1945, 3
    %v2051 = vsel %vm606, %v2050, %v2049
    %v2052 = vrot.slane %v1946, 2
    %v2053 = vsel %vm608, %v2052, %v2051
    %v2054 = vrot.slane %v1947, 1
    %v2055 = vsel %vm610, %v2054, %v2053
    %v2058 = vld [vmem:[%s7] sm:$0x1]
    %v2059 = vld [vmem:[%s7 + $0x1] sm:$0x1]
    %v2060 = vld [vmem:[%s7 + $0x2] sm:$0x1]
    %v2061 = vpack.c.bf16 %v1977, %v1970
    %v2062 = vpack.c.bf16 %v2009, %v2002
    %v2063 = vpack.c.bf16 %v33, %v32
    %v2064 = vpack.c.bf16 %v37, %v36
    %v2065 = vpack.c.bf16 %v1895, %v1894
    %v2066 = vpack.c.bf16 %v2055, %v2041
    %v2067 = vld [vmem:[%s6] sm:$0xf]
    %v2068 = vld [vmem:[%s6 + $0x4] sm:$0xf]
    %v2069 = vld [vmem:[%s6 + $0x8] sm:$0xf]
    %v2070 = vld [vmem:[%s6 + $0xc] sm:$0xf]
    %v2071 = vld [vmem:[%s6 + $0x10] sm:$0xf]
    %v2072 = vld [vmem:[%s6 + $0x14] sm:$0xf]
    %v2073 = vld [vmem:[%s6 + $0x18] sm:$0xf]
    %v2074 = vld [vmem:[%s6 + $0x1c] sm:$0xf]
    %v2075 = vld [vmem:[%s6 + $0x20] sm:$0xf]
    %v2076 = vld [vmem:[%s6 + $0x24] sm:$0xf]
    %v2077 = vld [vmem:[%s6 + $0x28] sm:$0xf]
    %v2078 = vld [vmem:[%s6 + $0x2c] sm:$0xf]
    %v2079 = vld [vmem:[%s6 + $0x30] sm:$0xf]
    %v2080 = vld [vmem:[%s6 + $0x34] sm:$0xf]
    %v2081 = vld [vmem:[%s6 + $0x38] sm:$0xf]
    %v2082 = vld [vmem:[%s6 + $0x3c] sm:$0xf]
    %v2083 = vperm.slane %v2058, 0
    %v2100 = vunpack.c.l.b16 %v2067
    %v2101 = vunpack.c.l.b16 %v2068
    %v2102 = vunpack.c.l.b16 %v2069
    %v2103 = vunpack.c.l.b16 %v2070
    %v2104 = vunpack.c.l.b16 %v2071
    %v2105 = vunpack.c.l.b16 %v2072
    %v2106 = vunpack.c.l.b16 %v2073
    %v2107 = vunpack.c.l.b16 %v2074
    %v2108 = vunpack.c.l.b16 %v2075
    %v2109 = vunpack.c.l.b16 %v2076
    %v2110 = vunpack.c.l.b16 %v2077
    %v2111 = vunpack.c.l.b16 %v2078
    %v2112 = vunpack.c.l.b16 %v2079
    %v2113 = vunpack.c.l.b16 %v2080
    %v2114 = vunpack.c.l.b16 %v2081
    %v2115 = vunpack.c.l.b16 %v2082
    %v2116 = vpack.c.b16 %v2101, %v2100
    %v2117 = vpack.c.b16 %v2103, %v2102
    %v2118 = vpack.c.b16 %v2105, %v2104
    %v2119 = vpack.c.b16 %v2107, %v2106
    %v2120 = vpack.c.b16 %v2109, %v2108
    %v2121 = vpack.c.b16 %v2111, %v2110
    %v2122 = vpack.c.b16 %v2113, %v2112
    %v2123 = vpack.c.b16 %v2115, %v2114
    %2132 = vmatpush.bf16.msra.mxu0 %v2123
    %2133 = vmatpush.bf16.msra.mxu0 %v2122
    %2134 = vmatpush.bf16.msra.mxu0 %v2121
    %2135 = vmatpush.bf16.msra.mxu0 %v2120
    %2136 = vmatpush.bf16.msra.mxu0 %v2119
    %2137 = vmatpush.bf16.msra.mxu0 %v2118
    %2138 = vmatpush.bf16.msra.mxu0 %v2117
    %2139 = vmatpush.bf16.msra.mxu0 %v2116
    %2140 = vmatmul.bf16.gmra.mxu0 %v2061
    %v2141 = vpop.f32.mrf.mxu0
    %v2142 = vadd.f32 %v2083, %v2141
    %v2143 = vpop.f32.mrf.mxu0
    %v2144 = vadd.f32 %v2083, %v2143
    %2145 = vmatmul.bf16.gmra.mxu0 %v2062
    %v2146 = vpop.f32.mrf.mxu0
    %v2147 = vadd.f32 %v2083, %v2146
    %v2148 = vpop.f32.mrf.mxu0
    %v2149 = vadd.f32 %v2083, %v2148
    %2150 = vmatmul.bf16.gmra.mxu0 %v2063
    %v2151 = vpop.f32.mrf.mxu0
    %v2152 = vadd.f32 %v2083, %v2151
    %v2153 = vpop.f32.mrf.mxu0
    %v2154 = vadd.f32 %v2083, %v2153
    %2155 = vmatmul.bf16.gmra.mxu0 %v2064
    %v2156 = vpop.f32.mrf.mxu0
    %v2157 = vadd.f32 %v2083, %v2156
    %v2158 = vpop.f32.mrf.mxu0
    %v2159 = vadd.f32 %v2083, %v2158
    %2160 = vmatmul.bf16.gmra.mxu0 %v2065
    %v2161 = vpop.f32.mrf.mxu0
    %v2162 = vadd.f32 %v2083, %v2161
    %v2163 = vpop.f32.mrf.mxu0
    %v2164 = vadd.f32 %v2083, %v2163
    %2165 = vmatmul.bf16.gmra.mxu0 %v2066
    %v2166 = vpop.f32.mrf.mxu0
    %v2167 = vadd.f32 %v2083, %v2166
    %v2168 = vpop.f32.mrf.mxu0
    %v2169 = vadd.f32 %v2083, %v2168
    %2170 = vdwg.mxu0
    %v2171 = vmax.f32 %v2142, 0.0
    %v2172 = vmax.f32 %v2144, 0.0
    %v2173 = vmax.f32 %v2147, 0.0
    %v2174 = vmax.f32 %v2149, 0.0
    %v2175 = vmax.f32 %v2152, 0.0
    %v2176 = vmax.f32 %v2154, 0.0
    %v2177 = vmax.f32 %v2157, 0.0
    %v2178 = vmax.f32 %v2159, 0.0
    %v2179 = vmax.f32 %v2162, 0.0
    %v2180 = vmax.f32 %v2164, 0.0
    %v2181 = vmax.f32 %v2167, 0.0
    %v2182 = vmax.f32 %v2169, 0.0
    %v2183 = vperm.slane %v2059, 0
    %v2184 = vmul.f32 %v2171, %v2183
    %v2185 = vmul.f32 %v2172, %v2183
    %v2186 = vmul.f32 %v2173, %v2183
    %v2187 = vmul.f32 %v2174, %v2183
    %v2188 = vmul.f32 %v2175, %v2183
    %v2189 = vmul.f32 %v2176, %v2183
    %v2190 = vmul.f32 %v2177, %v2183
    %v2191 = vmul.f32 %v2178, %v2183
    %v2192 = vmul.f32 %v2179, %v2183
    %v2193 = vmul.f32 %v2180, %v2183
    %v2194 = vmul.f32 %v2181, %v2183
    %v2195 = vmul.f32 %v2182, %v2183
    %2196 = vadd.xlane.f32.xlu0 %v2184
    %v2197 = vpop.xlane.xlu0 %2196
    %2198 = vadd.xlane.f32.xlu0 %v2185
    %v2199 = vpop.xlane.xlu0 %2198
    %2200 = vadd.xlane.f32.xlu0 %v2186
    %v2201 = vpop.xlane.xlu0 %2200
    %2202 = vadd.xlane.f32.xlu0 %v2187
    %v2203 = vpop.xlane.xlu0 %2202
    %2204 = vadd.xlane.f32.xlu0 %v2188
    %v2205 = vpop.xlane.xlu0 %2204
    %2206 = vadd.xlane.f32.xlu0 %v2189
    %v2207 = vpop.xlane.xlu0 %2206
    %2208 = vadd.xlane.f32.xlu0 %v2190
    %v2209 = vpop.xlane.xlu0 %2208
    %2210 = vadd.xlane.f32.xlu0 %v2191
    %v2211 = vpop.xlane.xlu0 %2210
    %2212 = vadd.xlane.f32.xlu0 %v2192
    %v2213 = vpop.xlane.xlu0 %2212
    %2214 = vadd.xlane.f32.xlu0 %v2193
    %v2215 = vpop.xlane.xlu0 %2214
    %2216 = vadd.xlane.f32.xlu0 %v2194
    %v2217 = vpop.xlane.xlu0 %2216
    %2218 = vadd.xlane.f32.xlu0 %v2195
    %v2219 = vpop.xlane.xlu0 %2218
    %v2220 = vperm.slane %v2060, 0
    %v2221 = vadd.f32 %v2197, %v2220
    %v2222 = vadd.f32 %v2199, %v2220
    %v2223 = vadd.f32 %v2201, %v2220
    %v2224 = vadd.f32 %v2203, %v2220
    %v2225 = vadd.f32 %v2205, %v2220
    %v2226 = vadd.f32 %v2207, %v2220
    %v2227 = vadd.f32 %v2209, %v2220
    %v2228 = vadd.f32 %v2211, %v2220
    %v2229 = vadd.f32 %v2213, %v2220
    %v2230 = vadd.f32 %v2215, %v2220
    %v2231 = vadd.f32 %v2217, %v2220
    %v2232 = vadd.f32 %v2219, %v2220
    %v2233 = vxor.u32 %v2221, 2147483648
    %v2234 = vxor.u32 %v2222, 2147483648
    %v2235 = vxor.u32 %v2223, 2147483648
    %v2236 = vxor.u32 %v2224, 2147483648
    %v2237 = vxor.u32 %v2225, 2147483648
    %v2238 = vxor.u32 %v2226, 2147483648
    %v2239 = vxor.u32 %v2227, 2147483648
    %v2240 = vxor.u32 %v2228, 2147483648
    %v2241 = vxor.u32 %v2229, 2147483648
    %v2242 = vxor.u32 %v2230, 2147483648
    %v2243 = vxor.u32 %v2231, 2147483648
    %v2244 = vxor.u32 %v2232, 2147483648
    %v2245 = vmul.f32 %v2233, 1.442695
    %v2246 = vpow.pop %v2245
    %v2247 = vmul.f32 %v2234, 1.442695
    %v2248 = vpow.pop %v2247
    %v2249 = vmul.f32 %v2235, 1.442695
    %v2250 = vpow.pop %v2249
    %v2251 = vmul.f32 %v2236, 1.442695
    %v2252 = vpow.pop %v2251
    %v2253 = vmul.f32 %v2237, 1.442695
    %v2254 = vpow.pop %v2253
    %v2255 = vmul.f32 %v2238, 1.442695
    %v2256 = vpow.pop %v2255
    %v2257 = vmul.f32 %v2239, 1.442695
    %v2258 = vpow.pop %v2257
    %v2259 = vmul.f32 %v2240, 1.442695
    %v2260 = vpow.pop %v2259
    %v2261 = vmul.f32 %v2241, 1.442695
    %v2262 = vpow.pop %v2261
    %v2263 = vmul.f32 %v2242, 1.442695
    %v2264 = vpow.pop %v2263
    %v2265 = vmul.f32 %v2243, 1.442695
    %v2266 = vpow.pop %v2265
    %v2267 = vmul.f32 %v2244, 1.442695
    %v2268 = vpow.pop %v2267
    %v2269 = vadd.f32 %v2246, 1.0
    %v2270 = vadd.f32 %v2248, 1.0
    %v2271 = vadd.f32 %v2250, 1.0
    %v2272 = vadd.f32 %v2252, 1.0
    %v2273 = vadd.f32 %v2254, 1.0
    %v2274 = vadd.f32 %v2256, 1.0
    %v2275 = vadd.f32 %v2258, 1.0
    %v2276 = vadd.f32 %v2260, 1.0
    %v2277 = vadd.f32 %v2262, 1.0
    %v2278 = vadd.f32 %v2264, 1.0
    %v2279 = vadd.f32 %v2266, 1.0
    %v2280 = vadd.f32 %v2268, 1.0
    %v2281 = vrcp.pop %v2269
    %v2282 = vmul.f32 %v2269, %v2281
    %v2283 = vsub.f32 1.0, %v2282
    %v2284 = vmul.f32 %v2281, %v2283
    %v2285 = vadd.f32 %v2281, %v2284
    %vm2286 = vweird.f32 %v2269
    %vm2287 = vweird.f32 %v2281
    %vm2288 = vmor %vm2286, %vm2287
    %v2289 = vsel %vm2288, %v2281, %v2285
    %v2290 = vand.u32 2147483647, %v2269
    %vm2291 = vcmp.eq.f32.partialorder %v2290, 8.507059e+37
    %v2292 = vand.u32 %v2269, 2147483648
    %v2293 = vor.u32 1.1754944e-38, %v2292
    %v2294 = vsel %vm2291, %v2293, %v2289
    %v2295 = vmul.f32 1.0, %v2294
    %v2296 = vrcp.pop %v2270
    %v2297 = vmul.f32 %v2270, %v2296
    %v2298 = vsub.f32 1.0, %v2297
    %v2299 = vmul.f32 %v2296, %v2298
    %v2300 = vadd.f32 %v2296, %v2299
    %vm2301 = vweird.f32 %v2270
    %vm2302 = vweird.f32 %v2296
    %vm2303 = vmor %vm2301, %vm2302
    %v2304 = vsel %vm2303, %v2296, %v2300
    %v2305 = vand.u32 2147483647, %v2270
    %vm2306 = vcmp.eq.f32.partialorder %v2305, 8.507059e+37
    %v2307 = vand.u32 %v2270, 2147483648
    %v2308 = vor.u32 1.1754944e-38, %v2307
    %v2309 = vsel %vm2306, %v2308, %v2304
    %v2310 = vmul.f32 1.0, %v2309
    %v2311 = vrcp.pop %v2271
    %v2312 = vmul.f32 %v2271, %v2311
    %v2313 = vsub.f32 1.0, %v2312
    %v2314 = vmul.f32 %v2311, %v2313
    %v2315 = vadd.f32 %v2311, %v2314
    %vm2316 = vweird.f32 %v2271
    %vm2317 = vweird.f32 %v2311
    %vm2318 = vmor %vm2316, %vm2317
    %v2319 = vsel %vm2318, %v2311, %v2315
    %v2320 = vand.u32 2147483647, %v2271
    %vm2321 = vcmp.eq.f32.partialorder %v2320, 8.507059e+37
    %v2322 = vand.u32 %v2271, 2147483648
    %v2323 = vor.u32 1.1754944e-38, %v2322
    %v2324 = vsel %vm2321, %v2323, %v2319
    %v2325 = vmul.f32 1.0, %v2324
    %v2326 = vrcp.pop %v2272
    %v2327 = vmul.f32 %v2272, %v2326
    %v2328 = vsub.f32 1.0, %v2327
    %v2329 = vmul.f32 %v2326, %v2328
    %v2330 = vadd.f32 %v2326, %v2329
    %vm2331 = vweird.f32 %v2272
    %vm2332 = vweird.f32 %v2326
    %vm2333 = vmor %vm2331, %vm2332
    %v2334 = vsel %vm2333, %v2326, %v2330
    %v2335 = vand.u32 2147483647, %v2272
    %vm2336 = vcmp.eq.f32.partialorder %v2335, 8.507059e+37
    %v2337 = vand.u32 %v2272, 2147483648
    %v2338 = vor.u32 1.1754944e-38, %v2337
    %v2339 = vsel %vm2336, %v2338, %v2334
    %v2340 = vmul.f32 1.0, %v2339
    %v2341 = vrcp.pop %v2273
    %v2342 = vmul.f32 %v2273, %v2341
    %v2343 = vsub.f32 1.0, %v2342
    %v2344 = vmul.f32 %v2341, %v2343
    %v2345 = vadd.f32 %v2341, %v2344
    %vm2346 = vweird.f32 %v2273
    %vm2347 = vweird.f32 %v2341
    %vm2348 = vmor %vm2346, %vm2347
    %v2349 = vsel %vm2348, %v2341, %v2345
    %v2350 = vand.u32 2147483647, %v2273
    %vm2351 = vcmp.eq.f32.partialorder %v2350, 8.507059e+37
    %v2352 = vand.u32 %v2273, 2147483648
    %v2353 = vor.u32 1.1754944e-38, %v2352
    %v2354 = vsel %vm2351, %v2353, %v2349
    %v2355 = vmul.f32 1.0, %v2354
    %v2356 = vrcp.pop %v2274
    %v2357 = vmul.f32 %v2274, %v2356
    %v2358 = vsub.f32 1.0, %v2357
    %v2359 = vmul.f32 %v2356, %v2358
    %v2360 = vadd.f32 %v2356, %v2359
    %vm2361 = vweird.f32 %v2274
    %vm2362 = vweird.f32 %v2356
    %vm2363 = vmor %vm2361, %vm2362
    %v2364 = vsel %vm2363, %v2356, %v2360
    %v2365 = vand.u32 2147483647, %v2274
    %vm2366 = vcmp.eq.f32.partialorder %v2365, 8.507059e+37
    %v2367 = vand.u32 %v2274, 2147483648
    %v2368 = vor.u32 1.1754944e-38, %v2367
    %v2369 = vsel %vm2366, %v2368, %v2364
    %v2370 = vmul.f32 1.0, %v2369
    %v2371 = vrcp.pop %v2275
    %v2372 = vmul.f32 %v2275, %v2371
    %v2373 = vsub.f32 1.0, %v2372
    %v2374 = vmul.f32 %v2371, %v2373
    %v2375 = vadd.f32 %v2371, %v2374
    %vm2376 = vweird.f32 %v2275
    %vm2377 = vweird.f32 %v2371
    %vm2378 = vmor %vm2376, %vm2377
    %v2379 = vsel %vm2378, %v2371, %v2375
    %v2380 = vand.u32 2147483647, %v2275
    %vm2381 = vcmp.eq.f32.partialorder %v2380, 8.507059e+37
    %v2382 = vand.u32 %v2275, 2147483648
    %v2383 = vor.u32 1.1754944e-38, %v2382
    %v2384 = vsel %vm2381, %v2383, %v2379
    %v2385 = vmul.f32 1.0, %v2384
    %v2386 = vrcp.pop %v2276
    %v2387 = vmul.f32 %v2276, %v2386
    %v2388 = vsub.f32 1.0, %v2387
    %v2389 = vmul.f32 %v2386, %v2388
    %v2390 = vadd.f32 %v2386, %v2389
    %vm2391 = vweird.f32 %v2276
    %vm2392 = vweird.f32 %v2386
    %vm2393 = vmor %vm2391, %vm2392
    %v2394 = vsel %vm2393, %v2386, %v2390
    %v2395 = vand.u32 2147483647, %v2276
    %vm2396 = vcmp.eq.f32.partialorder %v2395, 8.507059e+37
    %v2397 = vand.u32 %v2276, 2147483648
    %v2398 = vor.u32 1.1754944e-38, %v2397
    %v2399 = vsel %vm2396, %v2398, %v2394
    %v2400 = vmul.f32 1.0, %v2399
    %v2401 = vrcp.pop %v2277
    %v2402 = vmul.f32 %v2277, %v2401
    %v2403 = vsub.f32 1.0, %v2402
    %v2404 = vmul.f32 %v2401, %v2403
    %v2405 = vadd.f32 %v2401, %v2404
    %vm2406 = vweird.f32 %v2277
    %vm2407 = vweird.f32 %v2401
    %vm2408 = vmor %vm2406, %vm2407
    %v2409 = vsel %vm2408, %v2401, %v2405
    %v2410 = vand.u32 2147483647, %v2277
    %vm2411 = vcmp.eq.f32.partialorder %v2410, 8.507059e+37
    %v2412 = vand.u32 %v2277, 2147483648
    %v2413 = vor.u32 1.1754944e-38, %v2412
    %v2414 = vsel %vm2411, %v2413, %v2409
    %v2415 = vmul.f32 1.0, %v2414
    %v2416 = vrcp.pop %v2278
    %v2417 = vmul.f32 %v2278, %v2416
    %v2418 = vsub.f32 1.0, %v2417
    %v2419 = vmul.f32 %v2416, %v2418
    %v2420 = vadd.f32 %v2416, %v2419
    %vm2421 = vweird.f32 %v2278
    %vm2422 = vweird.f32 %v2416
    %vm2423 = vmor %vm2421, %vm2422
    %v2424 = vsel %vm2423, %v2416, %v2420
    %v2425 = vand.u32 2147483647, %v2278
    %vm2426 = vcmp.eq.f32.partialorder %v2425, 8.507059e+37
    %v2427 = vand.u32 %v2278, 2147483648
    %v2428 = vor.u32 1.1754944e-38, %v2427
    %v2429 = vsel %vm2426, %v2428, %v2424
    %v2430 = vmul.f32 1.0, %v2429
    %v2431 = vrcp.pop %v2279
    %v2432 = vmul.f32 %v2279, %v2431
    %v2433 = vsub.f32 1.0, %v2432
    %v2434 = vmul.f32 %v2431, %v2433
    %v2435 = vadd.f32 %v2431, %v2434
    %vm2436 = vweird.f32 %v2279
    %vm2437 = vweird.f32 %v2431
    %vm2438 = vmor %vm2436, %vm2437
    %v2439 = vsel %vm2438, %v2431, %v2435
    %v2440 = vand.u32 2147483647, %v2279
    %vm2441 = vcmp.eq.f32.partialorder %v2440, 8.507059e+37
    %v2442 = vand.u32 %v2279, 2147483648
    %v2443 = vor.u32 1.1754944e-38, %v2442
    %v2444 = vsel %vm2441, %v2443, %v2439
    %v2445 = vmul.f32 1.0, %v2444
    %v2446 = vrcp.pop %v2280
    %v2447 = vmul.f32 %v2280, %v2446
    %v2448 = vsub.f32 1.0, %v2447
    %v2449 = vmul.f32 %v2446, %v2448
    %v2450 = vadd.f32 %v2446, %v2449
    %vm2451 = vweird.f32 %v2280
    %vm2452 = vweird.f32 %v2446
    %vm2453 = vmor %vm2451, %vm2452
    %v2454 = vsel %vm2453, %v2446, %v2450
    %v2455 = vand.u32 2147483647, %v2280
    %vm2456 = vcmp.eq.f32.partialorder %v2455, 8.507059e+37
    %v2457 = vand.u32 %v2280, 2147483648
    %v2458 = vor.u32 1.1754944e-38, %v2457
    %v2459 = vsel %vm2456, %v2458, %v2454
    %v2460 = vmul.f32 1.0, %v2459
    %v2461 = vsub.f32 1.0, %v2295
    %v2462 = vsub.f32 1.0, %v2310
    %v2463 = vadd.f32 %v2461, %v2325
    %v2464 = vadd.f32 %v2462, %v2340
    %v2465 = vmax.f32 %v2463, 0.0
    %v2466 = vmax.f32 %v2464, 0.0
    %v2467 = vsub.f32 1.0, %v2355
    %v2468 = vsub.f32 1.0, %v2370
    %v2469 = vadd.f32 %v2467, %v2385
    %v2470 = vadd.f32 %v2468, %v2400
    %v2471 = vmax.f32 %v2469, 0.0
    %v2472 = vmax.f32 %v2470, 0.0
    %v2473 = vadd.f32 %v2465, %v2471
    %v2474 = vadd.f32 %v2466, %v2472
    %v2475 = vadd.f32 %v2415, 1.0
    %v2476 = vadd.f32 %v2430, 1.0
    %v2477 = vsub.f32 %v2475, %v2445
    %v2478 = vsub.f32 %v2476, %v2460
    %v2479 = vmax.f32 %v2477, 0.0
    %v2480 = vmax.f32 %v2478, 0.0
    %v2481 = vadd.f32 %v2473, %v2479
    %v2482 = vadd.f32 %v2474, %v2480
    %s2483 = smul.u32 0, 16
    %v2484 = vlaneseq
    %v2485 = vshrl.u32 %v2484, 7
    %v2486 = vadd.s32 %v2485, 8
    %v2487 = vstv %s2483
    %v2488 = vadd.s32 %v2487, %v2485
    %v2489 = vadd.s32 %v2487, %v2486
    %vm2490 = vcmp.lt.s32.totalorder %v2488, 4
    %vm2491 = vcmp.lt.s32.totalorder %v2489, 4
    %v2492 = vsel %vm2490, 1, 0
    %v2493 = vsel %vm2491, 1, 0
    %v2494 = vcvt.s32.f32 %v2492
    %v2495 = vcvt.s32.f32 %v2493
    %v2496 = vmul.f32 %v2494, %v2481
    %v2497 = vmul.f32 %v2495, %v2482
    %vm2498 = vcmask 7168
    %v2499 = vsel %vm2498, %v2496, 0.0
    %v2500 = vsel %vm2498, %v2497, 0.0
    %v2501 = vadd.f32 %v2499, %v2500
    %2502 = vadd.xlane.f32.xlu0 %v2501
    %v2503 = vpop.xlane.xlu0 %2502
    %v2504 = vrot.slane %v2503, 4
    %v2505 = vadd.f32 %v2503, %v2504
    %v2506 = vrot.slane %v2505, 2
    %v2507 = vadd.f32 %v2505, %v2506
    %v2508 = vrot.slane %v2507, 1
    %v2509 = vadd.f32 %v2507, %v2508
    %s2510 = vtos %v2509
    %v2511 = vstv %s2510
    %vm2512 = vcmask 0
    %2513 = vst.msk [vmem:[#allocation2] sm:$0x1] %vm2512, %v2511
    // Predicated region
    $region34: #{adag_forward.3} parent=1 // pred_check
      _
    $region35: #{adag_forward.3} parent=1 // pred_check_branch
      %2515 = sbr.rel (0) target = $region37
    $region36: #{adag_forward.3} parent=1 // pred_region
      %2517 = vsyncadd [#allocation3], 0
      %s2519 = sshll.u32 [#allocation2], 4
      %s2520 = int_to_ptr.vmem [resolvable:$true] %s2519
      %s2521 = sshll.u32 %s8, 4
      %s2522 = int_to_ptr.hbm [resolvable:$true] %s2521
      %2524 = dma.vmem_to_hbm [thread:$0]  %s2520, 16, %s2522, [#allocation3]
    $region37: #{adag_forward.3} parent=1 // pred_fallthru
      _
    // Predicated region
    $region38: #{adag_forward.3} parent=1 // pred_check
      _
    $region39: #{adag_forward.3} parent=1 // pred_check_branch
      %2526 = sbr.rel (0) target = $region41
    $region40: #{adag_forward.3} parent=1 // pred_region
      %2528 = dma.done [#allocation3], 16
    $region41: #{adag_forward.3} parent=1 // pred_fallthru
      _
    %2529 = vsyncpa [#allocation3], 1

</llo_original>
